<compile_context>
chip_gen: v6e
topology: v6e:2x2x1
jax: 0.10.0
libtpu: 0.0.40
codegen_flags: <defaults>
</compile_context>

<pallas_src>
import jax
import jax.numpy as jnp
from jax.experimental import pallas as pl
from jax.experimental.pallas import tpu as pltpu

IN = 8              # args['in']   (== h_v.size(1))
OUT = 16            # args['out']
EDGE_FEAT = 4       # NNet n_in (edge feature size)
HID = (128, 256, 128)   # NNet hidden layers (ReLU), final layer -> IN*OUT
LANES = 128         # lane-dense output width (OUT zero-padded up to this)
TN = 512            # edges per grid tile (sweep 512-2048; 512 keeps grid >= 2 at demo size)


def message_kernel(e_ref, hw_ref,
                   w0_ref, b0_ref, w1_ref, b1_ref,
                   w2_ref, b2_ref, w3s_ref, b3s_ref,
                   out_ref):
    # ---- layer 0: K = EDGE_FEAT (=4) -> VPU broadcast-FMAs, not an MXU pass ----
    x = e_ref[...]                                        # (TN, EDGE_FEAT) f32
    acc = x[:, 0:1] * w0_ref[0:1, :]                      # (TN,1)*(1,128) -> (TN,128)
    for k in range(1, EDGE_FEAT):                         # static unroll (4 FMAs)
        acc = acc + x[:, k:k + 1] * w0_ref[k:k + 1, :]
    h = jnp.maximum(acc + b0_ref[...], 0.0)               # (TN, 128) f32

    # ---- layers 1-2: bf16 MXU matmuls, f32 accumulation ------------------------
    h = jnp.maximum(
        jnp.dot(h.astype(jnp.bfloat16), w1_ref[...],
                preferred_element_type=jnp.float32) + b1_ref[...], 0.0)   # (TN, 256)
    h = jnp.maximum(
        jnp.dot(h.astype(jnp.bfloat16), w2_ref[...],
                preferred_element_type=jnp.float32) + b2_ref[...], 0.0)   # (TN, 128)

    # ---- fused final layer (w3 @ S pre-folded, padded to 128 lanes) + hw scale --
    y = jnp.dot(h.astype(jnp.bfloat16), w3s_ref[...],
                preferred_element_type=jnp.float32) + b3s_ref[...]        # (TN, 128)
    out_ref[...] = hw_ref[...] * y                        # full-lane (unmasked) store


def init_params(key):
    """Deterministic PyTorch-Linear-style init for NNet(EDGE_FEAT -> ... -> IN*OUT)."""
    dims = (EDGE_FEAT,) + HID + (IN * OUT,)
    params = {}
    for li in range(len(dims) - 1):
        key, kw, kb = jax.random.split(key, 3)
        bound = 1.0 / jnp.sqrt(dims[li])
        params[f"w{li}"] = jax.random.uniform(kw, (dims[li], dims[li + 1]),
                                              jnp.float32, -bound, bound)
        params[f"b{li}"] = jax.random.uniform(kb, (1, dims[li + 1]),
                                              jnp.float32, -bound, bound)
    return params


def prepare_params(params):
    """One-time parameter transform: fuse w3 with the IN-block sum selector, pad to
    128 output lanes, and cast matmul weights to bf16."""
    S = (jnp.arange(OUT * IN)[:, None] // IN == jnp.arange(OUT)[None, :]).astype(jnp.float32)
    w3s = jnp.pad(params["w3"] @ S, ((0, 0), (0, LANES - OUT)))   # (128, 128)
    b3s = jnp.pad(params["b3"] @ S, ((0, 0), (0, LANES - OUT)))   # (1, 128)
    return dict(
        w0=params["w0"].astype(jnp.float32), b0=params["b0"].astype(jnp.float32),
        w1=params["w1"].astype(jnp.bfloat16), b1=params["b1"].astype(jnp.float32),
        w2=params["w2"].astype(jnp.bfloat16), b2=params["b2"].astype(jnp.float32),
        w3s=w3s.astype(jnp.bfloat16), b3s=b3s.astype(jnp.float32),
    )


def message_function(h_v, h_w, e_vw, kparams, *, tn=TN):
    """Pallas implementation of MessageFunction.forward (m_mpnn) for 2-D h_w."""
    # TODO(synk): if h_w is passed as per-node features (A, B, IN) instead of the 2-D
    # layout used here, the scalar-broadcast / w3@S fusion is invalid and a true
    # (TN,OUT,IN)x(TN,IN) per-edge contraction kernel would be needed.
    assert h_v.shape[1] == IN, "args['in'] must equal h_v.size(1)"
    n_e = h_w.shape[0] * h_w.shape[1]
    e_flat = e_vw.reshape(-1, EDGE_FEAT).astype(jnp.float32)       # NNet's .view(-1, n_in)
    assert e_flat.shape[0] == n_e
    hw_flat = h_w.reshape(n_e, 1).astype(jnp.float32)

    grid = pl.cdiv(n_e, tn)
    n_pad = grid * tn
    if n_pad != n_e:                       # ragged last tile -> zero pad, sliced off below
        e_flat = jnp.pad(e_flat, ((0, n_pad - n_e), (0, 0)))
        hw_flat = jnp.pad(hw_flat, ((0, n_pad - n_e), (0, 0)))

    def const(arr):   # constant index_map -> DMA'd once, re-used across grid steps
        return pl.BlockSpec(arr.shape, lambda i: (0, 0))

    grid_spec = pltpu.PrefetchScalarGridSpec(
        num_scalar_prefetch=0,
        grid=(grid,),
        in_specs=[
            pl.BlockSpec((tn, EDGE_FEAT), lambda i: (i, 0)),
            pl.BlockSpec((tn, 1), lambda i: (i, 0)),
            const(kparams["w0"]), const(kparams["b0"]),
            const(kparams["w1"]), const(kparams["b1"]),
            const(kparams["w2"]), const(kparams["b2"]),
            const(kparams["w3s"]), const(kparams["b3s"]),
        ],
        out_specs=pl.BlockSpec((tn, LANES), lambda i: (i, 0)),
    )

    out = pl.pallas_call(
        message_kernel,
        out_shape=jax.ShapeDtypeStruct((n_pad, LANES), jnp.float32),
        grid_spec=grid_spec,
        compiler_params=pltpu.CompilerParams(dimension_semantics=("parallel",)),
    )(e_flat, hw_flat,
      kparams["w0"], kparams["b0"], kparams["w1"], kparams["b1"],
      kparams["w2"], kparams["b2"], kparams["w3s"], kparams["b3s"])

    return out[:n_e, :OUT]


def reference_f32(h_v, h_w, e_vw, params):
    """Plain-JAX f32 transliteration of the PyTorch forward (semantic check)."""
    x = e_vw.reshape(-1, EDGE_FEAT)
    h = jnp.maximum(x @ params["w0"] + params["b0"], 0.0)
    h = jnp.maximum(h @ params["w1"] + params["b1"], 0.0)
    h = jnp.maximum(h @ params["w2"] + params["b2"], 0.0)
    eo = (h @ params["w3"] + params["b3"]).reshape(-1, OUT, IN)
    A, B = h_w.shape
    h_w_rows = jnp.broadcast_to(h_w[..., None], (A, B, h_v.shape[1])).reshape(-1, IN)
    return jnp.einsum("noi,ni->no", eo, h_w_rows)


def reference_kernel_numerics(h_w, e_vw, kparams):
    """Same math / dtypes as the kernel, in plain JAX (tight numerical check)."""
    x = e_vw.reshape(-1, EDGE_FEAT).astype(jnp.float32)
    h = jnp.maximum(x @ kparams["w0"] + kparams["b0"], 0.0)
    h = jnp.maximum(jnp.dot(h.astype(jnp.bfloat16), kparams["w1"],
                            preferred_element_type=jnp.float32) + kparams["b1"], 0.0)
    h = jnp.maximum(jnp.dot(h.astype(jnp.bfloat16), kparams["w2"],
                            preferred_element_type=jnp.float32) + kparams["b2"], 0.0)
    y = jnp.dot(h.astype(jnp.bfloat16), kparams["w3s"],
                preferred_element_type=jnp.float32) + kparams["b3s"]
    return (h_w.reshape(-1, 1).astype(jnp.float32) * y)[:, :OUT]


if __name__ == "__main__":
    key = jax.random.PRNGKey(0)
    kp, kv, kw_, ke = jax.random.split(key, 4)

    params = init_params(kp)
    kparams = prepare_params(params)        # one-time parameter transform

    A, B = 8, 128                           # A*B = 1024 edges -> grid = 2 tiles of TN=512
    h_v = jax.random.normal(kv, (A * B, IN), jnp.float32)     # only .size(1) is used
    h_w = jax.random.normal(kw_, (A, B), jnp.float32)
    e_vw = jax.random.normal(ke, (A, B, EDGE_FEAT), jnp.float32)

    m = message_function(h_v, h_w, e_vw, kparams)
    m = jax.block_until_ready(m)
    assert m.shape == (A * B, OUT)

    # Tight check vs an exact-numerics (bf16-matmul) transliteration.
    m_mimic = reference_kernel_numerics(h_w, e_vw, kparams)
    assert jnp.allclose(m, m_mimic, atol=2e-3, rtol=2e-3), "mismatch vs kernel-numerics reference"

    # Looser semantic check vs the faithful f32 PyTorch transliteration.
    m_ref = reference_f32(h_v, h_w, e_vw, params)
    assert jnp.allclose(m, m_ref, atol=5e-2, rtol=5e-2), "mismatch vs f32 reference"

    print("KERNEL_OK")
</pallas_src>

<mosaic_0001>
module attributes {stable_mosaic.version = 11 : i64} {
  func.func @message_kernel(%arg0: i32, %arg1: memref<512x4xf32, #tpu.memory_space<vmem>>, %arg2: memref<512x1xf32, #tpu.memory_space<vmem>>, %arg3: memref<4x128xf32, #tpu.memory_space<vmem>>, %arg4: memref<1x128xf32, #tpu.memory_space<vmem>>, %arg5: memref<128x256xbf16, #tpu.memory_space<vmem>>, %arg6: memref<1x256xf32, #tpu.memory_space<vmem>>, %arg7: memref<256x128xbf16, #tpu.memory_space<vmem>>, %arg8: memref<1x128xf32, #tpu.memory_space<vmem>>, %arg9: memref<128x128xbf16, #tpu.memory_space<vmem>>, %arg10: memref<1x128xf32, #tpu.memory_space<vmem>>, %arg11: memref<512x128xf32, #tpu.memory_space<vmem>>) attributes {dimension_semantics = [#tpu.dimension_semantics<parallel>], iteration_bounds = array<i64: 2>, scalar_prefetch = 0 : i64, scratch_operands = 0 : i64, tpu.core_type = #tpu.core_type<tc>, window_params = [{transform_indices = @transform_0, window_bounds = array<i64: 512, 4>}, {transform_indices = @transform_1, window_bounds = array<i64: 512, 1>}, {pipeline_mode = #tpu.pipeline_mode<synchronous>, transform_indices = @transform_2, window_bounds = array<i64: 4, 128>}, {pipeline_mode = #tpu.pipeline_mode<synchronous>, transform_indices = @transform_3, window_bounds = array<i64: 1, 128>}, {pipeline_mode = #tpu.pipeline_mode<synchronous>, transform_indices = @transform_4, window_bounds = array<i64: 128, 256>}, {pipeline_mode = #tpu.pipeline_mode<synchronous>, transform_indices = @transform_5, window_bounds = array<i64: 1, 256>}, {pipeline_mode = #tpu.pipeline_mode<synchronous>, transform_indices = @transform_6, window_bounds = array<i64: 256, 128>}, {pipeline_mode = #tpu.pipeline_mode<synchronous>, transform_indices = @transform_7, window_bounds = array<i64: 1, 128>}, {pipeline_mode = #tpu.pipeline_mode<synchronous>, transform_indices = @transform_8, window_bounds = array<i64: 128, 128>}, {pipeline_mode = #tpu.pipeline_mode<synchronous>, transform_indices = @transform_9, window_bounds = array<i64: 1, 128>}, {transform_indices = @transform_10, window_bounds = array<i64: 512, 128>}]} {
    %c0 = arith.constant 0 : index
    %c0_0 = arith.constant 0 : index
    %0 = vector.load %arg1[%c0, %c0_0] : memref<512x4xf32, #tpu.memory_space<vmem>>, vector<512x4xf32>
    %1 = vector.extract_strided_slice %0 {offsets = [0, 0], sizes = [512, 1], strides = [1, 1]} : vector<512x4xf32> to vector<512x1xf32>
    %c0_1 = arith.constant 0 : index
    %c0_2 = arith.constant 0 : index
    %2 = vector.load %arg3[%c0_1, %c0_2] : memref<4x128xf32, #tpu.memory_space<vmem>>, vector<1x128xf32>
    %3 = vector.broadcast %1 : vector<512x1xf32> to vector<512x128xf32>
    %4 = vector.broadcast %2 : vector<1x128xf32> to vector<512x128xf32>
    %5 = arith.mulf %3, %4 : vector<512x128xf32>
    %6 = vector.extract_strided_slice %0 {offsets = [0, 1], sizes = [512, 1], strides = [1, 1]} : vector<512x4xf32> to vector<512x1xf32>
    %c1 = arith.constant 1 : index
    %c0_3 = arith.constant 0 : index
    %7 = vector.load %arg3[%c1, %c0_3] : memref<4x128xf32, #tpu.memory_space<vmem>>, vector<1x128xf32>
    %8 = vector.broadcast %6 : vector<512x1xf32> to vector<512x128xf32>
    %9 = vector.broadcast %7 : vector<1x128xf32> to vector<512x128xf32>
    %10 = arith.mulf %8, %9 : vector<512x128xf32>
    %11 = arith.addf %5, %10 : vector<512x128xf32>
    %12 = vector.extract_strided_slice %0 {offsets = [0, 2], sizes = [512, 1], strides = [1, 1]} : vector<512x4xf32> to vector<512x1xf32>
    %c2 = arith.constant 2 : index
    %c0_4 = arith.constant 0 : index
    %13 = vector.load %arg3[%c2, %c0_4] : memref<4x128xf32, #tpu.memory_space<vmem>>, vector<1x128xf32>
    %14 = vector.broadcast %12 : vector<512x1xf32> to vector<512x128xf32>
    %15 = vector.broadcast %13 : vector<1x128xf32> to vector<512x128xf32>
    %16 = arith.mulf %14, %15 : vector<512x128xf32>
    %17 = arith.addf %11, %16 : vector<512x128xf32>
    %18 = vector.extract_strided_slice %0 {offsets = [0, 3], sizes = [512, 1], strides = [1, 1]} : vector<512x4xf32> to vector<512x1xf32>
    %c3 = arith.constant 3 : index
    %c0_5 = arith.constant 0 : index
    %19 = vector.load %arg3[%c3, %c0_5] : memref<4x128xf32, #tpu.memory_space<vmem>>, vector<1x128xf32>
    %20 = vector.broadcast %18 : vector<512x1xf32> to vector<512x128xf32>
    %21 = vector.broadcast %19 : vector<1x128xf32> to vector<512x128xf32>
    %22 = arith.mulf %20, %21 : vector<512x128xf32>
    %23 = arith.addf %17, %22 : vector<512x128xf32>
    %c0_6 = arith.constant 0 : index
    %c0_7 = arith.constant 0 : index
    %24 = vector.load %arg4[%c0_6, %c0_7] : memref<1x128xf32, #tpu.memory_space<vmem>>, vector<1x128xf32>
    %25 = vector.broadcast %24 : vector<1x128xf32> to vector<512x128xf32>
    %26 = arith.addf %23, %25 : vector<512x128xf32>
    %cst = arith.constant 0.000000e+00 : f32
    %27 = vector.broadcast %cst : f32 to vector<512x128xf32>
    %28 = arith.maximumf %26, %27 : vector<512x128xf32>
    %29 = arith.truncf %28 : vector<512x128xf32> to vector<512x128xbf16>
    %c0_8 = arith.constant 0 : index
    %c0_9 = arith.constant 0 : index
    %30 = vector.load %arg5[%c0_8, %c0_9] : memref<128x256xbf16, #tpu.memory_space<vmem>>, vector<128x256xbf16>
    %cst_10 = arith.constant dense<0.000000e+00> : vector<512x256xf32>
    %31 = tpu.matmul %29, %30, %cst_10 {dimension_numbers = #tpu.dot_dimension_numbers<[1], [0], [0], [1], [0, 0, 1, 1], [], []>} : vector<512x128xbf16>, vector<128x256xbf16>, vector<512x256xf32> -> vector<512x256xf32>
    %c0_11 = arith.constant 0 : index
    %c0_12 = arith.constant 0 : index
    %32 = vector.load %arg6[%c0_11, %c0_12] : memref<1x256xf32, #tpu.memory_space<vmem>>, vector<1x256xf32>
    %33 = vector.broadcast %32 : vector<1x256xf32> to vector<512x256xf32>
    %34 = arith.addf %31, %33 : vector<512x256xf32>
    %cst_13 = arith.constant 0.000000e+00 : f32
    %35 = vector.broadcast %cst_13 : f32 to vector<512x256xf32>
    %36 = arith.maximumf %34, %35 : vector<512x256xf32>
    %37 = arith.truncf %36 : vector<512x256xf32> to vector<512x256xbf16>
    %c0_14 = arith.constant 0 : index
    %c0_15 = arith.constant 0 : index
    %38 = vector.load %arg7[%c0_14, %c0_15] : memref<256x128xbf16, #tpu.memory_space<vmem>>, vector<256x128xbf16>
    %cst_16 = arith.constant dense<0.000000e+00> : vector<512x128xf32>
    %39 = tpu.matmul %37, %38, %cst_16 {dimension_numbers = #tpu.dot_dimension_numbers<[1], [0], [0], [1], [0, 0, 1, 1], [], []>} : vector<512x256xbf16>, vector<256x128xbf16>, vector<512x128xf32> -> vector<512x128xf32>
    %c0_17 = arith.constant 0 : index
    %c0_18 = arith.constant 0 : index
    %40 = vector.load %arg8[%c0_17, %c0_18] : memref<1x128xf32, #tpu.memory_space<vmem>>, vector<1x128xf32>
    %41 = vector.broadcast %40 : vector<1x128xf32> to vector<512x128xf32>
    %42 = arith.addf %39, %41 : vector<512x128xf32>
    %cst_19 = arith.constant 0.000000e+00 : f32
    %43 = vector.broadcast %cst_19 : f32 to vector<512x128xf32>
    %44 = arith.maximumf %42, %43 : vector<512x128xf32>
    %45 = arith.truncf %44 : vector<512x128xf32> to vector<512x128xbf16>
    %c0_20 = arith.constant 0 : index
    %c0_21 = arith.constant 0 : index
    %46 = vector.load %arg9[%c0_20, %c0_21] : memref<128x128xbf16, #tpu.memory_space<vmem>>, vector<128x128xbf16>
    %cst_22 = arith.constant dense<0.000000e+00> : vector<512x128xf32>
    %47 = tpu.matmul %45, %46, %cst_22 {dimension_numbers = #tpu.dot_dimension_numbers<[1], [0], [0], [1], [0, 0, 1, 1], [], []>} : vector<512x128xbf16>, vector<128x128xbf16>, vector<512x128xf32> -> vector<512x128xf32>
    %c0_23 = arith.constant 0 : index
    %c0_24 = arith.constant 0 : index
    %48 = vector.load %arg10[%c0_23, %c0_24] : memref<1x128xf32, #tpu.memory_space<vmem>>, vector<1x128xf32>
    %49 = vector.broadcast %48 : vector<1x128xf32> to vector<512x128xf32>
    %50 = arith.addf %47, %49 : vector<512x128xf32>
    %c0_25 = arith.constant 0 : index
    %c0_26 = arith.constant 0 : index
    %51 = vector.load %arg2[%c0_25, %c0_26] : memref<512x1xf32, #tpu.memory_space<vmem>>, vector<512x1xf32>
    %52 = vector.broadcast %51 : vector<512x1xf32> to vector<512x128xf32>
    %53 = arith.mulf %52, %50 : vector<512x128xf32>
    %c0_27 = arith.constant 0 : index
    %c0_28 = arith.constant 0 : index
    %54 = vector.load %arg11[%c0_27, %c0_28] : memref<512x128xf32, #tpu.memory_space<vmem>>, vector<512x128xf32>
    tpu.vector_store %arg11[%c0_27, %c0_28], %53 {strides = array<i32>} : memref<512x128xf32, #tpu.memory_space<vmem>>, vector<512x128xf32>,
    return
  }
  func.func @transform_0(%arg0: i32) -> (i32, i32) {
    %c0_i32 = arith.constant 0 : i32
    %c0_i32_0 = arith.constant 0 : i32
    return %arg0, %c0_i32 : i32, i32
  }
  func.func @transform_1(%arg0: i32) -> (i32, i32) {
    %c0_i32 = arith.constant 0 : i32
    %c0_i32_0 = arith.constant 0 : i32
    return %arg0, %c0_i32 : i32, i32
  }
  func.func @transform_2(%arg0: i32) -> (i32, i32) {
    %c0_i32 = arith.constant 0 : i32
    %c0_i32_0 = arith.constant 0 : i32
    %c0_i32_1 = arith.constant 0 : i32
    return %c0_i32, %c0_i32_0 : i32, i32
  }
  func.func @transform_3(%arg0: i32) -> (i32, i32) {
    %c0_i32 = arith.constant 0 : i32
    %c0_i32_0 = arith.constant 0 : i32
    %c0_i32_1 = arith.constant 0 : i32
    return %c0_i32, %c0_i32_0 : i32, i32
  }
  func.func @transform_4(%arg0: i32) -> (i32, i32) {
    %c0_i32 = arith.constant 0 : i32
    %c0_i32_0 = arith.constant 0 : i32
    %c0_i32_1 = arith.constant 0 : i32
    return %c0_i32, %c0_i32_0 : i32, i32
  }
  func.func @transform_5(%arg0: i32) -> (i32, i32) {
    %c0_i32 = arith.constant 0 : i32
    %c0_i32_0 = arith.constant 0 : i32
    %c0_i32_1 = arith.constant 0 : i32
    return %c0_i32, %c0_i32_0 : i32, i32
  }
  func.func @transform_6(%arg0: i32) -> (i32, i32) {
    %c0_i32 = arith.constant 0 : i32
    %c0_i32_0 = arith.constant 0 : i32
    %c0_i32_1 = arith.constant 0 : i32
    return %c0_i32, %c0_i32_0 : i32, i32
  }
  func.func @transform_7(%arg0: i32) -> (i32, i32) {
    %c0_i32 = arith.constant 0 : i32
    %c0_i32_0 = arith.constant 0 : i32
    %c0_i32_1 = arith.constant 0 : i32
    return %c0_i32, %c0_i32_0 : i32, i32
  }
  func.func @transform_8(%arg0: i32) -> (i32, i32) {
    %c0_i32 = arith.constant 0 : i32
    %c0_i32_0 = arith.constant 0 : i32
    %c0_i32_1 = arith.constant 0 : i32
    return %c0_i32, %c0_i32_0 : i32, i32
  }
  func.func @transform_9(%arg0: i32) -> (i32, i32) {
    %c0_i32 = arith.constant 0 : i32
    %c0_i32_0 = arith.constant 0 : i32
    %c0_i32_1 = arith.constant 0 : i32
    return %c0_i32, %c0_i32_0 : i32, i32
  }
  func.func @transform_10(%arg0: i32) -> (i32, i32) {
    %c0_i32 = arith.constant 0 : i32
    %c0_i32_0 = arith.constant 0 : i32
    return %arg0, %c0_i32 : i32, i32
  }
}

</mosaic_0001>

<llo_original>
// kernel: tpu_custom_call.1
$region0: #{tpu_custom_call.1}
  #allocation0 [shape = 'u32[]', space=smem, size = 0x4, offset = 0x4, fixed_abs, tag = 'smem constant byte address 0x4 - core index']
  #allocation1 [shape = 'u32[144,128]{1,0:T(1,128)}', space=vmem, size = 0x12000, scoped, tag = 'internal scratch']
  %s0 = inlined_call_operand.vmem [shape: f32[1024,4], index: 0, kind: input, shape index: {}]
  %s1 = inlined_call_operand.vmem [shape: f32[1024,1], index: 1, kind: input, shape index: {}]
  %s2 = inlined_call_operand.vmem [shape: f32[4,128], index: 2, kind: input, shape index: {}]
  %s3 = inlined_call_operand.vmem [shape: f32[1,128], index: 3, kind: input, shape index: {}]
  %s4 = inlined_call_operand.vmem [shape: bf16[128,256], index: 4, kind: input, shape index: {}]
  %s5 = inlined_call_operand.vmem [shape: f32[1,256], index: 5, kind: input, shape index: {}]
  %s6 = inlined_call_operand.vmem [shape: bf16[256,128], index: 6, kind: input, shape index: {}]
  %s7 = inlined_call_operand.vmem [shape: f32[1,128], index: 7, kind: input, shape index: {}]
  %s8 = inlined_call_operand.vmem [shape: bf16[128,128], index: 8, kind: input, shape index: {}]
  %s9 = inlined_call_operand.vmem [shape: f32[1,128], index: 9, kind: input, shape index: {}]
  %s10 = inlined_call_operand.hbm [shape: f32[1024,128], index: 10, kind: output, shape index: {}]
  %s11 = sld [smem:[#allocation0]]
  $region73: #{tpu_custom_call.1} parent=0
    _
  %s13 = ssub.s32 1, %s11
  %s14 = scalar_select 0, %s13, %s11
  $region1: #{tpu_custom_call.1} parent=0
    #allocation2 [shape = 'u8[524288]{0}', space=vmem, size = 0x80000, scoped, tag = 'output window, operand 0']
    #allocation3 [shape = 's32[2]{0}', space=sflag, size = 0x8, scoped, tag = 'scoped memory for tpu_custom_call.1']
    %15 = vsyncpa [#allocation3], 0
    %s16 = scalar_lea.sflag [#allocation3], 1
    %17 = vsyncpa %s16, 0
    loop: start=0, step=1, limit=4
    $region2: #{tpu_custom_call.1} parent=1 // loop_pre_header
      _
    $region3: #{tpu_custom_call.1} parent=1 // loop_header
      %s19 = sphi 0, %s23
      %p20 = scmp.ge.s32.totalorder %s19, 4
      %s29 = sphi 0, %s31
      %s32 = sphi 0, %s29
      %s33 = sphi 0, %s32
      %s49 = sphi 0, %s33
      %s55 = sphi 0, %s57
      %s58 = sphi 0, %s55
      %s59 = sphi 0, %s58
      %s75 = sphi 0, %s59
      %s79 = sphi 0, %s79
      %s81 = sphi 0, %s79
      %s82 = sphi 0, %s81
      %s96 = sphi 0, %s82
      %s100 = sphi 0, %s100
      %s102 = sphi 0, %s100
      %s103 = sphi 0, %s102
      %s117 = sphi 0, %s103
      %s121 = sphi 0, %s121
      %s123 = sphi 0, %s121
      %s124 = sphi 0, %s123
      %s138 = sphi 0, %s124
      %s142 = sphi 0, %s142
      %s144 = sphi 0, %s142
      %s145 = sphi 0, %s144
      %s159 = sphi 0, %s145
      %s163 = sphi 0, %s163
      %s165 = sphi 0, %s163
      %s166 = sphi 0, %s165
      %s180 = sphi 0, %s166
      %s184 = sphi 0, %s184
      %s186 = sphi 0, %s184
      %s187 = sphi 0, %s186
      %s201 = sphi 0, %s187
      %s205 = sphi 0, %s205
      %s207 = sphi 0, %s205
      %s208 = sphi 0, %s207
      %s222 = sphi 0, %s208
      %s226 = sphi 0, %s226
      %s228 = sphi 0, %s226
      %s229 = sphi 0, %s228
      %s243 = sphi 0, %s229
      %s249 = sphi 0, %s251
      %s252 = sphi 0, %s249
      %s253 = sphi 0, %s252
      %s269 = sphi 0, %s253
    $region4: #{tpu_custom_call.1} parent=1 // loop_header_branch
      %22 = sbr.rel (%p20) target = $region8
    $region5: #{tpu_custom_call.1} parent=1 // loop_body
      %s24 = ssub.s32 %s19, 1
      %s25 = ssub.s32 %s19, 2
      %s26 = sadd.s32 %s19, 1
      %s27 = ssub.s32 %s19, %s26
      %p28 = scmp.eq.s32.totalorder %s27, 0
      %s30 = sadd.s32 %s29, 1
      %s31 = scalar_select %p28, %s29, %s30
      %p34 = pneg %p28
      %p35 = scmp.eq.s32.totalorder %s19, 1
      %p36 = por %p34, %p35
      %p37 = scmp.ne.s32.totalorder %s29, %s32
      %p38 = scmp.eq.s32.totalorder %s19, 0
      %p39 = por %p37, %p38
      %p40 = scmp.ne.s32.totalorder %s29, %s32
      %p41 = scmp.eq.s32.totalorder %s24, 1
      %p42 = por %p40, %p41
      %p43 = scmp.ne.s32.totalorder %s32, %s33
      %p44 = scmp.eq.s32.totalorder %s24, 0
      %p45 = por %p43, %p44
      %p46 = scmp.ne.s32.totalorder %s32, %s33
      %p47 = scmp.eq.s32.totalorder %s25, 1
      %p48 = por %p46, %p47
      %p50 = scmp.ne.s32.totalorder %s33, %s49
      %p51 = scmp.eq.s32.totalorder %s25, 0
      %p52 = por %p50, %p51
      %s53 = ssub.s32 %s19, %s26
      %p54 = scmp.eq.s32.totalorder %s53, 0
      %s56 = sadd.s32 %s55, 1
      %s57 = scalar_select %p54, %s55, %s56
      %p60 = pneg %p54
      %p61 = scmp.eq.s32.totalorder %s19, 1
      %p62 = por %p60, %p61
      %p63 = scmp.ne.s32.totalorder %s55, %s58
      %p64 = scmp.eq.s32.totalorder %s19, 0
      %p65 = por %p63, %p64
      %p66 = scmp.ne.s32.totalorder %s55, %s58
      %p67 = scmp.eq.s32.totalorder %s24, 1
      %p68 = por %p66, %p67
      %p69 = scmp.ne.s32.totalorder %s58, %s59
      %p70 = scmp.eq.s32.totalorder %s24, 0
      %p71 = por %p69, %p70
      %p72 = scmp.ne.s32.totalorder %s58, %s59
      %p73 = scmp.eq.s32.totalorder %s25, 1
      %p74 = por %p72, %p73
      %p76 = scmp.ne.s32.totalorder %s59, %s75
      %p77 = scmp.eq.s32.totalorder %s25, 0
      %p78 = por %p76, %p77
      %s80 = sadd.s32 %s79, 1
      %p83 = scmp.eq.s32.totalorder %s19, 1
      %p84 = scmp.ne.s32.totalorder %s79, %s81
      %p85 = scmp.eq.s32.totalorder %s19, 0
      %p86 = por %p84, %p85
      %p87 = scmp.ne.s32.totalorder %s79, %s81
      %p88 = scmp.eq.s32.totalorder %s24, 1
      %p89 = por %p87, %p88
      %p90 = scmp.ne.s32.totalorder %s81, %s82
      %p91 = scmp.eq.s32.totalorder %s24, 0
      %p92 = por %p90, %p91
      %p93 = scmp.ne.s32.totalorder %s81, %s82
      %p94 = scmp.eq.s32.totalorder %s25, 1
      %p95 = por %p93, %p94
      %p97 = scmp.ne.s32.totalorder %s82, %s96
      %p98 = scmp.eq.s32.totalorder %s25, 0
      %p99 = por %p97, %p98
      %s101 = sadd.s32 %s100, 1
      %p104 = scmp.eq.s32.totalorder %s19, 1
      %p105 = scmp.ne.s32.totalorder %s100, %s102
      %p106 = scmp.eq.s32.totalorder %s19, 0
      %p107 = por %p105, %p106
      %p108 = scmp.ne.s32.totalorder %s100, %s102
      %p109 = scmp.eq.s32.totalorder %s24, 1
      %p110 = por %p108, %p109
      %p111 = scmp.ne.s32.totalorder %s102, %s103
      %p112 = scmp.eq.s32.totalorder %s24, 0
      %p113 = por %p111, %p112
      %p114 = scmp.ne.s32.totalorder %s102, %s103
      %p115 = scmp.eq.s32.totalorder %s25, 1
      %p116 = por %p114, %p115
      %p118 = scmp.ne.s32.totalorder %s103, %s117
      %p119 = scmp.eq.s32.totalorder %s25, 0
      %p120 = por %p118, %p119
      %s122 = sadd.s32 %s121, 1
      %p125 = scmp.eq.s32.totalorder %s19, 1
      %p126 = scmp.ne.s32.totalorder %s121, %s123
      %p127 = scmp.eq.s32.totalorder %s19, 0
      %p128 = por %p126, %p127
      %p129 = scmp.ne.s32.totalorder %s121, %s123
      %p130 = scmp.eq.s32.totalorder %s24, 1
      %p131 = por %p129, %p130
      %p132 = scmp.ne.s32.totalorder %s123, %s124
      %p133 = scmp.eq.s32.totalorder %s24, 0
      %p134 = por %p132, %p133
      %p135 = scmp.ne.s32.totalorder %s123, %s124
      %p136 = scmp.eq.s32.totalorder %s25, 1
      %p137 = por %p135, %p136
      %p139 = scmp.ne.s32.totalorder %s124, %s138
      %p140 = scmp.eq.s32.totalorder %s25, 0
      %p141 = por %p139, %p140
      %s143 = sadd.s32 %s142, 1
      %p146 = scmp.eq.s32.totalorder %s19, 1
      %p147 = scmp.ne.s32.totalorder %s142, %s144
      %p148 = scmp.eq.s32.totalorder %s19, 0
      %p149 = por %p147, %p148
      %p150 = scmp.ne.s32.totalorder %s142, %s144
      %p151 = scmp.eq.s32.totalorder %s24, 1
      %p152 = por %p150, %p151
      %p153 = scmp.ne.s32.totalorder %s144, %s145
      %p154 = scmp.eq.s32.totalorder %s24, 0
      %p155 = por %p153, %p154
      %p156 = scmp.ne.s32.totalorder %s144, %s145
      %p157 = scmp.eq.s32.totalorder %s25, 1
      %p158 = por %p156, %p157
      %p160 = scmp.ne.s32.totalorder %s145, %s159
      %p161 = scmp.eq.s32.totalorder %s25, 0
      %p162 = por %p160, %p161
      %s164 = sadd.s32 %s163, 1
      %p167 = scmp.eq.s32.totalorder %s19, 1
      %p168 = scmp.ne.s32.totalorder %s163, %s165
      %p169 = scmp.eq.s32.totalorder %s19, 0
      %p170 = por %p168, %p169
      %p171 = scmp.ne.s32.totalorder %s163, %s165
      %p172 = scmp.eq.s32.totalorder %s24, 1
      %p173 = por %p171, %p172
      %p174 = scmp.ne.s32.totalorder %s165, %s166
      %p175 = scmp.eq.s32.totalorder %s24, 0
      %p176 = por %p174, %p175
      %p177 = scmp.ne.s32.totalorder %s165, %s166
      %p178 = scmp.eq.s32.totalorder %s25, 1
      %p179 = por %p177, %p178
      %p181 = scmp.ne.s32.totalorder %s166, %s180
      %p182 = scmp.eq.s32.totalorder %s25, 0
      %p183 = por %p181, %p182
      %s185 = sadd.s32 %s184, 1
      %p188 = scmp.eq.s32.totalorder %s19, 1
      %p189 = scmp.ne.s32.totalorder %s184, %s186
      %p190 = scmp.eq.s32.totalorder %s19, 0
      %p191 = por %p189, %p190
      %p192 = scmp.ne.s32.totalorder %s184, %s186
      %p193 = scmp.eq.s32.totalorder %s24, 1
      %p194 = por %p192, %p193
      %p195 = scmp.ne.s32.totalorder %s186, %s187
      %p196 = scmp.eq.s32.totalorder %s24, 0
      %p197 = por %p195, %p196
      %p198 = scmp.ne.s32.totalorder %s186, %s187
      %p199 = scmp.eq.s32.totalorder %s25, 1
      %p200 = por %p198, %p199
      %p202 = scmp.ne.s32.totalorder %s187, %s201
      %p203 = scmp.eq.s32.totalorder %s25, 0
      %p204 = por %p202, %p203
      %s206 = sadd.s32 %s205, 1
      %p209 = scmp.eq.s32.totalorder %s19, 1
      %p210 = scmp.ne.s32.totalorder %s205, %s207
      %p211 = scmp.eq.s32.totalorder %s19, 0
      %p212 = por %p210, %p211
      %p213 = scmp.ne.s32.totalorder %s205, %s207
      %p214 = scmp.eq.s32.totalorder %s24, 1
      %p215 = por %p213, %p214
      %p216 = scmp.ne.s32.totalorder %s207, %s208
      %p217 = scmp.eq.s32.totalorder %s24, 0
      %p218 = por %p216, %p217
      %p219 = scmp.ne.s32.totalorder %s207, %s208
      %p220 = scmp.eq.s32.totalorder %s25, 1
      %p221 = por %p219, %p220
      %p223 = scmp.ne.s32.totalorder %s208, %s222
      %p224 = scmp.eq.s32.totalorder %s25, 0
      %p225 = por %p223, %p224
      %s227 = sadd.s32 %s226, 1
      %p230 = scmp.eq.s32.totalorder %s19, 1
      %p231 = scmp.ne.s32.totalorder %s226, %s228
      %p232 = scmp.eq.s32.totalorder %s19, 0
      %p233 = por %p231, %p232
      %p234 = scmp.ne.s32.totalorder %s226, %s228
      %p235 = scmp.eq.s32.totalorder %s24, 1
      %p236 = por %p234, %p235
      %p237 = scmp.ne.s32.totalorder %s228, %s229
      %p238 = scmp.eq.s32.totalorder %s24, 0
      %p239 = por %p237, %p238
      %p240 = scmp.ne.s32.totalorder %s228, %s229
      %p241 = scmp.eq.s32.totalorder %s25, 1
      %p242 = por %p240, %p241
      %p244 = scmp.ne.s32.totalorder %s229, %s243
      %p245 = scmp.eq.s32.totalorder %s25, 0
      %p246 = por %p244, %p245
      %s247 = ssub.s32 %s19, %s26
      %p248 = scmp.eq.s32.totalorder %s247, 0
      %s250 = sadd.s32 %s249, 1
      %s251 = scalar_select %p248, %s249, %s250
      %p254 = pneg %p248
      %p255 = scmp.eq.s32.totalorder %s19, 1
      %p256 = por %p254, %p255
      %p257 = scmp.ne.s32.totalorder %s249, %s252
      %p258 = scmp.eq.s32.totalorder %s19, 0
      %p259 = por %p257, %p258
      %p260 = scmp.ne.s32.totalorder %s249, %s252
      %p261 = scmp.eq.s32.totalorder %s24, 1
      %p262 = por %p260, %p261
      %p263 = scmp.ne.s32.totalorder %s252, %s253
      %p264 = scmp.eq.s32.totalorder %s24, 0
      %p265 = por %p263, %p264
      %p266 = scmp.ne.s32.totalorder %s252, %s253
      %p267 = scmp.eq.s32.totalorder %s25, 1
      %p268 = por %p266, %p267
      %p270 = scmp.ne.s32.totalorder %s253, %s269
      %p271 = scmp.eq.s32.totalorder %s25, 0
      %p272 = por %p270, %p271
      %p273 = scmp.le.s32.totalorder 1, %s19
      %p274 = scmp.lt.s32.totalorder %s19, 3
      %p275 = pnand %p273, %p274
      %p276 = pneg %p275
      // Predicated region
      $region9: #{tpu_custom_call.1} parent=5 // pred_check
        _
      $region10: #{tpu_custom_call.1} parent=5 // pred_check_branch
        %278 = sbr.rel (%p275) target = $region12
      $region11: #{tpu_custom_call.1} parent=5 // pred_region
        %s279 = ssub.s32 %s19, 1
        // Predicated region
        $region13: #{tpu_custom_call.1} parent=11 // pred_check
          %p280 = pneg %p92
        $region14: #{tpu_custom_call.1} parent=11 // pred_check_branch
          %282 = sbr.rel (%p280) target = $region16
        $region15: #{tpu_custom_call.1} parent=11 // pred_region
          _
        $region16: #{tpu_custom_call.1} parent=11 // pred_fallthru
          _
        // Predicated region
        $region17: #{tpu_custom_call.1} parent=11 // pred_check
          %p283 = pneg %p113
        $region18: #{tpu_custom_call.1} parent=11 // pred_check_branch
          %285 = sbr.rel (%p283) target = $region20
        $region19: #{tpu_custom_call.1} parent=11 // pred_region
          _
        $region20: #{tpu_custom_call.1} parent=11 // pred_fallthru
          _
        // Predicated region
        $region21: #{tpu_custom_call.1} parent=11 // pred_check
          %p286 = pneg %p134
        $region22: #{tpu_custom_call.1} parent=11 // pred_check_branch
          %288 = sbr.rel (%p286) target = $region24
        $region23: #{tpu_custom_call.1} parent=11 // pred_region
          _
        $region24: #{tpu_custom_call.1} parent=11 // pred_fallthru
          _
        // Predicated region
        $region25: #{tpu_custom_call.1} parent=11 // pred_check
          %p289 = pneg %p155
        $region26: #{tpu_custom_call.1} parent=11 // pred_check_branch
          %291 = sbr.rel (%p289) target = $region28
        $region27: #{tpu_custom_call.1} parent=11 // pred_region
          _
        $region28: #{tpu_custom_call.1} parent=11 // pred_fallthru
          _
        // Predicated region
        $region29: #{tpu_custom_call.1} parent=11 // pred_check
          %p292 = pneg %p176
        $region30: #{tpu_custom_call.1} parent=11 // pred_check_branch
          %294 = sbr.rel (%p292) target = $region32
        $region31: #{tpu_custom_call.1} parent=11 // pred_region
          _
        $region32: #{tpu_custom_call.1} parent=11 // pred_fallthru
          _
        // Predicated region
        $region33: #{tpu_custom_call.1} parent=11 // pred_check
          %p295 = pneg %p197
        $region34: #{tpu_custom_call.1} parent=11 // pred_check_branch
          %297 = sbr.rel (%p295) target = $region36
        $region35: #{tpu_custom_call.1} parent=11 // pred_region
          _
        $region36: #{tpu_custom_call.1} parent=11 // pred_fallthru
          _
        // Predicated region
        $region37: #{tpu_custom_call.1} parent=11 // pred_check
          %p298 = pneg %p218
        $region38: #{tpu_custom_call.1} parent=11 // pred_check_branch
          %300 = sbr.rel (%p298) target = $region40
        $region39: #{tpu_custom_call.1} parent=11 // pred_region
          _
        $region40: #{tpu_custom_call.1} parent=11 // pred_fallthru
          _
        // Predicated region
        $region41: #{tpu_custom_call.1} parent=11 // pred_check
          %p301 = pneg %p239
        $region42: #{tpu_custom_call.1} parent=11 // pred_check_branch
          %303 = sbr.rel (%p301) target = $region44
        $region43: #{tpu_custom_call.1} parent=11 // pred_region
          _
        $region44: #{tpu_custom_call.1} parent=11 // pred_fallthru
          _
      $region12: #{tpu_custom_call.1} parent=5 // pred_fallthru
        _
      %p304 = scmp.lt.s32.totalorder %s19, 2
      // Predicated region
      $region45: #{tpu_custom_call.1} parent=5 // pred_check
        %p305 = pneg %p304
      $region46: #{tpu_custom_call.1} parent=5 // pred_check_branch
        %307 = sbr.rel (%p305) target = $region48
      $region47: #{tpu_custom_call.1} parent=5 // pred_region
        // Predicated region
        $region49: #{tpu_custom_call.1} parent=47 // pred_check
          %p308 = pneg %p39
        $region50: #{tpu_custom_call.1} parent=47 // pred_check_branch
          %310 = sbr.rel (%p308) target = $region52
        $region51: #{tpu_custom_call.1} parent=47 // pred_region
          %s311 = smul.u32 64, %s19
          %p312 = scmp.lt.s32.totalorder %s311, 127
          %s313 = scalar_select %p312, %s311, 127
          %s314 = smul.addr %s313, 8
          %s315 = scalar_lea.vmem %s0, %s314
          %s316 = smul.u32 64, %s19
        $region52: #{tpu_custom_call.1} parent=47 // pred_fallthru
          _
        // Predicated region
        $region53: #{tpu_custom_call.1} parent=47 // pred_check
          %p317 = pneg %p65
        $region54: #{tpu_custom_call.1} parent=47 // pred_check_branch
          %319 = sbr.rel (%p317) target = $region56
        $region55: #{tpu_custom_call.1} parent=47 // pred_region
          %s320 = smul.u32 64, %s19
          %p321 = scmp.lt.s32.totalorder %s320, 127
          %s322 = scalar_select %p321, %s320, 127
          %s323 = smul.addr %s322, 8
          %s324 = scalar_lea.vmem %s1, %s323
          %s325 = smul.u32 64, %s19
        $region56: #{tpu_custom_call.1} parent=47 // pred_fallthru
          _
      $region48: #{tpu_custom_call.1} parent=5 // pred_fallthru
        _
      %p326 = scmp.le.s32.totalorder 1, %s19
      %p327 = scmp.lt.s32.totalorder %s19, 3
      %p328 = pnand %p326, %p327
      %p329 = pneg %p328
      // Predicated region
      $region57: #{tpu_custom_call.1} parent=5 // pred_check
        _
      $region58: #{tpu_custom_call.1} parent=5 // pred_check_branch
        %331 = sbr.rel (%p328) target = $region60
      $region59: #{tpu_custom_call.1} parent=5 // pred_region
        %s332 = ssub.s32 %s19, 1
        %s333 = smul.u32 64, %s24
        %p334 = scmp.lt.s32.totalorder %s333, 127
        %s335 = scalar_select %p334, %s333, 127
        %s336 = smul.addr %s335, 8
        %s337 = scalar_lea.vmem %s0, %s336
        %p338 = pneg %p45
        %p339 = pneg %p42
        %s340 = smul.u32 64, %s24
        %p341 = scmp.lt.s32.totalorder %s340, 127
        %s342 = scalar_select %p341, %s340, 127
        %s343 = smul.addr %s342, 8
        %s344 = scalar_lea.vmem %s1, %s343
        %p345 = pneg %p71
        %p346 = pneg %p68
        %p347 = pneg %p92
        %p348 = pneg %p89
        %p349 = pneg %p113
        %p350 = pneg %p110
        %p351 = pneg %p134
        %p352 = pneg %p131
        %p353 = pneg %p155
        %p354 = pneg %p152
        %p355 = pneg %p176
        %p356 = pneg %p173
        %p357 = pneg %p197
        %p358 = pneg %p194
        %p359 = pneg %p218
        %p360 = pneg %p215
        %p361 = pneg %p239
        %p362 = pneg %p236
        %p363 = pneg %p265
        %p364 = pneg %p262
        %s365 = sand.u32 %s252, 1
        %s366 = scalar_lea.sflag [#allocation3], %s365
        %s367 = sand.u32 %s252, 1
        %s368 = smul.addr %s367, 512
        %s369 = scalar_lea.vmem [#allocation2], %s368
        %s370 = smul.u32 64, %s24
        %p371 = scmp.lt.s32.totalorder %s370, 127
        %s372 = scalar_select %p371, %s370, 127
        %s373 = smul.addr %s372, 8
        %s374 = scalar_lea.vmem %s0, %s373
        %s375 = smul.u32 64, %s24
        %s376 = smul.u32 64, %s24
        %p377 = scmp.lt.s32.totalorder %s376, 127
        %s378 = scalar_select %p377, %s376, 127
        %s379 = smul.addr %s378, 8
        %s380 = scalar_lea.vmem %s1, %s379
        %s381 = smul.u32 64, %s24
        %s382 = smul.u32 64, %s24
        %v384 = vld [vmem:[%s374] sm:$0xff]
        %v385 = vld [vmem:[%s374 + $0x8] sm:$0xff]
        %v386 = vld [vmem:[%s374 + $0x10] sm:$0xff]
        %v387 = vld [vmem:[%s374 + $0x18] sm:$0xff]
        %v388 = vld [vmem:[%s374 + $0x20] sm:$0xff]
        %v389 = vld [vmem:[%s374 + $0x28] sm:$0xff]
        %v390 = vld [vmem:[%s374 + $0x30] sm:$0xff]
        %v391 = vld [vmem:[%s374 + $0x38] sm:$0xff]
        %v392 = vld [vmem:[%s374 + $0x40] sm:$0xff]
        %v393 = vld [vmem:[%s374 + $0x48] sm:$0xff]
        %v394 = vld [vmem:[%s374 + $0x50] sm:$0xff]
        %v395 = vld [vmem:[%s374 + $0x58] sm:$0xff]
        %v396 = vld [vmem:[%s374 + $0x60] sm:$0xff]
        %v397 = vld [vmem:[%s374 + $0x68] sm:$0xff]
        %v398 = vld [vmem:[%s374 + $0x70] sm:$0xff]
        %v399 = vld [vmem:[%s374 + $0x78] sm:$0xff]
        %v400 = vld [vmem:[%s374 + $0x80] sm:$0xff]
        %v401 = vld [vmem:[%s374 + $0x88] sm:$0xff]
        %v402 = vld [vmem:[%s374 + $0x90] sm:$0xff]
        %v403 = vld [vmem:[%s374 + $0x98] sm:$0xff]
        %v404 = vld [vmem:[%s374 + $0xa0] sm:$0xff]
        %v405 = vld [vmem:[%s374 + $0xa8] sm:$0xff]
        %v406 = vld [vmem:[%s374 + $0xb0] sm:$0xff]
        %v407 = vld [vmem:[%s374 + $0xb8] sm:$0xff]
        %v408 = vld [vmem:[%s374 + $0xc0] sm:$0xff]
        %v409 = vld [vmem:[%s374 + $0xc8] sm:$0xff]
        %v410 = vld [vmem:[%s374 + $0xd0] sm:$0xff]
        %v411 = vld [vmem:[%s374 + $0xd8] sm:$0xff]
        %v412 = vld [vmem:[%s374 + $0xe0] sm:$0xff]
        %v413 = vld [vmem:[%s374 + $0xe8] sm:$0xff]
        %v414 = vld [vmem:[%s374 + $0xf0] sm:$0xff]
        %v415 = vld [vmem:[%s374 + $0xf8] sm:$0xff]
        %v416 = vld [vmem:[%s374 + $0x100] sm:$0xff]
        %v417 = vld [vmem:[%s374 + $0x108] sm:$0xff]
        %v418 = vld [vmem:[%s374 + $0x110] sm:$0xff]
        %v419 = vld [vmem:[%s374 + $0x118] sm:$0xff]
        %v420 = vld [vmem:[%s374 + $0x120] sm:$0xff]
        %v421 = vld [vmem:[%s374 + $0x128] sm:$0xff]
        %v422 = vld [vmem:[%s374 + $0x130] sm:$0xff]
        %v423 = vld [vmem:[%s374 + $0x138] sm:$0xff]
        %v424 = vld [vmem:[%s374 + $0x140] sm:$0xff]
        %v425 = vld [vmem:[%s374 + $0x148] sm:$0xff]
        %v426 = vld [vmem:[%s374 + $0x150] sm:$0xff]
        %v427 = vld [vmem:[%s374 + $0x158] sm:$0xff]
        %v428 = vld [vmem:[%s374 + $0x160] sm:$0xff]
        %v429 = vld [vmem:[%s374 + $0x168] sm:$0xff]
        %v430 = vld [vmem:[%s374 + $0x170] sm:$0xff]
        %v431 = vld [vmem:[%s374 + $0x178] sm:$0xff]
        %v432 = vld [vmem:[%s374 + $0x180] sm:$0xff]
        %v433 = vld [vmem:[%s374 + $0x188] sm:$0xff]
        %v434 = vld [vmem:[%s374 + $0x190] sm:$0xff]
        %v435 = vld [vmem:[%s374 + $0x198] sm:$0xff]
        %v436 = vld [vmem:[%s374 + $0x1a0] sm:$0xff]
        %v437 = vld [vmem:[%s374 + $0x1a8] sm:$0xff]
        %v438 = vld [vmem:[%s374 + $0x1b0] sm:$0xff]
        %v439 = vld [vmem:[%s374 + $0x1b8] sm:$0xff]
        %v440 = vld [vmem:[%s374 + $0x1c0] sm:$0xff]
        %v441 = vld [vmem:[%s374 + $0x1c8] sm:$0xff]
        %v442 = vld [vmem:[%s374 + $0x1d0] sm:$0xff]
        %v443 = vld [vmem:[%s374 + $0x1d8] sm:$0xff]
        %v444 = vld [vmem:[%s374 + $0x1e0] sm:$0xff]
        %v445 = vld [vmem:[%s374 + $0x1e8] sm:$0xff]
        %v446 = vld [vmem:[%s374 + $0x1f0] sm:$0xff]
        %v447 = vld [vmem:[%s374 + $0x1f8] sm:$0xff]
        %v448 = vld [vmem:[%s2] sm:$0x1]
        %450 = vset.pattern.permute.xlu0 0
        %451 = vperm.xlu0 %450, %v384
        %v452 = vpop.permute.xlu0 %451
        %455 = vset.pattern.permute.xlu0 0
        %456 = vperm.xlu0 %455, %v385
        %v457 = vpop.permute.xlu0 %456
        %460 = vset.pattern.permute.xlu0 0
        %461 = vperm.xlu0 %460, %v386
        %v462 = vpop.permute.xlu0 %461
        %465 = vset.pattern.permute.xlu0 0
        %466 = vperm.xlu0 %465, %v387
        %v467 = vpop.permute.xlu0 %466
        %470 = vset.pattern.permute.xlu0 0
        %471 = vperm.xlu0 %470, %v388
        %v472 = vpop.permute.xlu0 %471
        %475 = vset.pattern.permute.xlu0 0
        %476 = vperm.xlu0 %475, %v389
        %v477 = vpop.permute.xlu0 %476
        %480 = vset.pattern.permute.xlu0 0
        %481 = vperm.xlu0 %480, %v390
        %v482 = vpop.permute.xlu0 %481
        %485 = vset.pattern.permute.xlu0 0
        %486 = vperm.xlu0 %485, %v391
        %v487 = vpop.permute.xlu0 %486
        %490 = vset.pattern.permute.xlu0 0
        %491 = vperm.xlu0 %490, %v392
        %v492 = vpop.permute.xlu0 %491
        %495 = vset.pattern.permute.xlu0 0
        %496 = vperm.xlu0 %495, %v393
        %v497 = vpop.permute.xlu0 %496
        %500 = vset.pattern.permute.xlu0 0
        %501 = vperm.xlu0 %500, %v394
        %v502 = vpop.permute.xlu0 %501
        %505 = vset.pattern.permute.xlu0 0
        %506 = vperm.xlu0 %505, %v395
        %v507 = vpop.permute.xlu0 %506
        %510 = vset.pattern.permute.xlu0 0
        %511 = vperm.xlu0 %510, %v396
        %v512 = vpop.permute.xlu0 %511
        %515 = vset.pattern.permute.xlu0 0
        %516 = vperm.xlu0 %515, %v397
        %v517 = vpop.permute.xlu0 %516
        %520 = vset.pattern.permute.xlu0 0
        %521 = vperm.xlu0 %520, %v398
        %v522 = vpop.permute.xlu0 %521
        %525 = vset.pattern.permute.xlu0 0
        %526 = vperm.xlu0 %525, %v399
        %v527 = vpop.permute.xlu0 %526
        %530 = vset.pattern.permute.xlu0 0
        %531 = vperm.xlu0 %530, %v400
        %v532 = vpop.permute.xlu0 %531
        %535 = vset.pattern.permute.xlu0 0
        %536 = vperm.xlu0 %535, %v401
        %v537 = vpop.permute.xlu0 %536
        %540 = vset.pattern.permute.xlu0 0
        %541 = vperm.xlu0 %540, %v402
        %v542 = vpop.permute.xlu0 %541
        %545 = vset.pattern.permute.xlu0 0
        %546 = vperm.xlu0 %545, %v403
        %v547 = vpop.permute.xlu0 %546
        %550 = vset.pattern.permute.xlu0 0
        %551 = vperm.xlu0 %550, %v404
        %v552 = vpop.permute.xlu0 %551
        %555 = vset.pattern.permute.xlu0 0
        %556 = vperm.xlu0 %555, %v405
        %v557 = vpop.permute.xlu0 %556
        %560 = vset.pattern.permute.xlu0 0
        %561 = vperm.xlu0 %560, %v406
        %v562 = vpop.permute.xlu0 %561
        %565 = vset.pattern.permute.xlu0 0
        %566 = vperm.xlu0 %565, %v407
        %v567 = vpop.permute.xlu0 %566
        %570 = vset.pattern.permute.xlu0 0
        %571 = vperm.xlu0 %570, %v408
        %v572 = vpop.permute.xlu0 %571
        %575 = vset.pattern.permute.xlu0 0
        %576 = vperm.xlu0 %575, %v409
        %v577 = vpop.permute.xlu0 %576
        %580 = vset.pattern.permute.xlu0 0
        %581 = vperm.xlu0 %580, %v410
        %v582 = vpop.permute.xlu0 %581
        %585 = vset.pattern.permute.xlu0 0
        %586 = vperm.xlu0 %585, %v411
        %v587 = vpop.permute.xlu0 %586
        %590 = vset.pattern.permute.xlu0 0
        %591 = vperm.xlu0 %590, %v412
        %v592 = vpop.permute.xlu0 %591
        %595 = vset.pattern.permute.xlu0 0
        %596 = vperm.xlu0 %595, %v413
        %v597 = vpop.permute.xlu0 %596
        %600 = vset.pattern.permute.xlu0 0
        %601 = vperm.xlu0 %600, %v414
        %v602 = vpop.permute.xlu0 %601
        %605 = vset.pattern.permute.xlu0 0
        %606 = vperm.xlu0 %605, %v415
        %v607 = vpop.permute.xlu0 %606
        %610 = vset.pattern.permute.xlu0 0
        %611 = vperm.xlu0 %610, %v416
        %v612 = vpop.permute.xlu0 %611
        %615 = vset.pattern.permute.xlu0 0
        %616 = vperm.xlu0 %615, %v417
        %v617 = vpop.permute.xlu0 %616
        %620 = vset.pattern.permute.xlu0 0
        %621 = vperm.xlu0 %620, %v418
        %v622 = vpop.permute.xlu0 %621
        %625 = vset.pattern.permute.xlu0 0
        %626 = vperm.xlu0 %625, %v419
        %v627 = vpop.permute.xlu0 %626
        %630 = vset.pattern.permute.xlu0 0
        %631 = vperm.xlu0 %630, %v420
        %v632 = vpop.permute.xlu0 %631
        %635 = vset.pattern.permute.xlu0 0
        %636 = vperm.xlu0 %635, %v421
        %v637 = vpop.permute.xlu0 %636
        %640 = vset.pattern.permute.xlu0 0
        %641 = vperm.xlu0 %640, %v422
        %v642 = vpop.permute.xlu0 %641
        %645 = vset.pattern.permute.xlu0 0
        %646 = vperm.xlu0 %645, %v423
        %v647 = vpop.permute.xlu0 %646
        %650 = vset.pattern.permute.xlu0 0
        %651 = vperm.xlu0 %650, %v424
        %v652 = vpop.permute.xlu0 %651
        %655 = vset.pattern.permute.xlu0 0
        %656 = vperm.xlu0 %655, %v425
        %v657 = vpop.permute.xlu0 %656
        %660 = vset.pattern.permute.xlu0 0
        %661 = vperm.xlu0 %660, %v426
        %v662 = vpop.permute.xlu0 %661
        %665 = vset.pattern.permute.xlu0 0
        %666 = vperm.xlu0 %665, %v427
        %v667 = vpop.permute.xlu0 %666
        %670 = vset.pattern.permute.xlu0 0
        %671 = vperm.xlu0 %670, %v428
        %v672 = vpop.permute.xlu0 %671
        %675 = vset.pattern.permute.xlu0 0
        %676 = vperm.xlu0 %675, %v429
        %v677 = vpop.permute.xlu0 %676
        %680 = vset.pattern.permute.xlu0 0
        %681 = vperm.xlu0 %680, %v430
        %v682 = vpop.permute.xlu0 %681
        %685 = vset.pattern.permute.xlu0 0
        %686 = vperm.xlu0 %685, %v431
        %v687 = vpop.permute.xlu0 %686
        %690 = vset.pattern.permute.xlu0 0
        %691 = vperm.xlu0 %690, %v432
        %v692 = vpop.permute.xlu0 %691
        %695 = vset.pattern.permute.xlu0 0
        %696 = vperm.xlu0 %695, %v433
        %v697 = vpop.permute.xlu0 %696
        %700 = vset.pattern.permute.xlu0 0
        %701 = vperm.xlu0 %700, %v434
        %v702 = vpop.permute.xlu0 %701
        %705 = vset.pattern.permute.xlu0 0
        %706 = vperm.xlu0 %705, %v435
        %v707 = vpop.permute.xlu0 %706
        %710 = vset.pattern.permute.xlu0 0
        %711 = vperm.xlu0 %710, %v436
        %v712 = vpop.permute.xlu0 %711
        %715 = vset.pattern.permute.xlu0 0
        %716 = vperm.xlu0 %715, %v437
        %v717 = vpop.permute.xlu0 %716
        %720 = vset.pattern.permute.xlu0 0
        %721 = vperm.xlu0 %720, %v438
        %v722 = vpop.permute.xlu0 %721
        %725 = vset.pattern.permute.xlu0 0
        %726 = vperm.xlu0 %725, %v439
        %v727 = vpop.permute.xlu0 %726
        %730 = vset.pattern.permute.xlu0 0
        %731 = vperm.xlu0 %730, %v440
        %v732 = vpop.permute.xlu0 %731
        %735 = vset.pattern.permute.xlu0 0
        %736 = vperm.xlu0 %735, %v441
        %v737 = vpop.permute.xlu0 %736
        %740 = vset.pattern.permute.xlu0 0
        %741 = vperm.xlu0 %740, %v442
        %v742 = vpop.permute.xlu0 %741
        %745 = vset.pattern.permute.xlu0 0
        %746 = vperm.xlu0 %745, %v443
        %v747 = vpop.permute.xlu0 %746
        %750 = vset.pattern.permute.xlu0 0
        %751 = vperm.xlu0 %750, %v444
        %v752 = vpop.permute.xlu0 %751
        %755 = vset.pattern.permute.xlu0 0
        %756 = vperm.xlu0 %755, %v445
        %v757 = vpop.permute.xlu0 %756
        %760 = vset.pattern.permute.xlu0 0
        %761 = vperm.xlu0 %760, %v446
        %v762 = vpop.permute.xlu0 %761
        %765 = vset.pattern.permute.xlu0 0
        %766 = vperm.xlu0 %765, %v447
        %v767 = vpop.permute.xlu0 %766
        %v769 = vlaneseq
        %v770 = vshrl.u32 %v769, 7
        %v771 = vsub.s32 0, %v770
        %v772 = vrot.slane %v448, %v771
        %v773 = vmul.f32 %v452, %v772
        %v774 = vmul.f32 %v457, %v772
        %v775 = vmul.f32 %v462, %v772
        %v776 = vmul.f32 %v467, %v772
        %v777 = vmul.f32 %v472, %v772
        %v778 = vmul.f32 %v477, %v772
        %v779 = vmul.f32 %v482, %v772
        %v780 = vmul.f32 %v487, %v772
        %v781 = vmul.f32 %v492, %v772
        %v782 = vmul.f32 %v497, %v772
        %v783 = vmul.f32 %v502, %v772
        %v784 = vmul.f32 %v507, %v772
        %v785 = vmul.f32 %v512, %v772
        %v786 = vmul.f32 %v517, %v772
        %v787 = vmul.f32 %v522, %v772
        %v788 = vmul.f32 %v527, %v772
        %v789 = vmul.f32 %v532, %v772
        %v790 = vmul.f32 %v537, %v772
        %v791 = vmul.f32 %v542, %v772
        %v792 = vmul.f32 %v547, %v772
        %v793 = vmul.f32 %v552, %v772
        %v794 = vmul.f32 %v557, %v772
        %v795 = vmul.f32 %v562, %v772
        %v796 = vmul.f32 %v567, %v772
        %v797 = vmul.f32 %v572, %v772
        %v798 = vmul.f32 %v577, %v772
        %v799 = vmul.f32 %v582, %v772
        %v800 = vmul.f32 %v587, %v772
        %v801 = vmul.f32 %v592, %v772
        %v802 = vmul.f32 %v597, %v772
        %v803 = vmul.f32 %v602, %v772
        %v804 = vmul.f32 %v607, %v772
        %v805 = vmul.f32 %v612, %v772
        %v806 = vmul.f32 %v617, %v772
        %v807 = vmul.f32 %v622, %v772
        %v808 = vmul.f32 %v627, %v772
        %v809 = vmul.f32 %v632, %v772
        %v810 = vmul.f32 %v637, %v772
        %v811 = vmul.f32 %v642, %v772
        %v812 = vmul.f32 %v647, %v772
        %v813 = vmul.f32 %v652, %v772
        %v814 = vmul.f32 %v657, %v772
        %v815 = vmul.f32 %v662, %v772
        %v816 = vmul.f32 %v667, %v772
        %v817 = vmul.f32 %v672, %v772
        %v818 = vmul.f32 %v677, %v772
        %v819 = vmul.f32 %v682, %v772
        %v820 = vmul.f32 %v687, %v772
        %v821 = vmul.f32 %v692, %v772
        %v822 = vmul.f32 %v697, %v772
        %v823 = vmul.f32 %v702, %v772
        %v824 = vmul.f32 %v707, %v772
        %v825 = vmul.f32 %v712, %v772
        %v826 = vmul.f32 %v717, %v772
        %v827 = vmul.f32 %v722, %v772
        %v828 = vmul.f32 %v727, %v772
        %v829 = vmul.f32 %v732, %v772
        %v830 = vmul.f32 %v737, %v772
        %v831 = vmul.f32 %v742, %v772
        %v832 = vmul.f32 %v747, %v772
        %v833 = vmul.f32 %v752, %v772
        %v834 = vmul.f32 %v757, %v772
        %v835 = vmul.f32 %v762, %v772
        %v836 = vmul.f32 %v767, %v772
        %v837 = vld [vmem:[%s2 + $0x1] sm:$0x1]
        %838 = vset.pattern.permute.xlu0 1
        %839 = vperm.xlu0 %838, %v384
        %v840 = vpop.permute.xlu0 %839
        %842 = vset.pattern.permute.xlu0 1
        %843 = vperm.xlu0 %842, %v385
        %v844 = vpop.permute.xlu0 %843
        %846 = vset.pattern.permute.xlu0 1
        %847 = vperm.xlu0 %846, %v386
        %v848 = vpop.permute.xlu0 %847
        %850 = vset.pattern.permute.xlu0 1
        %851 = vperm.xlu0 %850, %v387
        %v852 = vpop.permute.xlu0 %851
        %854 = vset.pattern.permute.xlu0 1
        %855 = vperm.xlu0 %854, %v388
        %v856 = vpop.permute.xlu0 %855
        %858 = vset.pattern.permute.xlu0 1
        %859 = vperm.xlu0 %858, %v389
        %v860 = vpop.permute.xlu0 %859
        %862 = vset.pattern.permute.xlu0 1
        %863 = vperm.xlu0 %862, %v390
        %v864 = vpop.permute.xlu0 %863
        %866 = vset.pattern.permute.xlu0 1
        %867 = vperm.xlu0 %866, %v391
        %v868 = vpop.permute.xlu0 %867
        %870 = vset.pattern.permute.xlu0 1
        %871 = vperm.xlu0 %870, %v392
        %v872 = vpop.permute.xlu0 %871
        %874 = vset.pattern.permute.xlu0 1
        %875 = vperm.xlu0 %874, %v393
        %v876 = vpop.permute.xlu0 %875
        %878 = vset.pattern.permute.xlu0 1
        %879 = vperm.xlu0 %878, %v394
        %v880 = vpop.permute.xlu0 %879
        %882 = vset.pattern.permute.xlu0 1
        %883 = vperm.xlu0 %882, %v395
        %v884 = vpop.permute.xlu0 %883
        %886 = vset.pattern.permute.xlu0 1
        %887 = vperm.xlu0 %886, %v396
        %v888 = vpop.permute.xlu0 %887
        %890 = vset.pattern.permute.xlu0 1
        %891 = vperm.xlu0 %890, %v397
        %v892 = vpop.permute.xlu0 %891
        %894 = vset.pattern.permute.xlu0 1
        %895 = vperm.xlu0 %894, %v398
        %v896 = vpop.permute.xlu0 %895
        %898 = vset.pattern.permute.xlu0 1
        %899 = vperm.xlu0 %898, %v399
        %v900 = vpop.permute.xlu0 %899
        %902 = vset.pattern.permute.xlu0 1
        %903 = vperm.xlu0 %902, %v400
        %v904 = vpop.permute.xlu0 %903
        %906 = vset.pattern.permute.xlu0 1
        %907 = vperm.xlu0 %906, %v401
        %v908 = vpop.permute.xlu0 %907
        %910 = vset.pattern.permute.xlu0 1
        %911 = vperm.xlu0 %910, %v402
        %v912 = vpop.permute.xlu0 %911
        %914 = vset.pattern.permute.xlu0 1
        %915 = vperm.xlu0 %914, %v403
        %v916 = vpop.permute.xlu0 %915
        %918 = vset.pattern.permute.xlu0 1
        %919 = vperm.xlu0 %918, %v404
        %v920 = vpop.permute.xlu0 %919
        %922 = vset.pattern.permute.xlu0 1
        %923 = vperm.xlu0 %922, %v405
        %v924 = vpop.permute.xlu0 %923
        %926 = vset.pattern.permute.xlu0 1
        %927 = vperm.xlu0 %926, %v406
        %v928 = vpop.permute.xlu0 %927
        %930 = vset.pattern.permute.xlu0 1
        %931 = vperm.xlu0 %930, %v407
        %v932 = vpop.permute.xlu0 %931
        %934 = vset.pattern.permute.xlu0 1
        %935 = vperm.xlu0 %934, %v408
        %v936 = vpop.permute.xlu0 %935
        %938 = vset.pattern.permute.xlu0 1
        %939 = vperm.xlu0 %938, %v409
        %v940 = vpop.permute.xlu0 %939
        %942 = vset.pattern.permute.xlu0 1
        %943 = vperm.xlu0 %942, %v410
        %v944 = vpop.permute.xlu0 %943
        %946 = vset.pattern.permute.xlu0 1
        %947 = vperm.xlu0 %946, %v411
        %v948 = vpop.permute.xlu0 %947
        %950 = vset.pattern.permute.xlu0 1
        %951 = vperm.xlu0 %950, %v412
        %v952 = vpop.permute.xlu0 %951
        %954 = vset.pattern.permute.xlu0 1
        %955 = vperm.xlu0 %954, %v413
        %v956 = vpop.permute.xlu0 %955
        %958 = vset.pattern.permute.xlu0 1
        %959 = vperm.xlu0 %958, %v414
        %v960 = vpop.permute.xlu0 %959
        %962 = vset.pattern.permute.xlu0 1
        %963 = vperm.xlu0 %962, %v415
        %v964 = vpop.permute.xlu0 %963
        %966 = vset.pattern.permute.xlu0 1
        %967 = vperm.xlu0 %966, %v416
        %v968 = vpop.permute.xlu0 %967
        %970 = vset.pattern.permute.xlu0 1
        %971 = vperm.xlu0 %970, %v417
        %v972 = vpop.permute.xlu0 %971
        %974 = vset.pattern.permute.xlu0 1
        %975 = vperm.xlu0 %974, %v418
        %v976 = vpop.permute.xlu0 %975
        %978 = vset.pattern.permute.xlu0 1
        %979 = vperm.xlu0 %978, %v419
        %v980 = vpop.permute.xlu0 %979
        %982 = vset.pattern.permute.xlu0 1
        %983 = vperm.xlu0 %982, %v420
        %v984 = vpop.permute.xlu0 %983
        %986 = vset.pattern.permute.xlu0 1
        %987 = vperm.xlu0 %986, %v421
        %v988 = vpop.permute.xlu0 %987
        %990 = vset.pattern.permute.xlu0 1
        %991 = vperm.xlu0 %990, %v422
        %v992 = vpop.permute.xlu0 %991
        %994 = vset.pattern.permute.xlu0 1
        %995 = vperm.xlu0 %994, %v423
        %v996 = vpop.permute.xlu0 %995
        %998 = vset.pattern.permute.xlu0 1
        %999 = vperm.xlu0 %998, %v424
        %v1000 = vpop.permute.xlu0 %999
        %1002 = vset.pattern.permute.xlu0 1
        %1003 = vperm.xlu0 %1002, %v425
        %v1004 = vpop.permute.xlu0 %1003
        %1006 = vset.pattern.permute.xlu0 1
        %1007 = vperm.xlu0 %1006, %v426
        %v1008 = vpop.permute.xlu0 %1007
        %1010 = vset.pattern.permute.xlu0 1
        %1011 = vperm.xlu0 %1010, %v427
        %v1012 = vpop.permute.xlu0 %1011
        %1014 = vset.pattern.permute.xlu0 1
        %1015 = vperm.xlu0 %1014, %v428
        %v1016 = vpop.permute.xlu0 %1015
        %1018 = vset.pattern.permute.xlu0 1
        %1019 = vperm.xlu0 %1018, %v429
        %v1020 = vpop.permute.xlu0 %1019
        %1022 = vset.pattern.permute.xlu0 1
        %1023 = vperm.xlu0 %1022, %v430
        %v1024 = vpop.permute.xlu0 %1023
        %1026 = vset.pattern.permute.xlu0 1
        %1027 = vperm.xlu0 %1026, %v431
        %v1028 = vpop.permute.xlu0 %1027
        %1030 = vset.pattern.permute.xlu0 1
        %1031 = vperm.xlu0 %1030, %v432
        %v1032 = vpop.permute.xlu0 %1031
        %1034 = vset.pattern.permute.xlu0 1
        %1035 = vperm.xlu0 %1034, %v433
        %v1036 = vpop.permute.xlu0 %1035
        %1038 = vset.pattern.permute.xlu0 1
        %1039 = vperm.xlu0 %1038, %v434
        %v1040 = vpop.permute.xlu0 %1039
        %1042 = vset.pattern.permute.xlu0 1
        %1043 = vperm.xlu0 %1042, %v435
        %v1044 = vpop.permute.xlu0 %1043
        %1046 = vset.pattern.permute.xlu0 1
        %1047 = vperm.xlu0 %1046, %v436
        %v1048 = vpop.permute.xlu0 %1047
        %1050 = vset.pattern.permute.xlu0 1
        %1051 = vperm.xlu0 %1050, %v437
        %v1052 = vpop.permute.xlu0 %1051
        %1054 = vset.pattern.permute.xlu0 1
        %1055 = vperm.xlu0 %1054, %v438
        %v1056 = vpop.permute.xlu0 %1055
        %1058 = vset.pattern.permute.xlu0 1
        %1059 = vperm.xlu0 %1058, %v439
        %v1060 = vpop.permute.xlu0 %1059
        %1062 = vset.pattern.permute.xlu0 1
        %1063 = vperm.xlu0 %1062, %v440
        %v1064 = vpop.permute.xlu0 %1063
        %1066 = vset.pattern.permute.xlu0 1
        %1067 = vperm.xlu0 %1066, %v441
        %v1068 = vpop.permute.xlu0 %1067
        %1070 = vset.pattern.permute.xlu0 1
        %1071 = vperm.xlu0 %1070, %v442
        %v1072 = vpop.permute.xlu0 %1071
        %1074 = vset.pattern.permute.xlu0 1
        %1075 = vperm.xlu0 %1074, %v443
        %v1076 = vpop.permute.xlu0 %1075
        %1078 = vset.pattern.permute.xlu0 1
        %1079 = vperm.xlu0 %1078, %v444
        %v1080 = vpop.permute.xlu0 %1079
        %1082 = vset.pattern.permute.xlu0 1
        %1083 = vperm.xlu0 %1082, %v445
        %v1084 = vpop.permute.xlu0 %1083
        %1086 = vset.pattern.permute.xlu0 1
        %1087 = vperm.xlu0 %1086, %v446
        %v1088 = vpop.permute.xlu0 %1087
        %1090 = vset.pattern.permute.xlu0 1
        %1091 = vperm.xlu0 %1090, %v447
        %v1092 = vpop.permute.xlu0 %1091
        %v1094 = vlaneseq
        %v1095 = vshrl.u32 %v1094, 7
        %v1096 = vsub.s32 0, %v1095
        %v1097 = vrot.slane %v837, %v1096
        %v1098 = vmul.f32 %v840, %v1097
        %v1099 = vmul.f32 %v844, %v1097
        %v1100 = vmul.f32 %v848, %v1097
        %v1101 = vmul.f32 %v852, %v1097
        %v1102 = vmul.f32 %v856, %v1097
        %v1103 = vmul.f32 %v860, %v1097
        %v1104 = vmul.f32 %v864, %v1097
        %v1105 = vmul.f32 %v868, %v1097
        %v1106 = vmul.f32 %v872, %v1097
        %v1107 = vmul.f32 %v876, %v1097
        %v1108 = vmul.f32 %v880, %v1097
        %v1109 = vmul.f32 %v884, %v1097
        %v1110 = vmul.f32 %v888, %v1097
        %v1111 = vmul.f32 %v892, %v1097
        %v1112 = vmul.f32 %v896, %v1097
        %v1113 = vmul.f32 %v900, %v1097
        %v1114 = vmul.f32 %v904, %v1097
        %v1115 = vmul.f32 %v908, %v1097
        %v1116 = vmul.f32 %v912, %v1097
        %v1117 = vmul.f32 %v916, %v1097
        %v1118 = vmul.f32 %v920, %v1097
        %v1119 = vmul.f32 %v924, %v1097
        %v1120 = vmul.f32 %v928, %v1097
        %v1121 = vmul.f32 %v932, %v1097
        %v1122 = vmul.f32 %v936, %v1097
        %v1123 = vmul.f32 %v940, %v1097
        %v1124 = vmul.f32 %v944, %v1097
        %v1125 = vmul.f32 %v948, %v1097
        %v1126 = vmul.f32 %v952, %v1097
        %v1127 = vmul.f32 %v956, %v1097
        %v1128 = vmul.f32 %v960, %v1097
        %v1129 = vmul.f32 %v964, %v1097
        %v1130 = vmul.f32 %v968, %v1097
        %v1131 = vmul.f32 %v972, %v1097
        %v1132 = vmul.f32 %v976, %v1097
        %v1133 = vmul.f32 %v980, %v1097
        %v1134 = vmul.f32 %v984, %v1097
        %v1135 = vmul.f32 %v988, %v1097
        %v1136 = vmul.f32 %v992, %v1097
        %v1137 = vmul.f32 %v996, %v1097
        %v1138 = vmul.f32 %v1000, %v1097
        %v1139 = vmul.f32 %v1004, %v1097
        %v1140 = vmul.f32 %v1008, %v1097
        %v1141 = vmul.f32 %v1012, %v1097
        %v1142 = vmul.f32 %v1016, %v1097
        %v1143 = vmul.f32 %v1020, %v1097
        %v1144 = vmul.f32 %v1024, %v1097
        %v1145 = vmul.f32 %v1028, %v1097
        %v1146 = vmul.f32 %v1032, %v1097
        %v1147 = vmul.f32 %v1036, %v1097
        %v1148 = vmul.f32 %v1040, %v1097
        %v1149 = vmul.f32 %v1044, %v1097
        %v1150 = vmul.f32 %v1048, %v1097
        %v1151 = vmul.f32 %v1052, %v1097
        %v1152 = vmul.f32 %v1056, %v1097
        %v1153 = vmul.f32 %v1060, %v1097
        %v1154 = vmul.f32 %v1064, %v1097
        %v1155 = vmul.f32 %v1068, %v1097
        %v1156 = vmul.f32 %v1072, %v1097
        %v1157 = vmul.f32 %v1076, %v1097
        %v1158 = vmul.f32 %v1080, %v1097
        %v1159 = vmul.f32 %v1084, %v1097
        %v1160 = vmul.f32 %v1088, %v1097
        %v1161 = vmul.f32 %v1092, %v1097
        %v1162 = vadd.f32 %v773, %v1098
        %v1163 = vadd.f32 %v774, %v1099
        %v1164 = vadd.f32 %v775, %v1100
        %v1165 = vadd.f32 %v776, %v1101
        %v1166 = vadd.f32 %v777, %v1102
        %v1167 = vadd.f32 %v778, %v1103
        %v1168 = vadd.f32 %v779, %v1104
        %v1169 = vadd.f32 %v780, %v1105
        %v1170 = vadd.f32 %v781, %v1106
        %v1171 = vadd.f32 %v782, %v1107
        %v1172 = vadd.f32 %v783, %v1108
        %v1173 = vadd.f32 %v784, %v1109
        %v1174 = vadd.f32 %v785, %v1110
        %v1175 = vadd.f32 %v786, %v1111
        %v1176 = vadd.f32 %v787, %v1112
        %v1177 = vadd.f32 %v788, %v1113
        %v1178 = vadd.f32 %v789, %v1114
        %v1179 = vadd.f32 %v790, %v1115
        %v1180 = vadd.f32 %v791, %v1116
        %v1181 = vadd.f32 %v792, %v1117
        %v1182 = vadd.f32 %v793, %v1118
        %v1183 = vadd.f32 %v794, %v1119
        %v1184 = vadd.f32 %v795, %v1120
        %v1185 = vadd.f32 %v796, %v1121
        %v1186 = vadd.f32 %v797, %v1122
        %v1187 = vadd.f32 %v798, %v1123
        %v1188 = vadd.f32 %v799, %v1124
        %v1189 = vadd.f32 %v800, %v1125
        %v1190 = vadd.f32 %v801, %v1126
        %v1191 = vadd.f32 %v802, %v1127
        %v1192 = vadd.f32 %v803, %v1128
        %v1193 = vadd.f32 %v804, %v1129
        %v1194 = vadd.f32 %v805, %v1130
        %v1195 = vadd.f32 %v806, %v1131
        %v1196 = vadd.f32 %v807, %v1132
        %v1197 = vadd.f32 %v808, %v1133
        %v1198 = vadd.f32 %v809, %v1134
        %v1199 = vadd.f32 %v810, %v1135
        %v1200 = vadd.f32 %v811, %v1136
        %v1201 = vadd.f32 %v812, %v1137
        %v1202 = vadd.f32 %v813, %v1138
        %v1203 = vadd.f32 %v814, %v1139
        %v1204 = vadd.f32 %v815, %v1140
        %v1205 = vadd.f32 %v816, %v1141
        %v1206 = vadd.f32 %v817, %v1142
        %v1207 = vadd.f32 %v818, %v1143
        %v1208 = vadd.f32 %v819, %v1144
        %v1209 = vadd.f32 %v820, %v1145
        %v1210 = vadd.f32 %v821, %v1146
        %v1211 = vadd.f32 %v822, %v1147
        %v1212 = vadd.f32 %v823, %v1148
        %v1213 = vadd.f32 %v824, %v1149
        %v1214 = vadd.f32 %v825, %v1150
        %v1215 = vadd.f32 %v826, %v1151
        %v1216 = vadd.f32 %v827, %v1152
        %v1217 = vadd.f32 %v828, %v1153
        %v1218 = vadd.f32 %v829, %v1154
        %v1219 = vadd.f32 %v830, %v1155
        %v1220 = vadd.f32 %v831, %v1156
        %v1221 = vadd.f32 %v832, %v1157
        %v1222 = vadd.f32 %v833, %v1158
        %v1223 = vadd.f32 %v834, %v1159
        %v1224 = vadd.f32 %v835, %v1160
        %v1225 = vadd.f32 %v836, %v1161
        %v1226 = vld [vmem:[%s2 + $0x2] sm:$0x1]
        %1227 = vset.pattern.permute.xlu0 2
        %1228 = vperm.xlu0 %1227, %v384
        %v1229 = vpop.permute.xlu0 %1228
        %1231 = vset.pattern.permute.xlu0 2
        %1232 = vperm.xlu0 %1231, %v385
        %v1233 = vpop.permute.xlu0 %1232
        %1235 = vset.pattern.permute.xlu0 2
        %1236 = vperm.xlu0 %1235, %v386
        %v1237 = vpop.permute.xlu0 %1236
        %1239 = vset.pattern.permute.xlu0 2
        %1240 = vperm.xlu0 %1239, %v387
        %v1241 = vpop.permute.xlu0 %1240
        %1243 = vset.pattern.permute.xlu0 2
        %1244 = vperm.xlu0 %1243, %v388
        %v1245 = vpop.permute.xlu0 %1244
        %1247 = vset.pattern.permute.xlu0 2
        %1248 = vperm.xlu0 %1247, %v389
        %v1249 = vpop.permute.xlu0 %1248
        %1251 = vset.pattern.permute.xlu0 2
        %1252 = vperm.xlu0 %1251, %v390
        %v1253 = vpop.permute.xlu0 %1252
        %1255 = vset.pattern.permute.xlu0 2
        %1256 = vperm.xlu0 %1255, %v391
        %v1257 = vpop.permute.xlu0 %1256
        %1259 = vset.pattern.permute.xlu0 2
        %1260 = vperm.xlu0 %1259, %v392
        %v1261 = vpop.permute.xlu0 %1260
        %1263 = vset.pattern.permute.xlu0 2
        %1264 = vperm.xlu0 %1263, %v393
        %v1265 = vpop.permute.xlu0 %1264
        %1267 = vset.pattern.permute.xlu0 2
        %1268 = vperm.xlu0 %1267, %v394
        %v1269 = vpop.permute.xlu0 %1268
        %1271 = vset.pattern.permute.xlu0 2
        %1272 = vperm.xlu0 %1271, %v395
        %v1273 = vpop.permute.xlu0 %1272
        %1275 = vset.pattern.permute.xlu0 2
        %1276 = vperm.xlu0 %1275, %v396
        %v1277 = vpop.permute.xlu0 %1276
        %1279 = vset.pattern.permute.xlu0 2
        %1280 = vperm.xlu0 %1279, %v397
        %v1281 = vpop.permute.xlu0 %1280
        %1283 = vset.pattern.permute.xlu0 2
        %1284 = vperm.xlu0 %1283, %v398
        %v1285 = vpop.permute.xlu0 %1284
        %1287 = vset.pattern.permute.xlu0 2
        %1288 = vperm.xlu0 %1287, %v399
        %v1289 = vpop.permute.xlu0 %1288
        %1291 = vset.pattern.permute.xlu0 2
        %1292 = vperm.xlu0 %1291, %v400
        %v1293 = vpop.permute.xlu0 %1292
        %1295 = vset.pattern.permute.xlu0 2
        %1296 = vperm.xlu0 %1295, %v401
        %v1297 = vpop.permute.xlu0 %1296
        %1299 = vset.pattern.permute.xlu0 2
        %1300 = vperm.xlu0 %1299, %v402
        %v1301 = vpop.permute.xlu0 %1300
        %1303 = vset.pattern.permute.xlu0 2
        %1304 = vperm.xlu0 %1303, %v403
        %v1305 = vpop.permute.xlu0 %1304
        %1307 = vset.pattern.permute.xlu0 2
        %1308 = vperm.xlu0 %1307, %v404
        %v1309 = vpop.permute.xlu0 %1308
        %1311 = vset.pattern.permute.xlu0 2
        %1312 = vperm.xlu0 %1311, %v405
        %v1313 = vpop.permute.xlu0 %1312
        %1315 = vset.pattern.permute.xlu0 2
        %1316 = vperm.xlu0 %1315, %v406
        %v1317 = vpop.permute.xlu0 %1316
        %1319 = vset.pattern.permute.xlu0 2
        %1320 = vperm.xlu0 %1319, %v407
        %v1321 = vpop.permute.xlu0 %1320
        %1323 = vset.pattern.permute.xlu0 2
        %1324 = vperm.xlu0 %1323, %v408
        %v1325 = vpop.permute.xlu0 %1324
        %1327 = vset.pattern.permute.xlu0 2
        %1328 = vperm.xlu0 %1327, %v409
        %v1329 = vpop.permute.xlu0 %1328
        %1331 = vset.pattern.permute.xlu0 2
        %1332 = vperm.xlu0 %1331, %v410
        %v1333 = vpop.permute.xlu0 %1332
        %1335 = vset.pattern.permute.xlu0 2
        %1336 = vperm.xlu0 %1335, %v411
        %v1337 = vpop.permute.xlu0 %1336
        %1339 = vset.pattern.permute.xlu0 2
        %1340 = vperm.xlu0 %1339, %v412
        %v1341 = vpop.permute.xlu0 %1340
        %1343 = vset.pattern.permute.xlu0 2
        %1344 = vperm.xlu0 %1343, %v413
        %v1345 = vpop.permute.xlu0 %1344
        %1347 = vset.pattern.permute.xlu0 2
        %1348 = vperm.xlu0 %1347, %v414
        %v1349 = vpop.permute.xlu0 %1348
        %1351 = vset.pattern.permute.xlu0 2
        %1352 = vperm.xlu0 %1351, %v415
        %v1353 = vpop.permute.xlu0 %1352
        %1355 = vset.pattern.permute.xlu0 2
        %1356 = vperm.xlu0 %1355, %v416
        %v1357 = vpop.permute.xlu0 %1356
        %1359 = vset.pattern.permute.xlu0 2
        %1360 = vperm.xlu0 %1359, %v417
        %v1361 = vpop.permute.xlu0 %1360
        %1363 = vset.pattern.permute.xlu0 2
        %1364 = vperm.xlu0 %1363, %v418
        %v1365 = vpop.permute.xlu0 %1364
        %1367 = vset.pattern.permute.xlu0 2
        %1368 = vperm.xlu0 %1367, %v419
        %v1369 = vpop.permute.xlu0 %1368
        %1371 = vset.pattern.permute.xlu0 2
        %1372 = vperm.xlu0 %1371, %v420
        %v1373 = vpop.permute.xlu0 %1372
        %1375 = vset.pattern.permute.xlu0 2
        %1376 = vperm.xlu0 %1375, %v421
        %v1377 = vpop.permute.xlu0 %1376
        %1379 = vset.pattern.permute.xlu0 2
        %1380 = vperm.xlu0 %1379, %v422
        %v1381 = vpop.permute.xlu0 %1380
        %1383 = vset.pattern.permute.xlu0 2
        %1384 = vperm.xlu0 %1383, %v423
        %v1385 = vpop.permute.xlu0 %1384
        %1387 = vset.pattern.permute.xlu0 2
        %1388 = vperm.xlu0 %1387, %v424
        %v1389 = vpop.permute.xlu0 %1388
        %1391 = vset.pattern.permute.xlu0 2
        %1392 = vperm.xlu0 %1391, %v425
        %v1393 = vpop.permute.xlu0 %1392
        %1395 = vset.pattern.permute.xlu0 2
        %1396 = vperm.xlu0 %1395, %v426
        %v1397 = vpop.permute.xlu0 %1396
        %1399 = vset.pattern.permute.xlu0 2
        %1400 = vperm.xlu0 %1399, %v427
        %v1401 = vpop.permute.xlu0 %1400
        %1403 = vset.pattern.permute.xlu0 2
        %1404 = vperm.xlu0 %1403, %v428
        %v1405 = vpop.permute.xlu0 %1404
        %1407 = vset.pattern.permute.xlu0 2
        %1408 = vperm.xlu0 %1407, %v429
        %v1409 = vpop.permute.xlu0 %1408
        %1411 = vset.pattern.permute.xlu0 2
        %1412 = vperm.xlu0 %1411, %v430
        %v1413 = vpop.permute.xlu0 %1412
        %1415 = vset.pattern.permute.xlu0 2
        %1416 = vperm.xlu0 %1415, %v431
        %v1417 = vpop.permute.xlu0 %1416
        %1419 = vset.pattern.permute.xlu0 2
        %1420 = vperm.xlu0 %1419, %v432
        %v1421 = vpop.permute.xlu0 %1420
        %1423 = vset.pattern.permute.xlu0 2
        %1424 = vperm.xlu0 %1423, %v433
        %v1425 = vpop.permute.xlu0 %1424
        %1427 = vset.pattern.permute.xlu0 2
        %1428 = vperm.xlu0 %1427, %v434
        %v1429 = vpop.permute.xlu0 %1428
        %1431 = vset.pattern.permute.xlu0 2
        %1432 = vperm.xlu0 %1431, %v435
        %v1433 = vpop.permute.xlu0 %1432
        %1435 = vset.pattern.permute.xlu0 2
        %1436 = vperm.xlu0 %1435, %v436
        %v1437 = vpop.permute.xlu0 %1436
        %1439 = vset.pattern.permute.xlu0 2
        %1440 = vperm.xlu0 %1439, %v437
        %v1441 = vpop.permute.xlu0 %1440
        %1443 = vset.pattern.permute.xlu0 2
        %1444 = vperm.xlu0 %1443, %v438
        %v1445 = vpop.permute.xlu0 %1444
        %1447 = vset.pattern.permute.xlu0 2
        %1448 = vperm.xlu0 %1447, %v439
        %v1449 = vpop.permute.xlu0 %1448
        %1451 = vset.pattern.permute.xlu0 2
        %1452 = vperm.xlu0 %1451, %v440
        %v1453 = vpop.permute.xlu0 %1452
        %1455 = vset.pattern.permute.xlu0 2
        %1456 = vperm.xlu0 %1455, %v441
        %v1457 = vpop.permute.xlu0 %1456
        %1459 = vset.pattern.permute.xlu0 2
        %1460 = vperm.xlu0 %1459, %v442
        %v1461 = vpop.permute.xlu0 %1460
        %1463 = vset.pattern.permute.xlu0 2
        %1464 = vperm.xlu0 %1463, %v443
        %v1465 = vpop.permute.xlu0 %1464
        %1467 = vset.pattern.permute.xlu0 2
        %1468 = vperm.xlu0 %1467, %v444
        %v1469 = vpop.permute.xlu0 %1468
        %1471 = vset.pattern.permute.xlu0 2
        %1472 = vperm.xlu0 %1471, %v445
        %v1473 = vpop.permute.xlu0 %1472
        %1475 = vset.pattern.permute.xlu0 2
        %1476 = vperm.xlu0 %1475, %v446
        %v1477 = vpop.permute.xlu0 %1476
        %1479 = vset.pattern.permute.xlu0 2
        %1480 = vperm.xlu0 %1479, %v447
        %v1481 = vpop.permute.xlu0 %1480
        %v1483 = vlaneseq
        %v1484 = vshrl.u32 %v1483, 7
        %v1485 = vsub.s32 0, %v1484
        %v1486 = vrot.slane %v1226, %v1485
        %v1487 = vmul.f32 %v1229, %v1486
        %v1488 = vmul.f32 %v1233, %v1486
        %v1489 = vmul.f32 %v1237, %v1486
        %v1490 = vmul.f32 %v1241, %v1486
        %v1491 = vmul.f32 %v1245, %v1486
        %v1492 = vmul.f32 %v1249, %v1486
        %v1493 = vmul.f32 %v1253, %v1486
        %v1494 = vmul.f32 %v1257, %v1486
        %v1495 = vmul.f32 %v1261, %v1486
        %v1496 = vmul.f32 %v1265, %v1486
        %v1497 = vmul.f32 %v1269, %v1486
        %v1498 = vmul.f32 %v1273, %v1486
        %v1499 = vmul.f32 %v1277, %v1486
        %v1500 = vmul.f32 %v1281, %v1486
        %v1501 = vmul.f32 %v1285, %v1486
        %v1502 = vmul.f32 %v1289, %v1486
        %v1503 = vmul.f32 %v1293, %v1486
        %v1504 = vmul.f32 %v1297, %v1486
        %v1505 = vmul.f32 %v1301, %v1486
        %v1506 = vmul.f32 %v1305, %v1486
        %v1507 = vmul.f32 %v1309, %v1486
        %v1508 = vmul.f32 %v1313, %v1486
        %v1509 = vmul.f32 %v1317, %v1486
        %v1510 = vmul.f32 %v1321, %v1486
        %v1511 = vmul.f32 %v1325, %v1486
        %v1512 = vmul.f32 %v1329, %v1486
        %v1513 = vmul.f32 %v1333, %v1486
        %v1514 = vmul.f32 %v1337, %v1486
        %v1515 = vmul.f32 %v1341, %v1486
        %v1516 = vmul.f32 %v1345, %v1486
        %v1517 = vmul.f32 %v1349, %v1486
        %v1518 = vmul.f32 %v1353, %v1486
        %v1519 = vmul.f32 %v1357, %v1486
        %v1520 = vmul.f32 %v1361, %v1486
        %v1521 = vmul.f32 %v1365, %v1486
        %v1522 = vmul.f32 %v1369, %v1486
        %v1523 = vmul.f32 %v1373, %v1486
        %v1524 = vmul.f32 %v1377, %v1486
        %v1525 = vmul.f32 %v1381, %v1486
        %v1526 = vmul.f32 %v1385, %v1486
        %v1527 = vmul.f32 %v1389, %v1486
        %v1528 = vmul.f32 %v1393, %v1486
        %v1529 = vmul.f32 %v1397, %v1486
        %v1530 = vmul.f32 %v1401, %v1486
        %v1531 = vmul.f32 %v1405, %v1486
        %v1532 = vmul.f32 %v1409, %v1486
        %v1533 = vmul.f32 %v1413, %v1486
        %v1534 = vmul.f32 %v1417, %v1486
        %v1535 = vmul.f32 %v1421, %v1486
        %v1536 = vmul.f32 %v1425, %v1486
        %v1537 = vmul.f32 %v1429, %v1486
        %v1538 = vmul.f32 %v1433, %v1486
        %v1539 = vmul.f32 %v1437, %v1486
        %v1540 = vmul.f32 %v1441, %v1486
        %v1541 = vmul.f32 %v1445, %v1486
        %v1542 = vmul.f32 %v1449, %v1486
        %v1543 = vmul.f32 %v1453, %v1486
        %v1544 = vmul.f32 %v1457, %v1486
        %v1545 = vmul.f32 %v1461, %v1486
        %v1546 = vmul.f32 %v1465, %v1486
        %v1547 = vmul.f32 %v1469, %v1486
        %v1548 = vmul.f32 %v1473, %v1486
        %v1549 = vmul.f32 %v1477, %v1486
        %v1550 = vmul.f32 %v1481, %v1486
        %v1551 = vadd.f32 %v1162, %v1487
        %v1552 = vadd.f32 %v1163, %v1488
        %v1553 = vadd.f32 %v1164, %v1489
        %v1554 = vadd.f32 %v1165, %v1490
        %v1555 = vadd.f32 %v1166, %v1491
        %v1556 = vadd.f32 %v1167, %v1492
        %v1557 = vadd.f32 %v1168, %v1493
        %v1558 = vadd.f32 %v1169, %v1494
        %v1559 = vadd.f32 %v1170, %v1495
        %v1560 = vadd.f32 %v1171, %v1496
        %v1561 = vadd.f32 %v1172, %v1497
        %v1562 = vadd.f32 %v1173, %v1498
        %v1563 = vadd.f32 %v1174, %v1499
        %v1564 = vadd.f32 %v1175, %v1500
        %v1565 = vadd.f32 %v1176, %v1501
        %v1566 = vadd.f32 %v1177, %v1502
        %v1567 = vadd.f32 %v1178, %v1503
        %v1568 = vadd.f32 %v1179, %v1504
        %v1569 = vadd.f32 %v1180, %v1505
        %v1570 = vadd.f32 %v1181, %v1506
        %v1571 = vadd.f32 %v1182, %v1507
        %v1572 = vadd.f32 %v1183, %v1508
        %v1573 = vadd.f32 %v1184, %v1509
        %v1574 = vadd.f32 %v1185, %v1510
        %v1575 = vadd.f32 %v1186, %v1511
        %v1576 = vadd.f32 %v1187, %v1512
        %v1577 = vadd.f32 %v1188, %v1513
        %v1578 = vadd.f32 %v1189, %v1514
        %v1579 = vadd.f32 %v1190, %v1515
        %v1580 = vadd.f32 %v1191, %v1516
        %v1581 = vadd.f32 %v1192, %v1517
        %v1582 = vadd.f32 %v1193, %v1518
        %v1583 = vadd.f32 %v1194, %v1519
        %v1584 = vadd.f32 %v1195, %v1520
        %v1585 = vadd.f32 %v1196, %v1521
        %v1586 = vadd.f32 %v1197, %v1522
        %v1587 = vadd.f32 %v1198, %v1523
        %v1588 = vadd.f32 %v1199, %v1524
        %v1589 = vadd.f32 %v1200, %v1525
        %v1590 = vadd.f32 %v1201, %v1526
        %v1591 = vadd.f32 %v1202, %v1527
        %v1592 = vadd.f32 %v1203, %v1528
        %v1593 = vadd.f32 %v1204, %v1529
        %v1594 = vadd.f32 %v1205, %v1530
        %v1595 = vadd.f32 %v1206, %v1531
        %v1596 = vadd.f32 %v1207, %v1532
        %v1597 = vadd.f32 %v1208, %v1533
        %v1598 = vadd.f32 %v1209, %v1534
        %v1599 = vadd.f32 %v1210, %v1535
        %v1600 = vadd.f32 %v1211, %v1536
        %v1601 = vadd.f32 %v1212, %v1537
        %v1602 = vadd.f32 %v1213, %v1538
        %v1603 = vadd.f32 %v1214, %v1539
        %v1604 = vadd.f32 %v1215, %v1540
        %v1605 = vadd.f32 %v1216, %v1541
        %v1606 = vadd.f32 %v1217, %v1542
        %v1607 = vadd.f32 %v1218, %v1543
        %v1608 = vadd.f32 %v1219, %v1544
        %v1609 = vadd.f32 %v1220, %v1545
        %v1610 = vadd.f32 %v1221, %v1546
        %v1611 = vadd.f32 %v1222, %v1547
        %v1612 = vadd.f32 %v1223, %v1548
        %v1613 = vadd.f32 %v1224, %v1549
        %v1614 = vadd.f32 %v1225, %v1550
        %v1615 = vld [vmem:[%s2 + $0x3] sm:$0x1]
        %1616 = vset.pattern.permute.xlu0 3
        %1617 = vperm.xlu0 %1616, %v384
        %v1618 = vpop.permute.xlu0 %1617
        %1620 = vset.pattern.permute.xlu0 3
        %1621 = vperm.xlu0 %1620, %v385
        %v1622 = vpop.permute.xlu0 %1621
        %1624 = vset.pattern.permute.xlu0 3
        %1625 = vperm.xlu0 %1624, %v386
        %v1626 = vpop.permute.xlu0 %1625
        %1628 = vset.pattern.permute.xlu0 3
        %1629 = vperm.xlu0 %1628, %v387
        %v1630 = vpop.permute.xlu0 %1629
        %1632 = vset.pattern.permute.xlu0 3
        %1633 = vperm.xlu0 %1632, %v388
        %v1634 = vpop.permute.xlu0 %1633
        %1636 = vset.pattern.permute.xlu0 3
        %1637 = vperm.xlu0 %1636, %v389
        %v1638 = vpop.permute.xlu0 %1637
        %1640 = vset.pattern.permute.xlu0 3
        %1641 = vperm.xlu0 %1640, %v390
        %v1642 = vpop.permute.xlu0 %1641
        %1644 = vset.pattern.permute.xlu0 3
        %1645 = vperm.xlu0 %1644, %v391
        %v1646 = vpop.permute.xlu0 %1645
        %1648 = vset.pattern.permute.xlu0 3
        %1649 = vperm.xlu0 %1648, %v392
        %v1650 = vpop.permute.xlu0 %1649
        %1652 = vset.pattern.permute.xlu0 3
        %1653 = vperm.xlu0 %1652, %v393
        %v1654 = vpop.permute.xlu0 %1653
        %1656 = vset.pattern.permute.xlu0 3
        %1657 = vperm.xlu0 %1656, %v394
        %v1658 = vpop.permute.xlu0 %1657
        %1660 = vset.pattern.permute.xlu0 3
        %1661 = vperm.xlu0 %1660, %v395
        %v1662 = vpop.permute.xlu0 %1661
        %1664 = vset.pattern.permute.xlu0 3
        %1665 = vperm.xlu0 %1664, %v396
        %v1666 = vpop.permute.xlu0 %1665
        %1668 = vset.pattern.permute.xlu0 3
        %1669 = vperm.xlu0 %1668, %v397
        %v1670 = vpop.permute.xlu0 %1669
        %1672 = vset.pattern.permute.xlu0 3
        %1673 = vperm.xlu0 %1672, %v398
        %v1674 = vpop.permute.xlu0 %1673
        %1676 = vset.pattern.permute.xlu0 3
        %1677 = vperm.xlu0 %1676, %v399
        %v1678 = vpop.permute.xlu0 %1677
        %1680 = vset.pattern.permute.xlu0 3
        %1681 = vperm.xlu0 %1680, %v400
        %v1682 = vpop.permute.xlu0 %1681
        %1684 = vset.pattern.permute.xlu0 3
        %1685 = vperm.xlu0 %1684, %v401
        %v1686 = vpop.permute.xlu0 %1685
        %1688 = vset.pattern.permute.xlu0 3
        %1689 = vperm.xlu0 %1688, %v402
        %v1690 = vpop.permute.xlu0 %1689
        %1692 = vset.pattern.permute.xlu0 3
        %1693 = vperm.xlu0 %1692, %v403
        %v1694 = vpop.permute.xlu0 %1693
        %1696 = vset.pattern.permute.xlu0 3
        %1697 = vperm.xlu0 %1696, %v404
        %v1698 = vpop.permute.xlu0 %1697
        %1700 = vset.pattern.permute.xlu0 3
        %1701 = vperm.xlu0 %1700, %v405
        %v1702 = vpop.permute.xlu0 %1701
        %1704 = vset.pattern.permute.xlu0 3
        %1705 = vperm.xlu0 %1704, %v406
        %v1706 = vpop.permute.xlu0 %1705
        %1708 = vset.pattern.permute.xlu0 3
        %1709 = vperm.xlu0 %1708, %v407
        %v1710 = vpop.permute.xlu0 %1709
        %1712 = vset.pattern.permute.xlu0 3
        %1713 = vperm.xlu0 %1712, %v408
        %v1714 = vpop.permute.xlu0 %1713
        %1716 = vset.pattern.permute.xlu0 3
        %1717 = vperm.xlu0 %1716, %v409
        %v1718 = vpop.permute.xlu0 %1717
        %1720 = vset.pattern.permute.xlu0 3
        %1721 = vperm.xlu0 %1720, %v410
        %v1722 = vpop.permute.xlu0 %1721
        %1724 = vset.pattern.permute.xlu0 3
        %1725 = vperm.xlu0 %1724, %v411
        %v1726 = vpop.permute.xlu0 %1725
        %1728 = vset.pattern.permute.xlu0 3
        %1729 = vperm.xlu0 %1728, %v412
        %v1730 = vpop.permute.xlu0 %1729
        %1732 = vset.pattern.permute.xlu0 3
        %1733 = vperm.xlu0 %1732, %v413
        %v1734 = vpop.permute.xlu0 %1733
        %1736 = vset.pattern.permute.xlu0 3
        %1737 = vperm.xlu0 %1736, %v414
        %v1738 = vpop.permute.xlu0 %1737
        %1740 = vset.pattern.permute.xlu0 3
        %1741 = vperm.xlu0 %1740, %v415
        %v1742 = vpop.permute.xlu0 %1741
        %1744 = vset.pattern.permute.xlu0 3
        %1745 = vperm.xlu0 %1744, %v416
        %v1746 = vpop.permute.xlu0 %1745
        %1748 = vset.pattern.permute.xlu0 3
        %1749 = vperm.xlu0 %1748, %v417
        %v1750 = vpop.permute.xlu0 %1749
        %1752 = vset.pattern.permute.xlu0 3
        %1753 = vperm.xlu0 %1752, %v418
        %v1754 = vpop.permute.xlu0 %1753
        %1756 = vset.pattern.permute.xlu0 3
        %1757 = vperm.xlu0 %1756, %v419
        %v1758 = vpop.permute.xlu0 %1757
        %1760 = vset.pattern.permute.xlu0 3
        %1761 = vperm.xlu0 %1760, %v420
        %v1762 = vpop.permute.xlu0 %1761
        %1764 = vset.pattern.permute.xlu0 3
        %1765 = vperm.xlu0 %1764, %v421
        %v1766 = vpop.permute.xlu0 %1765
        %1768 = vset.pattern.permute.xlu0 3
        %1769 = vperm.xlu0 %1768, %v422
        %v1770 = vpop.permute.xlu0 %1769
        %1772 = vset.pattern.permute.xlu0 3
        %1773 = vperm.xlu0 %1772, %v423
        %v1774 = vpop.permute.xlu0 %1773
        %1776 = vset.pattern.permute.xlu0 3
        %1777 = vperm.xlu0 %1776, %v424
        %v1778 = vpop.permute.xlu0 %1777
        %1780 = vset.pattern.permute.xlu0 3
        %1781 = vperm.xlu0 %1780, %v425
        %v1782 = vpop.permute.xlu0 %1781
        %1784 = vset.pattern.permute.xlu0 3
        %1785 = vperm.xlu0 %1784, %v426
        %v1786 = vpop.permute.xlu0 %1785
        %1788 = vset.pattern.permute.xlu0 3
        %1789 = vperm.xlu0 %1788, %v427
        %v1790 = vpop.permute.xlu0 %1789
        %1792 = vset.pattern.permute.xlu0 3
        %1793 = vperm.xlu0 %1792, %v428
        %v1794 = vpop.permute.xlu0 %1793
        %1796 = vset.pattern.permute.xlu0 3
        %1797 = vperm.xlu0 %1796, %v429
        %v1798 = vpop.permute.xlu0 %1797
        %1800 = vset.pattern.permute.xlu0 3
        %1801 = vperm.xlu0 %1800, %v430
        %v1802 = vpop.permute.xlu0 %1801
        %1804 = vset.pattern.permute.xlu0 3
        %1805 = vperm.xlu0 %1804, %v431
        %v1806 = vpop.permute.xlu0 %1805
        %1808 = vset.pattern.permute.xlu0 3
        %1809 = vperm.xlu0 %1808, %v432
        %v1810 = vpop.permute.xlu0 %1809
        %1812 = vset.pattern.permute.xlu0 3
        %1813 = vperm.xlu0 %1812, %v433
        %v1814 = vpop.permute.xlu0 %1813
        %1816 = vset.pattern.permute.xlu0 3
        %1817 = vperm.xlu0 %1816, %v434
        %v1818 = vpop.permute.xlu0 %1817
        %1820 = vset.pattern.permute.xlu0 3
        %1821 = vperm.xlu0 %1820, %v435
        %v1822 = vpop.permute.xlu0 %1821
        %1824 = vset.pattern.permute.xlu0 3
        %1825 = vperm.xlu0 %1824, %v436
        %v1826 = vpop.permute.xlu0 %1825
        %1828 = vset.pattern.permute.xlu0 3
        %1829 = vperm.xlu0 %1828, %v437
        %v1830 = vpop.permute.xlu0 %1829
        %1832 = vset.pattern.permute.xlu0 3
        %1833 = vperm.xlu0 %1832, %v438
        %v1834 = vpop.permute.xlu0 %1833
        %1836 = vset.pattern.permute.xlu0 3
        %1837 = vperm.xlu0 %1836, %v439
        %v1838 = vpop.permute.xlu0 %1837
        %1840 = vset.pattern.permute.xlu0 3
        %1841 = vperm.xlu0 %1840, %v440
        %v1842 = vpop.permute.xlu0 %1841
        %1844 = vset.pattern.permute.xlu0 3
        %1845 = vperm.xlu0 %1844, %v441
        %v1846 = vpop.permute.xlu0 %1845
        %1848 = vset.pattern.permute.xlu0 3
        %1849 = vperm.xlu0 %1848, %v442
        %v1850 = vpop.permute.xlu0 %1849
        %1852 = vset.pattern.permute.xlu0 3
        %1853 = vperm.xlu0 %1852, %v443
        %v1854 = vpop.permute.xlu0 %1853
        %1856 = vset.pattern.permute.xlu0 3
        %1857 = vperm.xlu0 %1856, %v444
        %v1858 = vpop.permute.xlu0 %1857
        %1860 = vset.pattern.permute.xlu0 3
        %1861 = vperm.xlu0 %1860, %v445
        %v1862 = vpop.permute.xlu0 %1861
        %1864 = vset.pattern.permute.xlu0 3
        %1865 = vperm.xlu0 %1864, %v446
        %v1866 = vpop.permute.xlu0 %1865
        %1868 = vset.pattern.permute.xlu0 3
        %1869 = vperm.xlu0 %1868, %v447
        %v1870 = vpop.permute.xlu0 %1869
        %v1872 = vlaneseq
        %v1873 = vshrl.u32 %v1872, 7
        %v1874 = vsub.s32 0, %v1873
        %v1875 = vrot.slane %v1615, %v1874
        %v1876 = vmul.f32 %v1618, %v1875
        %v1877 = vmul.f32 %v1622, %v1875
        %v1878 = vmul.f32 %v1626, %v1875
        %v1879 = vmul.f32 %v1630, %v1875
        %v1880 = vmul.f32 %v1634, %v1875
        %v1881 = vmul.f32 %v1638, %v1875
        %v1882 = vmul.f32 %v1642, %v1875
        %v1883 = vmul.f32 %v1646, %v1875
        %v1884 = vmul.f32 %v1650, %v1875
        %v1885 = vmul.f32 %v1654, %v1875
        %v1886 = vmul.f32 %v1658, %v1875
        %v1887 = vmul.f32 %v1662, %v1875
        %v1888 = vmul.f32 %v1666, %v1875
        %v1889 = vmul.f32 %v1670, %v1875
        %v1890 = vmul.f32 %v1674, %v1875
        %v1891 = vmul.f32 %v1678, %v1875
        %v1892 = vmul.f32 %v1682, %v1875
        %v1893 = vmul.f32 %v1686, %v1875
        %v1894 = vmul.f32 %v1690, %v1875
        %v1895 = vmul.f32 %v1694, %v1875
        %v1896 = vmul.f32 %v1698, %v1875
        %v1897 = vmul.f32 %v1702, %v1875
        %v1898 = vmul.f32 %v1706, %v1875
        %v1899 = vmul.f32 %v1710, %v1875
        %v1900 = vmul.f32 %v1714, %v1875
        %v1901 = vmul.f32 %v1718, %v1875
        %v1902 = vmul.f32 %v1722, %v1875
        %v1903 = vmul.f32 %v1726, %v1875
        %v1904 = vmul.f32 %v1730, %v1875
        %v1905 = vmul.f32 %v1734, %v1875
        %v1906 = vmul.f32 %v1738, %v1875
        %v1907 = vmul.f32 %v1742, %v1875
        %v1908 = vmul.f32 %v1746, %v1875
        %v1909 = vmul.f32 %v1750, %v1875
        %v1910 = vmul.f32 %v1754, %v1875
        %v1911 = vmul.f32 %v1758, %v1875
        %v1912 = vmul.f32 %v1762, %v1875
        %v1913 = vmul.f32 %v1766, %v1875
        %v1914 = vmul.f32 %v1770, %v1875
        %v1915 = vmul.f32 %v1774, %v1875
        %v1916 = vmul.f32 %v1778, %v1875
        %v1917 = vmul.f32 %v1782, %v1875
        %v1918 = vmul.f32 %v1786, %v1875
        %v1919 = vmul.f32 %v1790, %v1875
        %v1920 = vmul.f32 %v1794, %v1875
        %v1921 = vmul.f32 %v1798, %v1875
        %v1922 = vmul.f32 %v1802, %v1875
        %v1923 = vmul.f32 %v1806, %v1875
        %v1924 = vmul.f32 %v1810, %v1875
        %v1925 = vmul.f32 %v1814, %v1875
        %v1926 = vmul.f32 %v1818, %v1875
        %v1927 = vmul.f32 %v1822, %v1875
        %v1928 = vmul.f32 %v1826, %v1875
        %v1929 = vmul.f32 %v1830, %v1875
        %v1930 = vmul.f32 %v1834, %v1875
        %v1931 = vmul.f32 %v1838, %v1875
        %v1932 = vmul.f32 %v1842, %v1875
        %v1933 = vmul.f32 %v1846, %v1875
        %v1934 = vmul.f32 %v1850, %v1875
        %v1935 = vmul.f32 %v1854, %v1875
        %v1936 = vmul.f32 %v1858, %v1875
        %v1937 = vmul.f32 %v1862, %v1875
        %v1938 = vmul.f32 %v1866, %v1875
        %v1939 = vmul.f32 %v1870, %v1875
        %v1940 = vadd.f32 %v1551, %v1876
        %v1941 = vadd.f32 %v1552, %v1877
        %v1942 = vadd.f32 %v1553, %v1878
        %v1943 = vadd.f32 %v1554, %v1879
        %v1944 = vadd.f32 %v1555, %v1880
        %v1945 = vadd.f32 %v1556, %v1881
        %v1946 = vadd.f32 %v1557, %v1882
        %v1947 = vadd.f32 %v1558, %v1883
        %v1948 = vadd.f32 %v1559, %v1884
        %v1949 = vadd.f32 %v1560, %v1885
        %v1950 = vadd.f32 %v1561, %v1886
        %v1951 = vadd.f32 %v1562, %v1887
        %v1952 = vadd.f32 %v1563, %v1888
        %v1953 = vadd.f32 %v1564, %v1889
        %v1954 = vadd.f32 %v1565, %v1890
        %v1955 = vadd.f32 %v1566, %v1891
        %v1956 = vadd.f32 %v1567, %v1892
        %v1957 = vadd.f32 %v1568, %v1893
        %v1958 = vadd.f32 %v1569, %v1894
        %v1959 = vadd.f32 %v1570, %v1895
        %v1960 = vadd.f32 %v1571, %v1896
        %v1961 = vadd.f32 %v1572, %v1897
        %v1962 = vadd.f32 %v1573, %v1898
        %v1963 = vadd.f32 %v1574, %v1899
        %v1964 = vadd.f32 %v1575, %v1900
        %v1965 = vadd.f32 %v1576, %v1901
        %v1966 = vadd.f32 %v1577, %v1902
        %v1967 = vadd.f32 %v1578, %v1903
        %v1968 = vadd.f32 %v1579, %v1904
        %v1969 = vadd.f32 %v1580, %v1905
        %v1970 = vadd.f32 %v1581, %v1906
        %v1971 = vadd.f32 %v1582, %v1907
        %v1972 = vadd.f32 %v1583, %v1908
        %v1973 = vadd.f32 %v1584, %v1909
        %v1974 = vadd.f32 %v1585, %v1910
        %v1975 = vadd.f32 %v1586, %v1911
        %v1976 = vadd.f32 %v1587, %v1912
        %v1977 = vadd.f32 %v1588, %v1913
        %v1978 = vadd.f32 %v1589, %v1914
        %v1979 = vadd.f32 %v1590, %v1915
        %v1980 = vadd.f32 %v1591, %v1916
        %v1981 = vadd.f32 %v1592, %v1917
        %v1982 = vadd.f32 %v1593, %v1918
        %v1983 = vadd.f32 %v1594, %v1919
        %v1984 = vadd.f32 %v1595, %v1920
        %v1985 = vadd.f32 %v1596, %v1921
        %v1986 = vadd.f32 %v1597, %v1922
        %v1987 = vadd.f32 %v1598, %v1923
        %v1988 = vadd.f32 %v1599, %v1924
        %v1989 = vadd.f32 %v1600, %v1925
        %v1990 = vadd.f32 %v1601, %v1926
        %v1991 = vadd.f32 %v1602, %v1927
        %v1992 = vadd.f32 %v1603, %v1928
        %v1993 = vadd.f32 %v1604, %v1929
        %v1994 = vadd.f32 %v1605, %v1930
        %v1995 = vadd.f32 %v1606, %v1931
        %v1996 = vadd.f32 %v1607, %v1932
        %v1997 = vadd.f32 %v1608, %v1933
        %v1998 = vadd.f32 %v1609, %v1934
        %v1999 = vadd.f32 %v1610, %v1935
        %v2000 = vadd.f32 %v1611, %v1936
        %v2001 = vadd.f32 %v1612, %v1937
        %v2002 = vadd.f32 %v1613, %v1938
        %v2003 = vadd.f32 %v1614, %v1939
        %v2004 = vld [vmem:[%s3] sm:$0x1]
        %v2006 = vlaneseq
        %v2007 = vshrl.u32 %v2006, 7
        %v2008 = vsub.s32 0, %v2007
        %v2009 = vrot.slane %v2004, %v2008
        %v2011 = vadd.f32 %v1940, %v2009
        %v2012 = vadd.f32 %v1941, %v2009
        %v2013 = vadd.f32 %v1942, %v2009
        %v2014 = vadd.f32 %v1943, %v2009
        %v2015 = vadd.f32 %v1944, %v2009
        %v2016 = vadd.f32 %v1945, %v2009
        %v2017 = vadd.f32 %v1946, %v2009
        %v2018 = vadd.f32 %v1947, %v2009
        %v2019 = vadd.f32 %v1948, %v2009
        %v2020 = vadd.f32 %v1949, %v2009
        %v2021 = vadd.f32 %v1950, %v2009
        %v2022 = vadd.f32 %v1951, %v2009
        %v2023 = vadd.f32 %v1952, %v2009
        %v2024 = vadd.f32 %v1953, %v2009
        %v2025 = vadd.f32 %v1954, %v2009
        %v2026 = vadd.f32 %v1955, %v2009
        %v2027 = vadd.f32 %v1956, %v2009
        %v2028 = vadd.f32 %v1957, %v2009
        %v2029 = vadd.f32 %v1958, %v2009
        %v2030 = vadd.f32 %v1959, %v2009
        %v2031 = vadd.f32 %v1960, %v2009
        %v2032 = vadd.f32 %v1961, %v2009
        %v2033 = vadd.f32 %v1962, %v2009
        %v2034 = vadd.f32 %v1963, %v2009
        %v2035 = vadd.f32 %v1964, %v2009
        %v2036 = vadd.f32 %v1965, %v2009
        %v2037 = vadd.f32 %v1966, %v2009
        %v2038 = vadd.f32 %v1967, %v2009
        %v2039 = vadd.f32 %v1968, %v2009
        %v2040 = vadd.f32 %v1969, %v2009
        %v2041 = vadd.f32 %v1970, %v2009
        %v2042 = vadd.f32 %v1971, %v2009
        %v2043 = vadd.f32 %v1972, %v2009
        %v2044 = vadd.f32 %v1973, %v2009
        %v2045 = vadd.f32 %v1974, %v2009
        %v2046 = vadd.f32 %v1975, %v2009
        %v2047 = vadd.f32 %v1976, %v2009
        %v2048 = vadd.f32 %v1977, %v2009
        %v2049 = vadd.f32 %v1978, %v2009
        %v2050 = vadd.f32 %v1979, %v2009
        %v2051 = vadd.f32 %v1980, %v2009
        %v2052 = vadd.f32 %v1981, %v2009
        %v2053 = vadd.f32 %v1982, %v2009
        %v2054 = vadd.f32 %v1983, %v2009
        %v2055 = vadd.f32 %v1984, %v2009
        %v2056 = vadd.f32 %v1985, %v2009
        %v2057 = vadd.f32 %v1986, %v2009
        %v2058 = vadd.f32 %v1987, %v2009
        %v2059 = vadd.f32 %v1988, %v2009
        %v2060 = vadd.f32 %v1989, %v2009
        %v2061 = vadd.f32 %v1990, %v2009
        %v2062 = vadd.f32 %v1991, %v2009
        %v2063 = vadd.f32 %v1992, %v2009
        %v2064 = vadd.f32 %v1993, %v2009
        %v2065 = vadd.f32 %v1994, %v2009
        %v2066 = vadd.f32 %v1995, %v2009
        %v2067 = vadd.f32 %v1996, %v2009
        %v2068 = vadd.f32 %v1997, %v2009
        %v2069 = vadd.f32 %v1998, %v2009
        %v2070 = vadd.f32 %v1999, %v2009
        %v2071 = vadd.f32 %v2000, %v2009
        %v2072 = vadd.f32 %v2001, %v2009
        %v2073 = vadd.f32 %v2002, %v2009
        %v2074 = vadd.f32 %v2003, %v2009
        %v2075 = vmax.f32 %v2011, 0.0
        %v2076 = vmax.f32 %v2012, 0.0
        %v2077 = vmax.f32 %v2013, 0.0
        %v2078 = vmax.f32 %v2014, 0.0
        %v2079 = vmax.f32 %v2015, 0.0
        %v2080 = vmax.f32 %v2016, 0.0
        %v2081 = vmax.f32 %v2017, 0.0
        %v2082 = vmax.f32 %v2018, 0.0
        %v2083 = vmax.f32 %v2019, 0.0
        %v2084 = vmax.f32 %v2020, 0.0
        %v2085 = vmax.f32 %v2021, 0.0
        %v2086 = vmax.f32 %v2022, 0.0
        %v2087 = vmax.f32 %v2023, 0.0
        %v2088 = vmax.f32 %v2024, 0.0
        %v2089 = vmax.f32 %v2025, 0.0
        %v2090 = vmax.f32 %v2026, 0.0
        %v2091 = vmax.f32 %v2027, 0.0
        %v2092 = vmax.f32 %v2028, 0.0
        %v2093 = vmax.f32 %v2029, 0.0
        %v2094 = vmax.f32 %v2030, 0.0
        %v2095 = vmax.f32 %v2031, 0.0
        %v2096 = vmax.f32 %v2032, 0.0
        %v2097 = vmax.f32 %v2033, 0.0
        %v2098 = vmax.f32 %v2034, 0.0
        %v2099 = vmax.f32 %v2035, 0.0
        %v2100 = vmax.f32 %v2036, 0.0
        %v2101 = vmax.f32 %v2037, 0.0
        %v2102 = vmax.f32 %v2038, 0.0
        %v2103 = vmax.f32 %v2039, 0.0
        %v2104 = vmax.f32 %v2040, 0.0
        %v2105 = vmax.f32 %v2041, 0.0
        %v2106 = vmax.f32 %v2042, 0.0
        %v2107 = vmax.f32 %v2043, 0.0
        %v2108 = vmax.f32 %v2044, 0.0
        %v2109 = vmax.f32 %v2045, 0.0
        %v2110 = vmax.f32 %v2046, 0.0
        %v2111 = vmax.f32 %v2047, 0.0
        %v2112 = vmax.f32 %v2048, 0.0
        %v2113 = vmax.f32 %v2049, 0.0
        %v2114 = vmax.f32 %v2050, 0.0
        %v2115 = vmax.f32 %v2051, 0.0
        %v2116 = vmax.f32 %v2052, 0.0
        %v2117 = vmax.f32 %v2053, 0.0
        %v2118 = vmax.f32 %v2054, 0.0
        %v2119 = vmax.f32 %v2055, 0.0
        %v2120 = vmax.f32 %v2056, 0.0
        %v2121 = vmax.f32 %v2057, 0.0
        %v2122 = vmax.f32 %v2058, 0.0
        %v2123 = vmax.f32 %v2059, 0.0
        %v2124 = vmax.f32 %v2060, 0.0
        %v2125 = vmax.f32 %v2061, 0.0
        %v2126 = vmax.f32 %v2062, 0.0
        %v2127 = vmax.f32 %v2063, 0.0
        %v2128 = vmax.f32 %v2064, 0.0
        %v2129 = vmax.f32 %v2065, 0.0
        %v2130 = vmax.f32 %v2066, 0.0
        %v2131 = vmax.f32 %v2067, 0.0
        %v2132 = vmax.f32 %v2068, 0.0
        %v2133 = vmax.f32 %v2069, 0.0
        %v2134 = vmax.f32 %v2070, 0.0
        %v2135 = vmax.f32 %v2071, 0.0
        %v2136 = vmax.f32 %v2072, 0.0
        %v2137 = vmax.f32 %v2073, 0.0
        %v2138 = vmax.f32 %v2074, 0.0
        %v2139 = vpack.c.bf16 %v2076, %v2075
        %v2140 = vpack.c.bf16 %v2078, %v2077
        %v2141 = vpack.c.bf16 %v2080, %v2079
        %v2142 = vpack.c.bf16 %v2082, %v2081
        %v2143 = vpack.c.bf16 %v2084, %v2083
        %v2144 = vpack.c.bf16 %v2086, %v2085
        %v2145 = vpack.c.bf16 %v2088, %v2087
        %v2146 = vpack.c.bf16 %v2090, %v2089
        %v2147 = vpack.c.bf16 %v2092, %v2091
        %v2148 = vpack.c.bf16 %v2094, %v2093
        %v2149 = vpack.c.bf16 %v2096, %v2095
        %v2150 = vpack.c.bf16 %v2098, %v2097
        %v2151 = vpack.c.bf16 %v2100, %v2099
        %v2152 = vpack.c.bf16 %v2102, %v2101
        %v2153 = vpack.c.bf16 %v2104, %v2103
        %v2154 = vpack.c.bf16 %v2106, %v2105
        %v2155 = vpack.c.bf16 %v2108, %v2107
        %v2156 = vpack.c.bf16 %v2110, %v2109
        %v2157 = vpack.c.bf16 %v2112, %v2111
        %v2158 = vpack.c.bf16 %v2114, %v2113
        %v2159 = vpack.c.bf16 %v2116, %v2115
        %v2160 = vpack.c.bf16 %v2118, %v2117
        %v2161 = vpack.c.bf16 %v2120, %v2119
        %v2162 = vpack.c.bf16 %v2122, %v2121
        %v2163 = vpack.c.bf16 %v2124, %v2123
        %v2164 = vpack.c.bf16 %v2126, %v2125
        %v2165 = vpack.c.bf16 %v2128, %v2127
        %v2166 = vpack.c.bf16 %v2130, %v2129
        %v2167 = vpack.c.bf16 %v2132, %v2131
        %v2168 = vpack.c.bf16 %v2134, %v2133
        %v2169 = vpack.c.bf16 %v2136, %v2135
        %v2170 = vpack.c.bf16 %v2138, %v2137
        %v2171 = vld [vmem:[%s4] sm:$0xff]
        %v2172 = vld [vmem:[%s4 + $0x8] sm:$0xff]
        %v2173 = vld [vmem:[%s4 + $0x10] sm:$0xff]
        %v2174 = vld [vmem:[%s4 + $0x18] sm:$0xff]
        %v2175 = vld [vmem:[%s4 + $0x20] sm:$0xff]
        %v2176 = vld [vmem:[%s4 + $0x28] sm:$0xff]
        %v2177 = vld [vmem:[%s4 + $0x30] sm:$0xff]
        %v2178 = vld [vmem:[%s4 + $0x38] sm:$0xff]
        %v2179 = vld [vmem:[%s4 + $0x40] sm:$0xff]
        %v2180 = vld [vmem:[%s4 + $0x48] sm:$0xff]
        %v2181 = vld [vmem:[%s4 + $0x50] sm:$0xff]
        %v2182 = vld [vmem:[%s4 + $0x58] sm:$0xff]
        %v2183 = vld [vmem:[%s4 + $0x60] sm:$0xff]
        %v2184 = vld [vmem:[%s4 + $0x68] sm:$0xff]
        %v2185 = vld [vmem:[%s4 + $0x70] sm:$0xff]
        %v2186 = vld [vmem:[%s4 + $0x78] sm:$0xff]
        %v2187 = vld [vmem:[%s5] sm:$0x3]
        %v2189 = vlaneseq
        %v2190 = vshrl.u32 %v2189, 7
        %v2191 = vsub.s32 0, %v2190
        %v2192 = vrot.slane %v2187, %v2191
        %v2193 = vlaneseq
        %v2194 = vshrl.u32 %v2193, 7
        %v2195 = vsub.s32 1, %v2194
        %v2196 = vrot.slane %v2187, %v2195
        %v2215 = vunpack.c.l.b16 %v2171
        %v2216 = vunpack.c.h.b16 %v2171
        %v2217 = vunpack.c.l.b16 %v2172
        %v2218 = vunpack.c.h.b16 %v2172
        %v2219 = vunpack.c.l.b16 %v2173
        %v2220 = vunpack.c.h.b16 %v2173
        %v2221 = vunpack.c.l.b16 %v2174
        %v2222 = vunpack.c.h.b16 %v2174
        %v2223 = vunpack.c.l.b16 %v2175
        %v2224 = vunpack.c.h.b16 %v2175
        %v2225 = vunpack.c.l.b16 %v2176
        %v2226 = vunpack.c.h.b16 %v2176
        %v2227 = vunpack.c.l.b16 %v2177
        %v2228 = vunpack.c.h.b16 %v2177
        %v2229 = vunpack.c.l.b16 %v2178
        %v2230 = vunpack.c.h.b16 %v2178
        %v2231 = vunpack.c.l.b16 %v2179
        %v2232 = vunpack.c.h.b16 %v2179
        %v2233 = vunpack.c.l.b16 %v2180
        %v2234 = vunpack.c.h.b16 %v2180
        %v2235 = vunpack.c.l.b16 %v2181
        %v2236 = vunpack.c.h.b16 %v2181
        %v2237 = vunpack.c.l.b16 %v2182
        %v2238 = vunpack.c.h.b16 %v2182
        %v2239 = vunpack.c.l.b16 %v2183
        %v2240 = vunpack.c.h.b16 %v2183
        %v2241 = vunpack.c.l.b16 %v2184
        %v2242 = vunpack.c.h.b16 %v2184
        %v2243 = vunpack.c.l.b16 %v2185
        %v2244 = vunpack.c.h.b16 %v2185
        %v2245 = vunpack.c.l.b16 %v2186
        %v2246 = vunpack.c.h.b16 %v2186
        %v2247 = vpack.c.b16 %v2217, %v2215
        %v2248 = vpack.c.b16 %v2218, %v2216
        %v2249 = vpack.c.b16 %v2221, %v2219
        %v2250 = vpack.c.b16 %v2222, %v2220
        %v2251 = vpack.c.b16 %v2225, %v2223
        %v2252 = vpack.c.b16 %v2226, %v2224
        %v2253 = vpack.c.b16 %v2229, %v2227
        %v2254 = vpack.c.b16 %v2230, %v2228
        %v2255 = vpack.c.b16 %v2233, %v2231
        %v2256 = vpack.c.b16 %v2234, %v2232
        %v2257 = vpack.c.b16 %v2237, %v2235
        %v2258 = vpack.c.b16 %v2238, %v2236
        %v2259 = vpack.c.b16 %v2241, %v2239
        %v2260 = vpack.c.b16 %v2242, %v2240
        %v2261 = vpack.c.b16 %v2245, %v2243
        %v2262 = vpack.c.b16 %v2246, %v2244
        %2279 = vmatprep.subr.bf16.mxu0 %v2262
        %2280 = vmatpush1.bf16.msra.mxu0 %v2261
        %2281 = vmatprep.subr.bf16.mxu0 %v2260
        %2282 = vmatpush1.bf16.msra.mxu0 %v2259
        %2283 = vmatprep.subr.bf16.mxu0 %v2258
        %2284 = vmatpush1.bf16.msra.mxu0 %v2257
        %2285 = vmatprep.subr.bf16.mxu0 %v2256
        %2286 = vmatpush1.bf16.msra.mxu0 %v2255
        %2287 = vmatprep.subr.bf16.mxu0 %v2254
        %2288 = vmatpush1.bf16.msra.mxu0 %v2253
        %2289 = vmatprep.subr.bf16.mxu0 %v2252
        %2290 = vmatpush1.bf16.msra.mxu0 %v2251
        %2291 = vmatprep.subr.bf16.mxu0 %v2250
        %2292 = vmatpush1.bf16.msra.mxu0 %v2249
        %2293 = vmatprep.subr.bf16.mxu0 %v2248
        %2294 = vmatpush1.bf16.msra.mxu0 %v2247
        %2295 = vmatprep.subr.bf16.mxu0 0
        %2296 = vmatpush2.bf16.msra.mxu0 0
        %2297 = vmatprep.subr.bf16.mxu0 0
        %2298 = vmatpush2.bf16.msra.mxu0 0
        %2299 = vmatprep.subr.bf16.mxu0 0
        %2300 = vmatpush2.bf16.msra.mxu0 0
        %2301 = vmatprep.subr.bf16.mxu0 0
        %2302 = vmatpush2.bf16.msra.mxu0 0
        %2303 = vmatprep.subr.bf16.mxu0 0
        %2304 = vmatpush2.bf16.msra.mxu0 0
        %2305 = vmatprep.subr.bf16.mxu0 0
        %2306 = vmatpush2.bf16.msra.mxu0 0
        %2307 = vmatprep.subr.bf16.mxu0 0
        %2308 = vmatpush2.bf16.msra.mxu0 0
        %2309 = vmatprep.subr.bf16.mxu0 0
        %2310 = vmatpush2.bf16.msra.mxu0 0
        %2311 = vmatprep.mubr.bf16.mxu0 0
        %2312 = vmatmul.mubr.bf16.gmra.mxu0 %v2139
        %v2313 = vpop.f32.mrf.mxu0
        %v2314 = vadd.f32 %v2192, %v2313
        %v2315 = vpop.f32.mrf.mxu0
        %v2316 = vadd.f32 %v2196, %v2315
        %v2317 = vpop.f32.mrf.mxu0
        %v2318 = vadd.f32 %v2192, %v2317
        %v2319 = vpop.f32.mrf.mxu0
        %v2320 = vadd.f32 %v2196, %v2319
        %2321 = vmatprep.mubr.bf16.mxu0 0
        %2322 = vmatmul.mubr.bf16.gmra.mxu0 %v2140
        %v2323 = vpop.f32.mrf.mxu0
        %v2324 = vadd.f32 %v2192, %v2323
        %v2325 = vpop.f32.mrf.mxu0
        %v2326 = vadd.f32 %v2196, %v2325
        %v2327 = vpop.f32.mrf.mxu0
        %v2328 = vadd.f32 %v2192, %v2327
        %v2329 = vpop.f32.mrf.mxu0
        %v2330 = vadd.f32 %v2196, %v2329
        %2331 = vmatprep.mubr.bf16.mxu0 0
        %2332 = vmatmul.mubr.bf16.gmra.mxu0 %v2141
        %v2333 = vpop.f32.mrf.mxu0
        %v2334 = vadd.f32 %v2192, %v2333
        %v2335 = vpop.f32.mrf.mxu0
        %v2336 = vadd.f32 %v2196, %v2335
        %v2337 = vpop.f32.mrf.mxu0
        %v2338 = vadd.f32 %v2192, %v2337
        %v2339 = vpop.f32.mrf.mxu0
        %v2340 = vadd.f32 %v2196, %v2339
        %2341 = vmatprep.mubr.bf16.mxu0 0
        %2342 = vmatmul.mubr.bf16.gmra.mxu0 %v2142
        %v2343 = vpop.f32.mrf.mxu0
        %v2344 = vadd.f32 %v2192, %v2343
        %v2345 = vpop.f32.mrf.mxu0
        %v2346 = vadd.f32 %v2196, %v2345
        %v2347 = vpop.f32.mrf.mxu0
        %v2348 = vadd.f32 %v2192, %v2347
        %v2349 = vpop.f32.mrf.mxu0
        %v2350 = vadd.f32 %v2196, %v2349
        %2351 = vmatprep.mubr.bf16.mxu0 0
        %2352 = vmatmul.mubr.bf16.gmra.mxu0 %v2143
        %v2353 = vpop.f32.mrf.mxu0
        %v2354 = vadd.f32 %v2192, %v2353
        %v2355 = vpop.f32.mrf.mxu0
        %v2356 = vadd.f32 %v2196, %v2355
        %v2357 = vpop.f32.mrf.mxu0
        %v2358 = vadd.f32 %v2192, %v2357
        %v2359 = vpop.f32.mrf.mxu0
        %v2360 = vadd.f32 %v2196, %v2359
        %2361 = vmatprep.mubr.bf16.mxu0 0
        %2362 = vmatmul.mubr.bf16.gmra.mxu0 %v2144
        %v2363 = vpop.f32.mrf.mxu0
        %v2364 = vadd.f32 %v2192, %v2363
        %v2365 = vpop.f32.mrf.mxu0
        %v2366 = vadd.f32 %v2196, %v2365
        %v2367 = vpop.f32.mrf.mxu0
        %v2368 = vadd.f32 %v2192, %v2367
        %v2369 = vpop.f32.mrf.mxu0
        %v2370 = vadd.f32 %v2196, %v2369
        %2371 = vmatprep.mubr.bf16.mxu0 0
        %2372 = vmatmul.mubr.bf16.gmra.mxu0 %v2145
        %v2373 = vpop.f32.mrf.mxu0
        %v2374 = vadd.f32 %v2192, %v2373
        %v2375 = vpop.f32.mrf.mxu0
        %v2376 = vadd.f32 %v2196, %v2375
        %v2377 = vpop.f32.mrf.mxu0
        %v2378 = vadd.f32 %v2192, %v2377
        %v2379 = vpop.f32.mrf.mxu0
        %v2380 = vadd.f32 %v2196, %v2379
        %2381 = vmatprep.mubr.bf16.mxu0 0
        %2382 = vmatmul.mubr.bf16.gmra.mxu0 %v2146
        %v2383 = vpop.f32.mrf.mxu0
        %v2384 = vadd.f32 %v2192, %v2383
        %v2385 = vpop.f32.mrf.mxu0
        %v2386 = vadd.f32 %v2196, %v2385
        %v2387 = vpop.f32.mrf.mxu0
        %v2388 = vadd.f32 %v2192, %v2387
        %v2389 = vpop.f32.mrf.mxu0
        %v2390 = vadd.f32 %v2196, %v2389
        %2391 = vmatprep.mubr.bf16.mxu0 0
        %2392 = vmatmul.mubr.bf16.gmra.mxu0 %v2147
        %v2393 = vpop.f32.mrf.mxu0
        %v2394 = vadd.f32 %v2192, %v2393
        %v2395 = vpop.f32.mrf.mxu0
        %v2396 = vadd.f32 %v2196, %v2395
        %v2397 = vpop.f32.mrf.mxu0
        %v2398 = vadd.f32 %v2192, %v2397
        %v2399 = vpop.f32.mrf.mxu0
        %v2400 = vadd.f32 %v2196, %v2399
        %2401 = vmatprep.mubr.bf16.mxu0 0
        %2402 = vmatmul.mubr.bf16.gmra.mxu0 %v2148
        %v2403 = vpop.f32.mrf.mxu0
        %v2404 = vadd.f32 %v2192, %v2403
        %v2405 = vpop.f32.mrf.mxu0
        %v2406 = vadd.f32 %v2196, %v2405
        %v2407 = vpop.f32.mrf.mxu0
        %v2408 = vadd.f32 %v2192, %v2407
        %v2409 = vpop.f32.mrf.mxu0
        %v2410 = vadd.f32 %v2196, %v2409
        %2411 = vmatprep.mubr.bf16.mxu0 0
        %2412 = vmatmul.mubr.bf16.gmra.mxu0 %v2149
        %v2413 = vpop.f32.mrf.mxu0
        %v2414 = vadd.f32 %v2192, %v2413
        %v2415 = vpop.f32.mrf.mxu0
        %v2416 = vadd.f32 %v2196, %v2415
        %v2417 = vpop.f32.mrf.mxu0
        %v2418 = vadd.f32 %v2192, %v2417
        %v2419 = vpop.f32.mrf.mxu0
        %v2420 = vadd.f32 %v2196, %v2419
        %2421 = vmatprep.mubr.bf16.mxu0 0
        %2422 = vmatmul.mubr.bf16.gmra.mxu0 %v2150
        %v2423 = vpop.f32.mrf.mxu0
        %v2424 = vadd.f32 %v2192, %v2423
        %v2425 = vpop.f32.mrf.mxu0
        %v2426 = vadd.f32 %v2196, %v2425
        %v2427 = vpop.f32.mrf.mxu0
        %v2428 = vadd.f32 %v2192, %v2427
        %v2429 = vpop.f32.mrf.mxu0
        %v2430 = vadd.f32 %v2196, %v2429
        %2431 = vmatprep.mubr.bf16.mxu0 0
        %2432 = vmatmul.mubr.bf16.gmra.mxu0 %v2151
        %v2433 = vpop.f32.mrf.mxu0
        %v2434 = vadd.f32 %v2192, %v2433
        %v2435 = vpop.f32.mrf.mxu0
        %v2436 = vadd.f32 %v2196, %v2435
        %v2437 = vpop.f32.mrf.mxu0
        %v2438 = vadd.f32 %v2192, %v2437
        %v2439 = vpop.f32.mrf.mxu0
        %v2440 = vadd.f32 %v2196, %v2439
        %2441 = vmatprep.mubr.bf16.mxu0 0
        %2442 = vmatmul.mubr.bf16.gmra.mxu0 %v2152
        %v2443 = vpop.f32.mrf.mxu0
        %v2444 = vadd.f32 %v2192, %v2443
        %v2445 = vpop.f32.mrf.mxu0
        %v2446 = vadd.f32 %v2196, %v2445
        %v2447 = vpop.f32.mrf.mxu0
        %v2448 = vadd.f32 %v2192, %v2447
        %v2449 = vpop.f32.mrf.mxu0
        %v2450 = vadd.f32 %v2196, %v2449
        %2451 = vmatprep.mubr.bf16.mxu0 0
        %2452 = vmatmul.mubr.bf16.gmra.mxu0 %v2153
        %v2453 = vpop.f32.mrf.mxu0
        %v2454 = vadd.f32 %v2192, %v2453
        %v2455 = vpop.f32.mrf.mxu0
        %v2456 = vadd.f32 %v2196, %v2455
        %v2457 = vpop.f32.mrf.mxu0
        %v2458 = vadd.f32 %v2192, %v2457
        %v2459 = vpop.f32.mrf.mxu0
        %v2460 = vadd.f32 %v2196, %v2459
        %2461 = vmatprep.mubr.bf16.mxu0 0
        %2462 = vmatmul.mubr.bf16.gmra.mxu0 %v2154
        %v2463 = vpop.f32.mrf.mxu0
        %v2464 = vadd.f32 %v2192, %v2463
        %v2465 = vpop.f32.mrf.mxu0
        %v2466 = vadd.f32 %v2196, %v2465
        %v2467 = vpop.f32.mrf.mxu0
        %v2468 = vadd.f32 %v2192, %v2467
        %v2469 = vpop.f32.mrf.mxu0
        %v2470 = vadd.f32 %v2196, %v2469
        %2471 = vmatprep.mubr.bf16.mxu0 0
        %2472 = vmatmul.mubr.bf16.gmra.mxu0 %v2155
        %v2473 = vpop.f32.mrf.mxu0
        %v2474 = vadd.f32 %v2192, %v2473
        %v2475 = vpop.f32.mrf.mxu0
        %v2476 = vadd.f32 %v2196, %v2475
        %v2477 = vpop.f32.mrf.mxu0
        %v2478 = vadd.f32 %v2192, %v2477
        %v2479 = vpop.f32.mrf.mxu0
        %v2480 = vadd.f32 %v2196, %v2479
        %2481 = vmatprep.mubr.bf16.mxu0 0
        %2482 = vmatmul.mubr.bf16.gmra.mxu0 %v2156
        %v2483 = vpop.f32.mrf.mxu0
        %v2484 = vadd.f32 %v2192, %v2483
        %v2485 = vpop.f32.mrf.mxu0
        %v2486 = vadd.f32 %v2196, %v2485
        %v2487 = vpop.f32.mrf.mxu0
        %v2488 = vadd.f32 %v2192, %v2487
        %v2489 = vpop.f32.mrf.mxu0
        %v2490 = vadd.f32 %v2196, %v2489
        %2491 = vmatprep.mubr.bf16.mxu0 0
        %2492 = vmatmul.mubr.bf16.gmra.mxu0 %v2157
        %v2493 = vpop.f32.mrf.mxu0
        %v2494 = vadd.f32 %v2192, %v2493
        %v2495 = vpop.f32.mrf.mxu0
        %v2496 = vadd.f32 %v2196, %v2495
        %v2497 = vpop.f32.mrf.mxu0
        %v2498 = vadd.f32 %v2192, %v2497
        %v2499 = vpop.f32.mrf.mxu0
        %v2500 = vadd.f32 %v2196, %v2499
        %2501 = vmatprep.mubr.bf16.mxu0 0
        %2502 = vmatmul.mubr.bf16.gmra.mxu0 %v2158
        %v2503 = vpop.f32.mrf.mxu0
        %v2504 = vadd.f32 %v2192, %v2503
        %v2505 = vpop.f32.mrf.mxu0
        %v2506 = vadd.f32 %v2196, %v2505
        %v2507 = vpop.f32.mrf.mxu0
        %v2508 = vadd.f32 %v2192, %v2507
        %v2509 = vpop.f32.mrf.mxu0
        %v2510 = vadd.f32 %v2196, %v2509
        %2511 = vmatprep.mubr.bf16.mxu0 0
        %2512 = vmatmul.mubr.bf16.gmra.mxu0 %v2159
        %v2513 = vpop.f32.mrf.mxu0
        %v2514 = vadd.f32 %v2192, %v2513
        %v2515 = vpop.f32.mrf.mxu0
        %v2516 = vadd.f32 %v2196, %v2515
        %v2517 = vpop.f32.mrf.mxu0
        %v2518 = vadd.f32 %v2192, %v2517
        %v2519 = vpop.f32.mrf.mxu0
        %v2520 = vadd.f32 %v2196, %v2519
        %2521 = vmatprep.mubr.bf16.mxu0 0
        %2522 = vmatmul.mubr.bf16.gmra.mxu0 %v2160
        %v2523 = vpop.f32.mrf.mxu0
        %v2524 = vadd.f32 %v2192, %v2523
        %v2525 = vpop.f32.mrf.mxu0
        %v2526 = vadd.f32 %v2196, %v2525
        %v2527 = vpop.f32.mrf.mxu0
        %v2528 = vadd.f32 %v2192, %v2527
        %v2529 = vpop.f32.mrf.mxu0
        %v2530 = vadd.f32 %v2196, %v2529
        %2531 = vmatprep.mubr.bf16.mxu0 0
        %2532 = vmatmul.mubr.bf16.gmra.mxu0 %v2161
        %v2533 = vpop.f32.mrf.mxu0
        %v2534 = vadd.f32 %v2192, %v2533
        %v2535 = vpop.f32.mrf.mxu0
        %v2536 = vadd.f32 %v2196, %v2535
        %v2537 = vpop.f32.mrf.mxu0
        %v2538 = vadd.f32 %v2192, %v2537
        %v2539 = vpop.f32.mrf.mxu0
        %v2540 = vadd.f32 %v2196, %v2539
        %2541 = vmatprep.mubr.bf16.mxu0 0
        %2542 = vmatmul.mubr.bf16.gmra.mxu0 %v2162
        %v2543 = vpop.f32.mrf.mxu0
        %v2544 = vadd.f32 %v2192, %v2543
        %v2545 = vpop.f32.mrf.mxu0
        %v2546 = vadd.f32 %v2196, %v2545
        %v2547 = vpop.f32.mrf.mxu0
        %v2548 = vadd.f32 %v2192, %v2547
        %v2549 = vpop.f32.mrf.mxu0
        %v2550 = vadd.f32 %v2196, %v2549
        %2551 = vmatprep.mubr.bf16.mxu0 0
        %2552 = vmatmul.mubr.bf16.gmra.mxu0 %v2163
        %v2553 = vpop.f32.mrf.mxu0
        %v2554 = vadd.f32 %v2192, %v2553
        %v2555 = vpop.f32.mrf.mxu0
        %v2556 = vadd.f32 %v2196, %v2555
        %v2557 = vpop.f32.mrf.mxu0
        %v2558 = vadd.f32 %v2192, %v2557
        %v2559 = vpop.f32.mrf.mxu0
        %v2560 = vadd.f32 %v2196, %v2559
        %2561 = vmatprep.mubr.bf16.mxu0 0
        %2562 = vmatmul.mubr.bf16.gmra.mxu0 %v2164
        %v2563 = vpop.f32.mrf.mxu0
        %v2564 = vadd.f32 %v2192, %v2563
        %v2565 = vpop.f32.mrf.mxu0
        %v2566 = vadd.f32 %v2196, %v2565
        %v2567 = vpop.f32.mrf.mxu0
        %v2568 = vadd.f32 %v2192, %v2567
        %v2569 = vpop.f32.mrf.mxu0
        %v2570 = vadd.f32 %v2196, %v2569
        %2571 = vmatprep.mubr.bf16.mxu0 0
        %2572 = vmatmul.mubr.bf16.gmra.mxu0 %v2165
        %v2573 = vpop.f32.mrf.mxu0
        %v2574 = vadd.f32 %v2192, %v2573
        %v2575 = vpop.f32.mrf.mxu0
        %v2576 = vadd.f32 %v2196, %v2575
        %v2577 = vpop.f32.mrf.mxu0
        %v2578 = vadd.f32 %v2192, %v2577
        %v2579 = vpop.f32.mrf.mxu0
        %v2580 = vadd.f32 %v2196, %v2579
        %2581 = vmatprep.mubr.bf16.mxu0 0
        %2582 = vmatmul.mubr.bf16.gmra.mxu0 %v2166
        %v2583 = vpop.f32.mrf.mxu0
        %v2584 = vadd.f32 %v2192, %v2583
        %v2585 = vpop.f32.mrf.mxu0
        %v2586 = vadd.f32 %v2196, %v2585
        %v2587 = vpop.f32.mrf.mxu0
        %v2588 = vadd.f32 %v2192, %v2587
        %v2589 = vpop.f32.mrf.mxu0
        %v2590 = vadd.f32 %v2196, %v2589
        %2591 = vmatprep.mubr.bf16.mxu0 0
        %2592 = vmatmul.mubr.bf16.gmra.mxu0 %v2167
        %v2593 = vpop.f32.mrf.mxu0
        %v2594 = vadd.f32 %v2192, %v2593
        %v2595 = vpop.f32.mrf.mxu0
        %v2596 = vadd.f32 %v2196, %v2595
        %v2597 = vpop.f32.mrf.mxu0
        %v2598 = vadd.f32 %v2192, %v2597
        %v2599 = vpop.f32.mrf.mxu0
        %v2600 = vadd.f32 %v2196, %v2599
        %2601 = vmatprep.mubr.bf16.mxu0 0
        %2602 = vmatmul.mubr.bf16.gmra.mxu0 %v2168
        %v2603 = vpop.f32.mrf.mxu0
        %v2604 = vadd.f32 %v2192, %v2603
        %v2605 = vpop.f32.mrf.mxu0
        %v2606 = vadd.f32 %v2196, %v2605
        %v2607 = vpop.f32.mrf.mxu0
        %v2608 = vadd.f32 %v2192, %v2607
        %v2609 = vpop.f32.mrf.mxu0
        %v2610 = vadd.f32 %v2196, %v2609
        %2611 = vmatprep.mubr.bf16.mxu0 0
        %2612 = vmatmul.mubr.bf16.gmra.mxu0 %v2169
        %v2613 = vpop.f32.mrf.mxu0
        %v2614 = vadd.f32 %v2192, %v2613
        %v2615 = vpop.f32.mrf.mxu0
        %v2616 = vadd.f32 %v2196, %v2615
        %v2617 = vpop.f32.mrf.mxu0
        %v2618 = vadd.f32 %v2192, %v2617
        %v2619 = vpop.f32.mrf.mxu0
        %v2620 = vadd.f32 %v2196, %v2619
        %2621 = vmatprep.mubr.bf16.mxu0 0
        %2622 = vmatmul.mubr.bf16.gmra.mxu0 %v2170
        %v2623 = vpop.f32.mrf.mxu0
        %v2624 = vadd.f32 %v2192, %v2623
        %v2625 = vpop.f32.mrf.mxu0
        %v2626 = vadd.f32 %v2196, %v2625
        %v2627 = vpop.f32.mrf.mxu0
        %v2628 = vadd.f32 %v2192, %v2627
        %v2629 = vpop.f32.mrf.mxu0
        %v2630 = vadd.f32 %v2196, %v2629
        %2631 = vdwg.mxu0
        %v2632 = vmax.f32 %v2314, 0.0
        %v2633 = vmax.f32 %v2316, 0.0
        %v2634 = vmax.f32 %v2318, 0.0
        %v2635 = vmax.f32 %v2320, 0.0
        %v2636 = vmax.f32 %v2324, 0.0
        %v2637 = vmax.f32 %v2326, 0.0
        %v2638 = vmax.f32 %v2328, 0.0
        %v2639 = vmax.f32 %v2330, 0.0
        %v2640 = vmax.f32 %v2334, 0.0
        %v2641 = vmax.f32 %v2336, 0.0
        %v2642 = vmax.f32 %v2338, 0.0
        %v2643 = vmax.f32 %v2340, 0.0
        %v2644 = vmax.f32 %v2344, 0.0
        %v2645 = vmax.f32 %v2346, 0.0
        %v2646 = vmax.f32 %v2348, 0.0
        %v2647 = vmax.f32 %v2350, 0.0
        %v2648 = vmax.f32 %v2354, 0.0
        %v2649 = vmax.f32 %v2356, 0.0
        %v2650 = vmax.f32 %v2358, 0.0
        %v2651 = vmax.f32 %v2360, 0.0
        %v2652 = vmax.f32 %v2364, 0.0
        %v2653 = vmax.f32 %v2366, 0.0
        %v2654 = vmax.f32 %v2368, 0.0
        %v2655 = vmax.f32 %v2370, 0.0
        %v2656 = vmax.f32 %v2374, 0.0
        %v2657 = vmax.f32 %v2376, 0.0
        %v2658 = vmax.f32 %v2378, 0.0
        %v2659 = vmax.f32 %v2380, 0.0
        %v2660 = vmax.f32 %v2384, 0.0
        %v2661 = vmax.f32 %v2386, 0.0
        %v2662 = vmax.f32 %v2388, 0.0
        %v2663 = vmax.f32 %v2390, 0.0
        %v2664 = vmax.f32 %v2394, 0.0
        %v2665 = vmax.f32 %v2396, 0.0
        %v2666 = vmax.f32 %v2398, 0.0
        %v2667 = vmax.f32 %v2400, 0.0
        %v2668 = vmax.f32 %v2404, 0.0
        %v2669 = vmax.f32 %v2406, 0.0
        %v2670 = vmax.f32 %v2408, 0.0
        %v2671 = vmax.f32 %v2410, 0.0
        %v2672 = vmax.f32 %v2414, 0.0
        %v2673 = vmax.f32 %v2416, 0.0
        %v2674 = vmax.f32 %v2418, 0.0
        %v2675 = vmax.f32 %v2420, 0.0
        %v2676 = vmax.f32 %v2424, 0.0
        %v2677 = vmax.f32 %v2426, 0.0
        %v2678 = vmax.f32 %v2428, 0.0
        %v2679 = vmax.f32 %v2430, 0.0
        %v2680 = vmax.f32 %v2434, 0.0
        %v2681 = vmax.f32 %v2436, 0.0
        %v2682 = vmax.f32 %v2438, 0.0
        %v2683 = vmax.f32 %v2440, 0.0
        %v2684 = vmax.f32 %v2444, 0.0
        %v2685 = vmax.f32 %v2446, 0.0
        %v2686 = vmax.f32 %v2448, 0.0
        %v2687 = vmax.f32 %v2450, 0.0
        %v2688 = vmax.f32 %v2454, 0.0
        %v2689 = vmax.f32 %v2456, 0.0
        %v2690 = vmax.f32 %v2458, 0.0
        %v2691 = vmax.f32 %v2460, 0.0
        %v2692 = vmax.f32 %v2464, 0.0
        %v2693 = vmax.f32 %v2466, 0.0
        %v2694 = vmax.f32 %v2468, 0.0
        %v2695 = vmax.f32 %v2470, 0.0
        %v2696 = vmax.f32 %v2474, 0.0
        %v2697 = vmax.f32 %v2476, 0.0
        %v2698 = vmax.f32 %v2478, 0.0
        %v2699 = vmax.f32 %v2480, 0.0
        %v2700 = vmax.f32 %v2484, 0.0
        %v2701 = vmax.f32 %v2486, 0.0
        %v2702 = vmax.f32 %v2488, 0.0
        %v2703 = vmax.f32 %v2490, 0.0
        %v2704 = vmax.f32 %v2494, 0.0
        %v2705 = vmax.f32 %v2496, 0.0
        %v2706 = vmax.f32 %v2498, 0.0
        %v2707 = vmax.f32 %v2500, 0.0
        %v2708 = vmax.f32 %v2504, 0.0
        %v2709 = vmax.f32 %v2506, 0.0
        %v2710 = vmax.f32 %v2508, 0.0
        %v2711 = vmax.f32 %v2510, 0.0
        %v2712 = vmax.f32 %v2514, 0.0
        %v2713 = vmax.f32 %v2516, 0.0
        %v2714 = vmax.f32 %v2518, 0.0
        %v2715 = vmax.f32 %v2520, 0.0
        %v2716 = vmax.f32 %v2524, 0.0
        %v2717 = vmax.f32 %v2526, 0.0
        %v2718 = vmax.f32 %v2528, 0.0
        %v2719 = vmax.f32 %v2530, 0.0
        %v2720 = vmax.f32 %v2534, 0.0
        %v2721 = vmax.f32 %v2536, 0.0
        %v2722 = vmax.f32 %v2538, 0.0
        %v2723 = vmax.f32 %v2540, 0.0
        %v2724 = vmax.f32 %v2544, 0.0
        %v2725 = vmax.f32 %v2546, 0.0
        %v2726 = vmax.f32 %v2548, 0.0
        %v2727 = vmax.f32 %v2550, 0.0
        %v2728 = vmax.f32 %v2554, 0.0
        %v2729 = vmax.f32 %v2556, 0.0
        %v2730 = vmax.f32 %v2558, 0.0
        %v2731 = vmax.f32 %v2560, 0.0
        %v2732 = vmax.f32 %v2564, 0.0
        %v2733 = vmax.f32 %v2566, 0.0
        %v2734 = vmax.f32 %v2568, 0.0
        %v2735 = vmax.f32 %v2570, 0.0
        %v2736 = vmax.f32 %v2574, 0.0
        %v2737 = vmax.f32 %v2576, 0.0
        %v2738 = vmax.f32 %v2578, 0.0
        %v2739 = vmax.f32 %v2580, 0.0
        %v2740 = vmax.f32 %v2584, 0.0
        %v2741 = vmax.f32 %v2586, 0.0
        %v2742 = vmax.f32 %v2588, 0.0
        %v2743 = vmax.f32 %v2590, 0.0
        %v2744 = vmax.f32 %v2594, 0.0
        %v2745 = vmax.f32 %v2596, 0.0
        %v2746 = vmax.f32 %v2598, 0.0
        %v2747 = vmax.f32 %v2600, 0.0
        %v2748 = vmax.f32 %v2604, 0.0
        %v2749 = vmax.f32 %v2606, 0.0
        %v2750 = vmax.f32 %v2608, 0.0
        %v2751 = vmax.f32 %v2610, 0.0
        %v2752 = vmax.f32 %v2614, 0.0
        %v2753 = vmax.f32 %v2616, 0.0
        %v2754 = vmax.f32 %v2618, 0.0
        %v2755 = vmax.f32 %v2620, 0.0
        %v2756 = vmax.f32 %v2624, 0.0
        %v2757 = vmax.f32 %v2626, 0.0
        %v2758 = vmax.f32 %v2628, 0.0
        %v2759 = vmax.f32 %v2630, 0.0
        %v2760 = vpack.c.bf16 %v2634, %v2632
        %v2761 = vpack.c.bf16 %v2635, %v2633
        %v2762 = vpack.c.bf16 %v2638, %v2636
        %v2763 = vpack.c.bf16 %v2639, %v2637
        %v2764 = vpack.c.bf16 %v2642, %v2640
        %v2765 = vpack.c.bf16 %v2643, %v2641
        %v2766 = vpack.c.bf16 %v2646, %v2644
        %v2767 = vpack.c.bf16 %v2647, %v2645
        %v2768 = vpack.c.bf16 %v2650, %v2648
        %v2769 = vpack.c.bf16 %v2651, %v2649
        %v2770 = vpack.c.bf16 %v2654, %v2652
        %v2771 = vpack.c.bf16 %v2655, %v2653
        %v2772 = vpack.c.bf16 %v2658, %v2656
        %v2773 = vpack.c.bf16 %v2659, %v2657
        %v2774 = vpack.c.bf16 %v2662, %v2660
        %v2775 = vpack.c.bf16 %v2663, %v2661
        %v2776 = vpack.c.bf16 %v2666, %v2664
        %v2777 = vpack.c.bf16 %v2667, %v2665
        %v2778 = vpack.c.bf16 %v2670, %v2668
        %v2779 = vpack.c.bf16 %v2671, %v2669
        %v2780 = vpack.c.bf16 %v2674, %v2672
        %v2781 = vpack.c.bf16 %v2675, %v2673
        %v2782 = vpack.c.bf16 %v2678, %v2676
        %v2783 = vpack.c.bf16 %v2679, %v2677
        %v2784 = vpack.c.bf16 %v2682, %v2680
        %v2785 = vpack.c.bf16 %v2683, %v2681
        %v2786 = vpack.c.bf16 %v2686, %v2684
        %v2787 = vpack.c.bf16 %v2687, %v2685
        %v2788 = vpack.c.bf16 %v2690, %v2688
        %v2789 = vpack.c.bf16 %v2691, %v2689
        %v2790 = vpack.c.bf16 %v2694, %v2692
        %v2791 = vpack.c.bf16 %v2695, %v2693
        %v2792 = vpack.c.bf16 %v2698, %v2696
        %v2793 = vpack.c.bf16 %v2699, %v2697
        %v2794 = vpack.c.bf16 %v2702, %v2700
        %v2795 = vpack.c.bf16 %v2703, %v2701
        %v2796 = vpack.c.bf16 %v2706, %v2704
        %v2797 = vpack.c.bf16 %v2707, %v2705
        %v2798 = vpack.c.bf16 %v2710, %v2708
        %v2799 = vpack.c.bf16 %v2711, %v2709
        %v2800 = vpack.c.bf16 %v2714, %v2712
        %v2801 = vpack.c.bf16 %v2715, %v2713
        %v2802 = vpack.c.bf16 %v2718, %v2716
        %v2803 = vpack.c.bf16 %v2719, %v2717
        %v2804 = vpack.c.bf16 %v2722, %v2720
        %v2805 = vpack.c.bf16 %v2723, %v2721
        %v2806 = vpack.c.bf16 %v2726, %v2724
        %v2807 = vpack.c.bf16 %v2727, %v2725
        %v2808 = vpack.c.bf16 %v2730, %v2728
        %v2809 = vpack.c.bf16 %v2731, %v2729
        %v2810 = vpack.c.bf16 %v2734, %v2732
        %v2811 = vpack.c.bf16 %v2735, %v2733
        %v2812 = vpack.c.bf16 %v2738, %v2736
        %v2813 = vpack.c.bf16 %v2739, %v2737
        %v2814 = vpack.c.bf16 %v2742, %v2740
        %v2815 = vpack.c.bf16 %v2743, %v2741
        %v2816 = vpack.c.bf16 %v2746, %v2744
        %v2817 = vpack.c.bf16 %v2747, %v2745
        %v2818 = vpack.c.bf16 %v2750, %v2748
        %v2819 = vpack.c.bf16 %v2751, %v2749
        %v2820 = vpack.c.bf16 %v2754, %v2752
        %v2821 = vpack.c.bf16 %v2755, %v2753
        %v2822 = vpack.c.bf16 %v2758, %v2756
        %v2823 = vpack.c.bf16 %v2759, %v2757
        %v2824 = vld [vmem:[%s6] sm:$0xf]
        %v2825 = vld [vmem:[%s6 + $0x4] sm:$0xf]
        %v2826 = vld [vmem:[%s6 + $0x8] sm:$0xf]
        %v2827 = vld [vmem:[%s6 + $0xc] sm:$0xf]
        %v2828 = vld [vmem:[%s6 + $0x10] sm:$0xf]
        %v2829 = vld [vmem:[%s6 + $0x14] sm:$0xf]
        %v2830 = vld [vmem:[%s6 + $0x18] sm:$0xf]
        %v2831 = vld [vmem:[%s6 + $0x1c] sm:$0xf]
        %v2832 = vld [vmem:[%s6 + $0x20] sm:$0xf]
        %v2833 = vld [vmem:[%s6 + $0x24] sm:$0xf]
        %v2834 = vld [vmem:[%s6 + $0x28] sm:$0xf]
        %v2835 = vld [vmem:[%s6 + $0x2c] sm:$0xf]
        %v2836 = vld [vmem:[%s6 + $0x30] sm:$0xf]
        %v2837 = vld [vmem:[%s6 + $0x34] sm:$0xf]
        %v2838 = vld [vmem:[%s6 + $0x38] sm:$0xf]
        %v2839 = vld [vmem:[%s6 + $0x3c] sm:$0xf]
        %v2840 = vld [vmem:[%s6 + $0x40] sm:$0xf]
        %v2841 = vld [vmem:[%s6 + $0x44] sm:$0xf]
        %v2842 = vld [vmem:[%s6 + $0x48] sm:$0xf]
        %v2843 = vld [vmem:[%s6 + $0x4c] sm:$0xf]
        %v2844 = vld [vmem:[%s6 + $0x50] sm:$0xf]
        %v2845 = vld [vmem:[%s6 + $0x54] sm:$0xf]
        %v2846 = vld [vmem:[%s6 + $0x58] sm:$0xf]
        %v2847 = vld [vmem:[%s6 + $0x5c] sm:$0xf]
        %v2848 = vld [vmem:[%s6 + $0x60] sm:$0xf]
        %v2849 = vld [vmem:[%s6 + $0x64] sm:$0xf]
        %v2850 = vld [vmem:[%s6 + $0x68] sm:$0xf]
        %v2851 = vld [vmem:[%s6 + $0x6c] sm:$0xf]
        %v2852 = vld [vmem:[%s6 + $0x70] sm:$0xf]
        %v2853 = vld [vmem:[%s6 + $0x74] sm:$0xf]
        %v2854 = vld [vmem:[%s6 + $0x78] sm:$0xf]
        %v2855 = vld [vmem:[%s6 + $0x7c] sm:$0xf]
        %v2856 = vld [vmem:[%s7] sm:$0x1]
        %v2858 = vlaneseq
        %v2859 = vshrl.u32 %v2858, 7
        %v2860 = vsub.s32 0, %v2859
        %v2861 = vrot.slane %v2856, %v2860
        %v2895 = vunpack.c.l.b16 %v2824
        %v2896 = vunpack.c.l.b16 %v2825
        %v2897 = vunpack.c.l.b16 %v2826
        %v2898 = vunpack.c.l.b16 %v2827
        %v2899 = vunpack.c.l.b16 %v2828
        %v2900 = vunpack.c.l.b16 %v2829
        %v2901 = vunpack.c.l.b16 %v2830
        %v2902 = vunpack.c.l.b16 %v2831
        %v2903 = vunpack.c.l.b16 %v2832
        %v2904 = vunpack.c.l.b16 %v2833
        %v2905 = vunpack.c.l.b16 %v2834
        %v2906 = vunpack.c.l.b16 %v2835
        %v2907 = vunpack.c.l.b16 %v2836
        %v2908 = vunpack.c.l.b16 %v2837
        %v2909 = vunpack.c.l.b16 %v2838
        %v2910 = vunpack.c.l.b16 %v2839
        %v2911 = vunpack.c.l.b16 %v2840
        %v2912 = vunpack.c.l.b16 %v2841
        %v2913 = vunpack.c.l.b16 %v2842
        %v2914 = vunpack.c.l.b16 %v2843
        %v2915 = vunpack.c.l.b16 %v2844
        %v2916 = vunpack.c.l.b16 %v2845
        %v2917 = vunpack.c.l.b16 %v2846
        %v2918 = vunpack.c.l.b16 %v2847
        %v2919 = vunpack.c.l.b16 %v2848
        %v2920 = vunpack.c.l.b16 %v2849
        %v2921 = vunpack.c.l.b16 %v2850
        %v2922 = vunpack.c.l.b16 %v2851
        %v2923 = vunpack.c.l.b16 %v2852
        %v2924 = vunpack.c.l.b16 %v2853
        %v2925 = vunpack.c.l.b16 %v2854
        %v2926 = vunpack.c.l.b16 %v2855
        %v2927 = vpack.c.b16 %v2896, %v2895
        %v2928 = vpack.c.b16 %v2898, %v2897
        %v2929 = vpack.c.b16 %v2900, %v2899
        %v2930 = vpack.c.b16 %v2902, %v2901
        %v2931 = vpack.c.b16 %v2904, %v2903
        %v2932 = vpack.c.b16 %v2906, %v2905
        %v2933 = vpack.c.b16 %v2908, %v2907
        %v2934 = vpack.c.b16 %v2910, %v2909
        %v2935 = vpack.c.b16 %v2912, %v2911
        %v2936 = vpack.c.b16 %v2914, %v2913
        %v2937 = vpack.c.b16 %v2916, %v2915
        %v2938 = vpack.c.b16 %v2918, %v2917
        %v2939 = vpack.c.b16 %v2920, %v2919
        %v2940 = vpack.c.b16 %v2922, %v2921
        %v2941 = vpack.c.b16 %v2924, %v2923
        %v2942 = vpack.c.b16 %v2926, %v2925
        %2959 = vmatprep.subr.bf16.mxu0 0
        %2960 = vmatpush1.bf16.msra.mxu0 %v2934
        %2961 = vmatprep.subr.bf16.mxu0 0
        %2962 = vmatpush1.bf16.msra.mxu0 %v2933
        %2963 = vmatprep.subr.bf16.mxu0 0
        %2964 = vmatpush1.bf16.msra.mxu0 %v2932
        %2965 = vmatprep.subr.bf16.mxu0 0
        %2966 = vmatpush1.bf16.msra.mxu0 %v2931
        %2967 = vmatprep.subr.bf16.mxu0 0
        %2968 = vmatpush1.bf16.msra.mxu0 %v2930
        %2969 = vmatprep.subr.bf16.mxu0 0
        %2970 = vmatpush1.bf16.msra.mxu0 %v2929
        %2971 = vmatprep.subr.bf16.mxu0 0
        %2972 = vmatpush1.bf16.msra.mxu0 %v2928
        %2973 = vmatprep.subr.bf16.mxu0 0
        %2974 = vmatpush1.bf16.msra.mxu0 %v2927
        %2975 = vmatprep.subr.bf16.mxu0 0
        %2976 = vmatpush2.bf16.msra.mxu0 %v2942
        %2977 = vmatprep.subr.bf16.mxu0 0
        %2978 = vmatpush2.bf16.msra.mxu0 %v2941
        %2979 = vmatprep.subr.bf16.mxu0 0
        %2980 = vmatpush2.bf16.msra.mxu0 %v2940
        %2981 = vmatprep.subr.bf16.mxu0 0
        %2982 = vmatpush2.bf16.msra.mxu0 %v2939
        %2983 = vmatprep.subr.bf16.mxu0 0
        %2984 = vmatpush2.bf16.msra.mxu0 %v2938
        %2985 = vmatprep.subr.bf16.mxu0 0
        %2986 = vmatpush2.bf16.msra.mxu0 %v2937
        %2987 = vmatprep.subr.bf16.mxu0 0
        %2988 = vmatpush2.bf16.msra.mxu0 %v2936
        %2989 = vmatprep.subr.bf16.mxu0 0
        %2990 = vmatpush2.bf16.msra.mxu0 %v2935
        %2991 = vmatprep.mubr.bf16.mxu0 %v2761
        %2992 = vmatmul.mubr.bf16.gmra.mxu0 %v2760
        %v2993 = vpop.f32.mrf.mxu0
        %v2994 = vadd.f32 %v2861, %v2993
        %v2995 = vpop.f32.mrf.mxu0
        %v2996 = vpop.f32.mrf.mxu0
        %v2997 = vadd.f32 %v2861, %v2996
        %v2998 = vpop.f32.mrf.mxu0
        %2999 = vmatprep.mubr.bf16.mxu0 %v2763
        %3000 = vmatmul.mubr.bf16.gmra.mxu0 %v2762
        %v3001 = vpop.f32.mrf.mxu0
        %v3002 = vadd.f32 %v2861, %v3001
        %v3003 = vpop.f32.mrf.mxu0
        %v3004 = vpop.f32.mrf.mxu0
        %v3005 = vadd.f32 %v2861, %v3004
        %v3006 = vpop.f32.mrf.mxu0
        %3007 = vmatprep.mubr.bf16.mxu0 %v2765
        %3008 = vmatmul.mubr.bf16.gmra.mxu0 %v2764
        %v3009 = vpop.f32.mrf.mxu0
        %v3010 = vadd.f32 %v2861, %v3009
        %v3011 = vpop.f32.mrf.mxu0
        %v3012 = vpop.f32.mrf.mxu0
        %v3013 = vadd.f32 %v2861, %v3012
        %v3014 = vpop.f32.mrf.mxu0
        %3015 = vmatprep.mubr.bf16.mxu0 %v2767
        %3016 = vmatmul.mubr.bf16.gmra.mxu0 %v2766
        %v3017 = vpop.f32.mrf.mxu0
        %v3018 = vadd.f32 %v2861, %v3017
        %v3019 = vpop.f32.mrf.mxu0
        %v3020 = vpop.f32.mrf.mxu0
        %v3021 = vadd.f32 %v2861, %v3020
        %v3022 = vpop.f32.mrf.mxu0
        %3023 = vmatprep.mubr.bf16.mxu0 %v2769
        %3024 = vmatmul.mubr.bf16.gmra.mxu0 %v2768
        %v3025 = vpop.f32.mrf.mxu0
        %v3026 = vadd.f32 %v2861, %v3025
        %v3027 = vpop.f32.mrf.mxu0
        %v3028 = vpop.f32.mrf.mxu0
        %v3029 = vadd.f32 %v2861, %v3028
        %v3030 = vpop.f32.mrf.mxu0
        %3031 = vmatprep.mubr.bf16.mxu0 %v2771
        %3032 = vmatmul.mubr.bf16.gmra.mxu0 %v2770
        %v3033 = vpop.f32.mrf.mxu0
        %v3034 = vadd.f32 %v2861, %v3033
        %v3035 = vpop.f32.mrf.mxu0
        %v3036 = vpop.f32.mrf.mxu0
        %v3037 = vadd.f32 %v2861, %v3036
        %v3038 = vpop.f32.mrf.mxu0
        %3039 = vmatprep.mubr.bf16.mxu0 %v2773
        %3040 = vmatmul.mubr.bf16.gmra.mxu0 %v2772
        %v3041 = vpop.f32.mrf.mxu0
        %v3042 = vadd.f32 %v2861, %v3041
        %v3043 = vpop.f32.mrf.mxu0
        %v3044 = vpop.f32.mrf.mxu0
        %v3045 = vadd.f32 %v2861, %v3044
        %v3046 = vpop.f32.mrf.mxu0
        %3047 = vmatprep.mubr.bf16.mxu0 %v2775
        %3048 = vmatmul.mubr.bf16.gmra.mxu0 %v2774
        %v3049 = vpop.f32.mrf.mxu0
        %v3050 = vadd.f32 %v2861, %v3049
        %v3051 = vpop.f32.mrf.mxu0
        %v3052 = vpop.f32.mrf.mxu0
        %v3053 = vadd.f32 %v2861, %v3052
        %v3054 = vpop.f32.mrf.mxu0
        %3055 = vmatprep.mubr.bf16.mxu0 %v2777
        %3056 = vmatmul.mubr.bf16.gmra.mxu0 %v2776
        %v3057 = vpop.f32.mrf.mxu0
        %v3058 = vadd.f32 %v2861, %v3057
        %v3059 = vpop.f32.mrf.mxu0
        %v3060 = vpop.f32.mrf.mxu0
        %v3061 = vadd.f32 %v2861, %v3060
        %v3062 = vpop.f32.mrf.mxu0
        %3063 = vmatprep.mubr.bf16.mxu0 %v2779
        %3064 = vmatmul.mubr.bf16.gmra.mxu0 %v2778
        %v3065 = vpop.f32.mrf.mxu0
        %v3066 = vadd.f32 %v2861, %v3065
        %v3067 = vpop.f32.mrf.mxu0
        %v3068 = vpop.f32.mrf.mxu0
        %v3069 = vadd.f32 %v2861, %v3068
        %v3070 = vpop.f32.mrf.mxu0
        %3071 = vmatprep.mubr.bf16.mxu0 %v2781
        %3072 = vmatmul.mubr.bf16.gmra.mxu0 %v2780
        %v3073 = vpop.f32.mrf.mxu0
        %v3074 = vadd.f32 %v2861, %v3073
        %v3075 = vpop.f32.mrf.mxu0
        %v3076 = vpop.f32.mrf.mxu0
        %v3077 = vadd.f32 %v2861, %v3076
        %v3078 = vpop.f32.mrf.mxu0
        %3079 = vmatprep.mubr.bf16.mxu0 %v2783
        %3080 = vmatmul.mubr.bf16.gmra.mxu0 %v2782
        %v3081 = vpop.f32.mrf.mxu0
        %v3082 = vadd.f32 %v2861, %v3081
        %v3083 = vpop.f32.mrf.mxu0
        %v3084 = vpop.f32.mrf.mxu0
        %v3085 = vadd.f32 %v2861, %v3084
        %v3086 = vpop.f32.mrf.mxu0
        %3087 = vmatprep.mubr.bf16.mxu0 %v2785
        %3088 = vmatmul.mubr.bf16.gmra.mxu0 %v2784
        %v3089 = vpop.f32.mrf.mxu0
        %v3090 = vadd.f32 %v2861, %v3089
        %v3091 = vpop.f32.mrf.mxu0
        %v3092 = vpop.f32.mrf.mxu0
        %v3093 = vadd.f32 %v2861, %v3092
        %v3094 = vpop.f32.mrf.mxu0
        %3095 = vmatprep.mubr.bf16.mxu0 %v2787
        %3096 = vmatmul.mubr.bf16.gmra.mxu0 %v2786
        %v3097 = vpop.f32.mrf.mxu0
        %v3098 = vadd.f32 %v2861, %v3097
        %v3099 = vpop.f32.mrf.mxu0
        %v3100 = vpop.f32.mrf.mxu0
        %v3101 = vadd.f32 %v2861, %v3100
        %v3102 = vpop.f32.mrf.mxu0
        %3103 = vmatprep.mubr.bf16.mxu0 %v2789
        %3104 = vmatmul.mubr.bf16.gmra.mxu0 %v2788
        %v3105 = vpop.f32.mrf.mxu0
        %v3106 = vadd.f32 %v2861, %v3105
        %v3107 = vpop.f32.mrf.mxu0
        %v3108 = vpop.f32.mrf.mxu0
        %v3109 = vadd.f32 %v2861, %v3108
        %v3110 = vpop.f32.mrf.mxu0
        %3111 = vmatprep.mubr.bf16.mxu0 %v2791
        %3112 = vmatmul.mubr.bf16.gmra.mxu0 %v2790
        %v3113 = vpop.f32.mrf.mxu0
        %v3114 = vadd.f32 %v2861, %v3113
        %v3115 = vpop.f32.mrf.mxu0
        %v3116 = vpop.f32.mrf.mxu0
        %v3117 = vadd.f32 %v2861, %v3116
        %v3118 = vpop.f32.mrf.mxu0
        %3119 = vmatprep.mubr.bf16.mxu0 %v2793
        %3120 = vmatmul.mubr.bf16.gmra.mxu0 %v2792
        %v3121 = vpop.f32.mrf.mxu0
        %v3122 = vadd.f32 %v2861, %v3121
        %v3123 = vpop.f32.mrf.mxu0
        %v3124 = vpop.f32.mrf.mxu0
        %v3125 = vadd.f32 %v2861, %v3124
        %v3126 = vpop.f32.mrf.mxu0
        %3127 = vmatprep.mubr.bf16.mxu0 %v2795
        %3128 = vmatmul.mubr.bf16.gmra.mxu0 %v2794
        %v3129 = vpop.f32.mrf.mxu0
        %v3130 = vadd.f32 %v2861, %v3129
        %v3131 = vpop.f32.mrf.mxu0
        %v3132 = vpop.f32.mrf.mxu0
        %v3133 = vadd.f32 %v2861, %v3132
        %v3134 = vpop.f32.mrf.mxu0
        %3135 = vmatprep.mubr.bf16.mxu0 %v2797
        %3136 = vmatmul.mubr.bf16.gmra.mxu0 %v2796
        %v3137 = vpop.f32.mrf.mxu0
        %v3138 = vadd.f32 %v2861, %v3137
        %v3139 = vpop.f32.mrf.mxu0
        %v3140 = vpop.f32.mrf.mxu0
        %v3141 = vadd.f32 %v2861, %v3140
        %v3142 = vpop.f32.mrf.mxu0
        %3143 = vmatprep.mubr.bf16.mxu0 %v2799
        %3144 = vmatmul.mubr.bf16.gmra.mxu0 %v2798
        %v3145 = vpop.f32.mrf.mxu0
        %v3146 = vadd.f32 %v2861, %v3145
        %v3147 = vpop.f32.mrf.mxu0
        %v3148 = vpop.f32.mrf.mxu0
        %v3149 = vadd.f32 %v2861, %v3148
        %v3150 = vpop.f32.mrf.mxu0
        %3151 = vmatprep.mubr.bf16.mxu0 %v2801
        %3152 = vmatmul.mubr.bf16.gmra.mxu0 %v2800
        %v3153 = vpop.f32.mrf.mxu0
        %v3154 = vadd.f32 %v2861, %v3153
        %v3155 = vpop.f32.mrf.mxu0
        %v3156 = vpop.f32.mrf.mxu0
        %v3157 = vadd.f32 %v2861, %v3156
        %v3158 = vpop.f32.mrf.mxu0
        %3159 = vmatprep.mubr.bf16.mxu0 %v2803
        %3160 = vmatmul.mubr.bf16.gmra.mxu0 %v2802
        %v3161 = vpop.f32.mrf.mxu0
        %v3162 = vadd.f32 %v2861, %v3161
        %v3163 = vpop.f32.mrf.mxu0
        %v3164 = vpop.f32.mrf.mxu0
        %v3165 = vadd.f32 %v2861, %v3164
        %v3166 = vpop.f32.mrf.mxu0
        %3167 = vmatprep.mubr.bf16.mxu0 %v2805
        %3168 = vmatmul.mubr.bf16.gmra.mxu0 %v2804
        %v3169 = vpop.f32.mrf.mxu0
        %v3170 = vadd.f32 %v2861, %v3169
        %v3171 = vpop.f32.mrf.mxu0
        %v3172 = vpop.f32.mrf.mxu0
        %v3173 = vadd.f32 %v2861, %v3172
        %v3174 = vpop.f32.mrf.mxu0
        %3175 = vmatprep.mubr.bf16.mxu0 %v2807
        %3176 = vmatmul.mubr.bf16.gmra.mxu0 %v2806
        %v3177 = vpop.f32.mrf.mxu0
        %v3178 = vadd.f32 %v2861, %v3177
        %v3179 = vpop.f32.mrf.mxu0
        %v3180 = vpop.f32.mrf.mxu0
        %v3181 = vadd.f32 %v2861, %v3180
        %v3182 = vpop.f32.mrf.mxu0
        %3183 = vmatprep.mubr.bf16.mxu0 %v2809
        %3184 = vmatmul.mubr.bf16.gmra.mxu0 %v2808
        %v3185 = vpop.f32.mrf.mxu0
        %v3186 = vadd.f32 %v2861, %v3185
        %v3187 = vpop.f32.mrf.mxu0
        %v3188 = vpop.f32.mrf.mxu0
        %v3189 = vadd.f32 %v2861, %v3188
        %v3190 = vpop.f32.mrf.mxu0
        %3191 = vmatprep.mubr.bf16.mxu0 %v2811
        %3192 = vmatmul.mubr.bf16.gmra.mxu0 %v2810
        %v3193 = vpop.f32.mrf.mxu0
        %v3194 = vadd.f32 %v2861, %v3193
        %v3195 = vpop.f32.mrf.mxu0
        %v3196 = vpop.f32.mrf.mxu0
        %v3197 = vadd.f32 %v2861, %v3196
        %v3198 = vpop.f32.mrf.mxu0
        %3199 = vmatprep.mubr.bf16.mxu0 %v2813
        %3200 = vmatmul.mubr.bf16.gmra.mxu0 %v2812
        %v3201 = vpop.f32.mrf.mxu0
        %v3202 = vadd.f32 %v2861, %v3201
        %v3203 = vpop.f32.mrf.mxu0
        %v3204 = vpop.f32.mrf.mxu0
        %v3205 = vadd.f32 %v2861, %v3204
        %v3206 = vpop.f32.mrf.mxu0
        %3207 = vmatprep.mubr.bf16.mxu0 %v2815
        %3208 = vmatmul.mubr.bf16.gmra.mxu0 %v2814
        %v3209 = vpop.f32.mrf.mxu0
        %v3210 = vadd.f32 %v2861, %v3209
        %v3211 = vpop.f32.mrf.mxu0
        %v3212 = vpop.f32.mrf.mxu0
        %v3213 = vadd.f32 %v2861, %v3212
        %v3214 = vpop.f32.mrf.mxu0
        %3215 = vmatprep.mubr.bf16.mxu0 %v2817
        %3216 = vmatmul.mubr.bf16.gmra.mxu0 %v2816
        %v3217 = vpop.f32.mrf.mxu0
        %v3218 = vadd.f32 %v2861, %v3217
        %v3219 = vpop.f32.mrf.mxu0
        %v3220 = vpop.f32.mrf.mxu0
        %v3221 = vadd.f32 %v2861, %v3220
        %v3222 = vpop.f32.mrf.mxu0
        %3223 = vmatprep.mubr.bf16.mxu0 %v2819
        %3224 = vmatmul.mubr.bf16.gmra.mxu0 %v2818
        %v3225 = vpop.f32.mrf.mxu0
        %v3226 = vadd.f32 %v2861, %v3225
        %v3227 = vpop.f32.mrf.mxu0
        %v3228 = vpop.f32.mrf.mxu0
        %v3229 = vadd.f32 %v2861, %v3228
        %v3230 = vpop.f32.mrf.mxu0
        %3231 = vmatprep.mubr.bf16.mxu0 %v2821
        %3232 = vmatmul.mubr.bf16.gmra.mxu0 %v2820
        %v3233 = vpop.f32.mrf.mxu0
        %v3234 = vadd.f32 %v2861, %v3233
        %v3235 = vpop.f32.mrf.mxu0
        %v3236 = vpop.f32.mrf.mxu0
        %v3237 = vadd.f32 %v2861, %v3236
        %v3238 = vpop.f32.mrf.mxu0
        %3239 = vmatprep.mubr.bf16.mxu0 %v2823
        %3240 = vmatmul.mubr.bf16.gmra.mxu0 %v2822
        %v3241 = vpop.f32.mrf.mxu0
        %v3242 = vadd.f32 %v2861, %v3241
        %v3243 = vpop.f32.mrf.mxu0
        %v3244 = vpop.f32.mrf.mxu0
        %v3245 = vadd.f32 %v2861, %v3244
        %v3246 = vpop.f32.mrf.mxu0
        %3247 = vdwg.mxu0
        %v3248 = vmax.f32 %v2994, 0.0
        %v3249 = vmax.f32 %v2997, 0.0
        %v3250 = vmax.f32 %v3002, 0.0
        %v3251 = vmax.f32 %v3005, 0.0
        %v3252 = vmax.f32 %v3010, 0.0
        %v3253 = vmax.f32 %v3013, 0.0
        %v3254 = vmax.f32 %v3018, 0.0
        %v3255 = vmax.f32 %v3021, 0.0
        %v3256 = vmax.f32 %v3026, 0.0
        %v3257 = vmax.f32 %v3029, 0.0
        %v3258 = vmax.f32 %v3034, 0.0
        %v3259 = vmax.f32 %v3037, 0.0
        %v3260 = vmax.f32 %v3042, 0.0
        %v3261 = vmax.f32 %v3045, 0.0
        %v3262 = vmax.f32 %v3050, 0.0
        %v3263 = vmax.f32 %v3053, 0.0
        %v3264 = vmax.f32 %v3058, 0.0
        %v3265 = vmax.f32 %v3061, 0.0
        %v3266 = vmax.f32 %v3066, 0.0
        %v3267 = vmax.f32 %v3069, 0.0
        %v3268 = vmax.f32 %v3074, 0.0
        %v3269 = vmax.f32 %v3077, 0.0
        %v3270 = vmax.f32 %v3082, 0.0
        %v3271 = vmax.f32 %v3085, 0.0
        %v3272 = vmax.f32 %v3090, 0.0
        %v3273 = vmax.f32 %v3093, 0.0
        %v3274 = vmax.f32 %v3098, 0.0
        %v3275 = vmax.f32 %v3101, 0.0
        %v3276 = vmax.f32 %v3106, 0.0
        %v3277 = vmax.f32 %v3109, 0.0
        %v3278 = vmax.f32 %v3114, 0.0
        %v3279 = vmax.f32 %v3117, 0.0
        %v3280 = vmax.f32 %v3122, 0.0
        %v3281 = vmax.f32 %v3125, 0.0
        %v3282 = vmax.f32 %v3130, 0.0
        %v3283 = vmax.f32 %v3133, 0.0
        %v3284 = vmax.f32 %v3138, 0.0
        %v3285 = vmax.f32 %v3141, 0.0
        %v3286 = vmax.f32 %v3146, 0.0
        %v3287 = vmax.f32 %v3149, 0.0
        %v3288 = vmax.f32 %v3154, 0.0
        %v3289 = vmax.f32 %v3157, 0.0
        %v3290 = vmax.f32 %v3162, 0.0
        %v3291 = vmax.f32 %v3165, 0.0
        %v3292 = vmax.f32 %v3170, 0.0
        %v3293 = vmax.f32 %v3173, 0.0
        %v3294 = vmax.f32 %v3178, 0.0
        %v3295 = vmax.f32 %v3181, 0.0
        %v3296 = vmax.f32 %v3186, 0.0
        %v3297 = vmax.f32 %v3189, 0.0
        %v3298 = vmax.f32 %v3194, 0.0
        %v3299 = vmax.f32 %v3197, 0.0
        %v3300 = vmax.f32 %v3202, 0.0
        %v3301 = vmax.f32 %v3205, 0.0
        %v3302 = vmax.f32 %v3210, 0.0
        %v3303 = vmax.f32 %v3213, 0.0
        %v3304 = vmax.f32 %v3218, 0.0
        %v3305 = vmax.f32 %v3221, 0.0
        %v3306 = vmax.f32 %v3226, 0.0
        %v3307 = vmax.f32 %v3229, 0.0
        %v3308 = vmax.f32 %v3234, 0.0
        %v3309 = vmax.f32 %v3237, 0.0
        %v3310 = vmax.f32 %v3242, 0.0
        %v3311 = vmax.f32 %v3245, 0.0
        %v3312 = vpack.c.bf16 %v3249, %v3248
        %v3313 = vpack.c.bf16 %v3251, %v3250
        %v3314 = vpack.c.bf16 %v3253, %v3252
        %v3315 = vpack.c.bf16 %v3255, %v3254
        %v3316 = vpack.c.bf16 %v3257, %v3256
        %v3317 = vpack.c.bf16 %v3259, %v3258
        %v3318 = vpack.c.bf16 %v3261, %v3260
        %v3319 = vpack.c.bf16 %v3263, %v3262
        %v3320 = vpack.c.bf16 %v3265, %v3264
        %v3321 = vpack.c.bf16 %v3267, %v3266
        %v3322 = vpack.c.bf16 %v3269, %v3268
        %v3323 = vpack.c.bf16 %v3271, %v3270
        %v3324 = vpack.c.bf16 %v3273, %v3272
        %v3325 = vpack.c.bf16 %v3275, %v3274
        %v3326 = vpack.c.bf16 %v3277, %v3276
        %v3327 = vpack.c.bf16 %v3279, %v3278
        %v3328 = vpack.c.bf16 %v3281, %v3280
        %v3329 = vpack.c.bf16 %v3283, %v3282
        %v3330 = vpack.c.bf16 %v3285, %v3284
        %v3331 = vpack.c.bf16 %v3287, %v3286
        %v3332 = vpack.c.bf16 %v3289, %v3288
        %v3333 = vpack.c.bf16 %v3291, %v3290
        %v3334 = vpack.c.bf16 %v3293, %v3292
        %v3335 = vpack.c.bf16 %v3295, %v3294
        %v3336 = vpack.c.bf16 %v3297, %v3296
        %v3337 = vpack.c.bf16 %v3299, %v3298
        %v3338 = vpack.c.bf16 %v3301, %v3300
        %v3339 = vpack.c.bf16 %v3303, %v3302
        %v3340 = vpack.c.bf16 %v3305, %v3304
        %v3341 = vpack.c.bf16 %v3307, %v3306
        %v3342 = vpack.c.bf16 %v3309, %v3308
        %v3343 = vpack.c.bf16 %v3311, %v3310
        %v3344 = vld [vmem:[%s8] sm:$0xf]
        %v3345 = vld [vmem:[%s8 + $0x4] sm:$0xf]
        %v3346 = vld [vmem:[%s8 + $0x8] sm:$0xf]
        %v3347 = vld [vmem:[%s8 + $0xc] sm:$0xf]
        %v3348 = vld [vmem:[%s8 + $0x10] sm:$0xf]
        %v3349 = vld [vmem:[%s8 + $0x14] sm:$0xf]
        %v3350 = vld [vmem:[%s8 + $0x18] sm:$0xf]
        %v3351 = vld [vmem:[%s8 + $0x1c] sm:$0xf]
        %v3352 = vld [vmem:[%s8 + $0x20] sm:$0xf]
        %v3353 = vld [vmem:[%s8 + $0x24] sm:$0xf]
        %v3354 = vld [vmem:[%s8 + $0x28] sm:$0xf]
        %v3355 = vld [vmem:[%s8 + $0x2c] sm:$0xf]
        %v3356 = vld [vmem:[%s8 + $0x30] sm:$0xf]
        %v3357 = vld [vmem:[%s8 + $0x34] sm:$0xf]
        %v3358 = vld [vmem:[%s8 + $0x38] sm:$0xf]
        %v3359 = vld [vmem:[%s8 + $0x3c] sm:$0xf]
        %v3360 = vld [vmem:[%s9] sm:$0x1]
        %v3362 = vlaneseq
        %v3363 = vshrl.u32 %v3362, 7
        %v3364 = vsub.s32 0, %v3363
        %v3365 = vrot.slane %v3360, %v3364
        %v3383 = vunpack.c.l.b16 %v3344
        %v3384 = vunpack.c.l.b16 %v3345
        %v3385 = vunpack.c.l.b16 %v3346
        %v3386 = vunpack.c.l.b16 %v3347
        %v3387 = vunpack.c.l.b16 %v3348
        %v3388 = vunpack.c.l.b16 %v3349
        %v3389 = vunpack.c.l.b16 %v3350
        %v3390 = vunpack.c.l.b16 %v3351
        %v3391 = vunpack.c.l.b16 %v3352
        %v3392 = vunpack.c.l.b16 %v3353
        %v3393 = vunpack.c.l.b16 %v3354
        %v3394 = vunpack.c.l.b16 %v3355
        %v3395 = vunpack.c.l.b16 %v3356
        %v3396 = vunpack.c.l.b16 %v3357
        %v3397 = vunpack.c.l.b16 %v3358
        %v3398 = vunpack.c.l.b16 %v3359
        %v3399 = vpack.c.b16 %v3384, %v3383
        %v3400 = vpack.c.b16 %v3386, %v3385
        %v3401 = vpack.c.b16 %v3388, %v3387
        %v3402 = vpack.c.b16 %v3390, %v3389
        %v3403 = vpack.c.b16 %v3392, %v3391
        %v3404 = vpack.c.b16 %v3394, %v3393
        %v3405 = vpack.c.b16 %v3396, %v3395
        %v3406 = vpack.c.b16 %v3398, %v3397
        %3415 = vmatprep.subr.bf16.mxu0 0
        %3416 = vmatpush1.bf16.msra.mxu0 %v3406
        %3417 = vmatprep.subr.bf16.mxu0 0
        %3418 = vmatpush1.bf16.msra.mxu0 %v3405
        %3419 = vmatprep.subr.bf16.mxu0 0
        %3420 = vmatpush1.bf16.msra.mxu0 %v3404
        %3421 = vmatprep.subr.bf16.mxu0 0
        %3422 = vmatpush1.bf16.msra.mxu0 %v3403
        %3423 = vmatprep.subr.bf16.mxu0 0
        %3424 = vmatpush1.bf16.msra.mxu0 %v3402
        %3425 = vmatprep.subr.bf16.mxu0 0
        %3426 = vmatpush1.bf16.msra.mxu0 %v3401
        %3427 = vmatprep.subr.bf16.mxu0 0
        %3428 = vmatpush1.bf16.msra.mxu0 %v3400
        %3429 = vmatprep.subr.bf16.mxu0 0
        %3430 = vmatpush1.bf16.msra.mxu0 %v3399
        %3431 = vmatprep.subr.bf16.mxu0 0
        %3432 = vmatpush2.bf16.msra.mxu0 0
        %3433 = vmatprep.subr.bf16.mxu0 0
        %3434 = vmatpush2.bf16.msra.mxu0 0
        %3435 = vmatprep.subr.bf16.mxu0 0
        %3436 = vmatpush2.bf16.msra.mxu0 0
        %3437 = vmatprep.subr.bf16.mxu0 0
        %3438 = vmatpush2.bf16.msra.mxu0 0
        %3439 = vmatprep.subr.bf16.mxu0 0
        %3440 = vmatpush2.bf16.msra.mxu0 0
        %3441 = vmatprep.subr.bf16.mxu0 0
        %3442 = vmatpush2.bf16.msra.mxu0 0
        %3443 = vmatprep.subr.bf16.mxu0 0
        %3444 = vmatpush2.bf16.msra.mxu0 0
        %3445 = vmatprep.subr.bf16.mxu0 0
        %3446 = vmatpush2.bf16.msra.mxu0 0
        %3447 = vmatprep.mubr.bf16.mxu0 0
        %3448 = vmatmul.mubr.bf16.gmra.mxu0 %v3312
        %v3449 = vpop.f32.mrf.mxu0
        %v3450 = vadd.f32 %v3365, %v3449
        %v3451 = vpop.f32.mrf.mxu0
        %v3452 = vpop.f32.mrf.mxu0
        %v3453 = vadd.f32 %v3365, %v3452
        %v3454 = vpop.f32.mrf.mxu0
        %3455 = vmatprep.mubr.bf16.mxu0 0
        %3456 = vmatmul.mubr.bf16.gmra.mxu0 %v3313
        %v3457 = vpop.f32.mrf.mxu0
        %v3458 = vadd.f32 %v3365, %v3457
        %v3459 = vpop.f32.mrf.mxu0
        %v3460 = vpop.f32.mrf.mxu0
        %v3461 = vadd.f32 %v3365, %v3460
        %v3462 = vpop.f32.mrf.mxu0
        %3463 = vmatprep.mubr.bf16.mxu0 0
        %3464 = vmatmul.mubr.bf16.gmra.mxu0 %v3314
        %v3465 = vpop.f32.mrf.mxu0
        %v3466 = vadd.f32 %v3365, %v3465
        %v3467 = vpop.f32.mrf.mxu0
        %v3468 = vpop.f32.mrf.mxu0
        %v3469 = vadd.f32 %v3365, %v3468
        %v3470 = vpop.f32.mrf.mxu0
        %3471 = vmatprep.mubr.bf16.mxu0 0
        %3472 = vmatmul.mubr.bf16.gmra.mxu0 %v3315
        %v3473 = vpop.f32.mrf.mxu0
        %v3474 = vadd.f32 %v3365, %v3473
        %v3475 = vpop.f32.mrf.mxu0
        %v3476 = vpop.f32.mrf.mxu0
        %v3477 = vadd.f32 %v3365, %v3476
        %v3478 = vpop.f32.mrf.mxu0
        %3479 = vmatprep.mubr.bf16.mxu0 0
        %3480 = vmatmul.mubr.bf16.gmra.mxu0 %v3316
        %v3481 = vpop.f32.mrf.mxu0
        %v3482 = vadd.f32 %v3365, %v3481
        %v3483 = vpop.f32.mrf.mxu0
        %v3484 = vpop.f32.mrf.mxu0
        %v3485 = vadd.f32 %v3365, %v3484
        %v3486 = vpop.f32.mrf.mxu0
        %3487 = vmatprep.mubr.bf16.mxu0 0
        %3488 = vmatmul.mubr.bf16.gmra.mxu0 %v3317
        %v3489 = vpop.f32.mrf.mxu0
        %v3490 = vadd.f32 %v3365, %v3489
        %v3491 = vpop.f32.mrf.mxu0
        %v3492 = vpop.f32.mrf.mxu0
        %v3493 = vadd.f32 %v3365, %v3492
        %v3494 = vpop.f32.mrf.mxu0
        %3495 = vmatprep.mubr.bf16.mxu0 0
        %3496 = vmatmul.mubr.bf16.gmra.mxu0 %v3318
        %v3497 = vpop.f32.mrf.mxu0
        %v3498 = vadd.f32 %v3365, %v3497
        %v3499 = vpop.f32.mrf.mxu0
        %v3500 = vpop.f32.mrf.mxu0
        %v3501 = vadd.f32 %v3365, %v3500
        %v3502 = vpop.f32.mrf.mxu0
        %3503 = vmatprep.mubr.bf16.mxu0 0
        %3504 = vmatmul.mubr.bf16.gmra.mxu0 %v3319
        %v3505 = vpop.f32.mrf.mxu0
        %v3506 = vadd.f32 %v3365, %v3505
        %v3507 = vpop.f32.mrf.mxu0
        %v3508 = vpop.f32.mrf.mxu0
        %v3509 = vadd.f32 %v3365, %v3508
        %v3510 = vpop.f32.mrf.mxu0
        %3511 = vmatprep.mubr.bf16.mxu0 0
        %3512 = vmatmul.mubr.bf16.gmra.mxu0 %v3320
        %v3513 = vpop.f32.mrf.mxu0
        %v3514 = vadd.f32 %v3365, %v3513
        %v3515 = vpop.f32.mrf.mxu0
        %v3516 = vpop.f32.mrf.mxu0
        %v3517 = vadd.f32 %v3365, %v3516
        %v3518 = vpop.f32.mrf.mxu0
        %3519 = vmatprep.mubr.bf16.mxu0 0
        %3520 = vmatmul.mubr.bf16.gmra.mxu0 %v3321
        %v3521 = vpop.f32.mrf.mxu0
        %v3522 = vadd.f32 %v3365, %v3521
        %v3523 = vpop.f32.mrf.mxu0
        %v3524 = vpop.f32.mrf.mxu0
        %v3525 = vadd.f32 %v3365, %v3524
        %v3526 = vpop.f32.mrf.mxu0
        %3527 = vmatprep.mubr.bf16.mxu0 0
        %3528 = vmatmul.mubr.bf16.gmra.mxu0 %v3322
        %v3529 = vpop.f32.mrf.mxu0
        %v3530 = vadd.f32 %v3365, %v3529
        %v3531 = vpop.f32.mrf.mxu0
        %v3532 = vpop.f32.mrf.mxu0
        %v3533 = vadd.f32 %v3365, %v3532
        %v3534 = vpop.f32.mrf.mxu0
        %3535 = vmatprep.mubr.bf16.mxu0 0
        %3536 = vmatmul.mubr.bf16.gmra.mxu0 %v3323
        %v3537 = vpop.f32.mrf.mxu0
        %v3538 = vadd.f32 %v3365, %v3537
        %v3539 = vpop.f32.mrf.mxu0
        %v3540 = vpop.f32.mrf.mxu0
        %v3541 = vadd.f32 %v3365, %v3540
        %v3542 = vpop.f32.mrf.mxu0
        %3543 = vmatprep.mubr.bf16.mxu0 0
        %3544 = vmatmul.mubr.bf16.gmra.mxu0 %v3324
        %v3545 = vpop.f32.mrf.mxu0
        %v3546 = vadd.f32 %v3365, %v3545
        %v3547 = vpop.f32.mrf.mxu0
        %v3548 = vpop.f32.mrf.mxu0
        %v3549 = vadd.f32 %v3365, %v3548
        %v3550 = vpop.f32.mrf.mxu0
        %3551 = vmatprep.mubr.bf16.mxu0 0
        %3552 = vmatmul.mubr.bf16.gmra.mxu0 %v3325
        %v3553 = vpop.f32.mrf.mxu0
        %v3554 = vadd.f32 %v3365, %v3553
        %v3555 = vpop.f32.mrf.mxu0
        %v3556 = vpop.f32.mrf.mxu0
        %v3557 = vadd.f32 %v3365, %v3556
        %v3558 = vpop.f32.mrf.mxu0
        %3559 = vmatprep.mubr.bf16.mxu0 0
        %3560 = vmatmul.mubr.bf16.gmra.mxu0 %v3326
        %v3561 = vpop.f32.mrf.mxu0
        %v3562 = vadd.f32 %v3365, %v3561
        %v3563 = vpop.f32.mrf.mxu0
        %v3564 = vpop.f32.mrf.mxu0
        %v3565 = vadd.f32 %v3365, %v3564
        %v3566 = vpop.f32.mrf.mxu0
        %3567 = vmatprep.mubr.bf16.mxu0 0
        %3568 = vmatmul.mubr.bf16.gmra.mxu0 %v3327
        %v3569 = vpop.f32.mrf.mxu0
        %v3570 = vadd.f32 %v3365, %v3569
        %v3571 = vpop.f32.mrf.mxu0
        %v3572 = vpop.f32.mrf.mxu0
        %v3573 = vadd.f32 %v3365, %v3572
        %v3574 = vpop.f32.mrf.mxu0
        %3575 = vmatprep.mubr.bf16.mxu0 0
        %3576 = vmatmul.mubr.bf16.gmra.mxu0 %v3328
        %v3577 = vpop.f32.mrf.mxu0
        %v3578 = vadd.f32 %v3365, %v3577
        %v3579 = vpop.f32.mrf.mxu0
        %v3580 = vpop.f32.mrf.mxu0
        %v3581 = vadd.f32 %v3365, %v3580
        %v3582 = vpop.f32.mrf.mxu0
        %3583 = vmatprep.mubr.bf16.mxu0 0
        %3584 = vmatmul.mubr.bf16.gmra.mxu0 %v3329
        %v3585 = vpop.f32.mrf.mxu0
        %v3586 = vadd.f32 %v3365, %v3585
        %v3587 = vpop.f32.mrf.mxu0
        %v3588 = vpop.f32.mrf.mxu0
        %v3589 = vadd.f32 %v3365, %v3588
        %v3590 = vpop.f32.mrf.mxu0
        %3591 = vmatprep.mubr.bf16.mxu0 0
        %3592 = vmatmul.mubr.bf16.gmra.mxu0 %v3330
        %v3593 = vpop.f32.mrf.mxu0
        %v3594 = vadd.f32 %v3365, %v3593
        %v3595 = vpop.f32.mrf.mxu0
        %v3596 = vpop.f32.mrf.mxu0
        %v3597 = vadd.f32 %v3365, %v3596
        %v3598 = vpop.f32.mrf.mxu0
        %3599 = vmatprep.mubr.bf16.mxu0 0
        %3600 = vmatmul.mubr.bf16.gmra.mxu0 %v3331
        %v3601 = vpop.f32.mrf.mxu0
        %v3602 = vadd.f32 %v3365, %v3601
        %v3603 = vpop.f32.mrf.mxu0
        %v3604 = vpop.f32.mrf.mxu0
        %v3605 = vadd.f32 %v3365, %v3604
        %v3606 = vpop.f32.mrf.mxu0
        %3607 = vmatprep.mubr.bf16.mxu0 0
        %3608 = vmatmul.mubr.bf16.gmra.mxu0 %v3332
        %v3609 = vpop.f32.mrf.mxu0
        %v3610 = vadd.f32 %v3365, %v3609
        %v3611 = vpop.f32.mrf.mxu0
        %v3612 = vpop.f32.mrf.mxu0
        %v3613 = vadd.f32 %v3365, %v3612
        %v3614 = vpop.f32.mrf.mxu0
        %3615 = vmatprep.mubr.bf16.mxu0 0
        %3616 = vmatmul.mubr.bf16.gmra.mxu0 %v3333
        %v3617 = vpop.f32.mrf.mxu0
        %v3618 = vadd.f32 %v3365, %v3617
        %v3619 = vpop.f32.mrf.mxu0
        %v3620 = vpop.f32.mrf.mxu0
        %v3621 = vadd.f32 %v3365, %v3620
        %v3622 = vpop.f32.mrf.mxu0
        %3623 = vmatprep.mubr.bf16.mxu0 0
        %3624 = vmatmul.mubr.bf16.gmra.mxu0 %v3334
        %v3625 = vpop.f32.mrf.mxu0
        %v3626 = vadd.f32 %v3365, %v3625
        %v3627 = vpop.f32.mrf.mxu0
        %v3628 = vpop.f32.mrf.mxu0
        %v3629 = vadd.f32 %v3365, %v3628
        %v3630 = vpop.f32.mrf.mxu0
        %3631 = vmatprep.mubr.bf16.mxu0 0
        %3632 = vmatmul.mubr.bf16.gmra.mxu0 %v3335
        %v3633 = vpop.f32.mrf.mxu0
        %v3634 = vadd.f32 %v3365, %v3633
        %v3635 = vpop.f32.mrf.mxu0
        %v3636 = vpop.f32.mrf.mxu0
        %v3637 = vadd.f32 %v3365, %v3636
        %v3638 = vpop.f32.mrf.mxu0
        %3639 = vmatprep.mubr.bf16.mxu0 0
        %3640 = vmatmul.mubr.bf16.gmra.mxu0 %v3336
        %v3641 = vpop.f32.mrf.mxu0
        %v3642 = vadd.f32 %v3365, %v3641
        %v3643 = vpop.f32.mrf.mxu0
        %v3644 = vpop.f32.mrf.mxu0
        %v3645 = vadd.f32 %v3365, %v3644
        %v3646 = vpop.f32.mrf.mxu0
        %3647 = vmatprep.mubr.bf16.mxu0 0
        %3648 = vmatmul.mubr.bf16.gmra.mxu0 %v3337
        %v3649 = vpop.f32.mrf.mxu0
        %v3650 = vadd.f32 %v3365, %v3649
        %v3651 = vpop.f32.mrf.mxu0
        %v3652 = vpop.f32.mrf.mxu0
        %v3653 = vadd.f32 %v3365, %v3652
        %v3654 = vpop.f32.mrf.mxu0
        %3655 = vmatprep.mubr.bf16.mxu0 0
        %3656 = vmatmul.mubr.bf16.gmra.mxu0 %v3338
        %v3657 = vpop.f32.mrf.mxu0
        %v3658 = vadd.f32 %v3365, %v3657
        %v3659 = vpop.f32.mrf.mxu0
        %v3660 = vpop.f32.mrf.mxu0
        %v3661 = vadd.f32 %v3365, %v3660
        %v3662 = vpop.f32.mrf.mxu0
        %3663 = vmatprep.mubr.bf16.mxu0 0
        %3664 = vmatmul.mubr.bf16.gmra.mxu0 %v3339
        %v3665 = vpop.f32.mrf.mxu0
        %v3666 = vadd.f32 %v3365, %v3665
        %v3667 = vpop.f32.mrf.mxu0
        %v3668 = vpop.f32.mrf.mxu0
        %v3669 = vadd.f32 %v3365, %v3668
        %v3670 = vpop.f32.mrf.mxu0
        %3671 = vmatprep.mubr.bf16.mxu0 0
        %3672 = vmatmul.mubr.bf16.gmra.mxu0 %v3340
        %v3673 = vpop.f32.mrf.mxu0
        %v3674 = vadd.f32 %v3365, %v3673
        %v3675 = vpop.f32.mrf.mxu0
        %v3676 = vpop.f32.mrf.mxu0
        %v3677 = vadd.f32 %v3365, %v3676
        %v3678 = vpop.f32.mrf.mxu0
        %3679 = vmatprep.mubr.bf16.mxu0 0
        %3680 = vmatmul.mubr.bf16.gmra.mxu0 %v3341
        %v3681 = vpop.f32.mrf.mxu0
        %v3682 = vadd.f32 %v3365, %v3681
        %v3683 = vpop.f32.mrf.mxu0
        %v3684 = vpop.f32.mrf.mxu0
        %v3685 = vadd.f32 %v3365, %v3684
        %v3686 = vpop.f32.mrf.mxu0
        %3687 = vmatprep.mubr.bf16.mxu0 0
        %3688 = vmatmul.mubr.bf16.gmra.mxu0 %v3342
        %v3689 = vpop.f32.mrf.mxu0
        %v3690 = vadd.f32 %v3365, %v3689
        %v3691 = vpop.f32.mrf.mxu0
        %v3692 = vpop.f32.mrf.mxu0
        %v3693 = vadd.f32 %v3365, %v3692
        %v3694 = vpop.f32.mrf.mxu0
        %3695 = vmatprep.mubr.bf16.mxu0 0
        %3696 = vmatmul.mubr.bf16.gmra.mxu0 %v3343
        %v3697 = vpop.f32.mrf.mxu0
        %v3698 = vadd.f32 %v3365, %v3697
        %v3699 = vpop.f32.mrf.mxu0
        %v3700 = vpop.f32.mrf.mxu0
        %v3701 = vadd.f32 %v3365, %v3700
        %v3702 = vpop.f32.mrf.mxu0
        %3703 = vdwg.mxu0
        %v3704 = vld [vmem:[%s380] sm:$0xff]
        %v3705 = vld [vmem:[%s380 + $0x8] sm:$0xff]
        %v3706 = vld [vmem:[%s380 + $0x10] sm:$0xff]
        %v3707 = vld [vmem:[%s380 + $0x18] sm:$0xff]
        %v3708 = vld [vmem:[%s380 + $0x20] sm:$0xff]
        %v3709 = vld [vmem:[%s380 + $0x28] sm:$0xff]
        %v3710 = vld [vmem:[%s380 + $0x30] sm:$0xff]
        %v3711 = vld [vmem:[%s380 + $0x38] sm:$0xff]
        %v3712 = vld [vmem:[%s380 + $0x40] sm:$0xff]
        %v3713 = vld [vmem:[%s380 + $0x48] sm:$0xff]
        %v3714 = vld [vmem:[%s380 + $0x50] sm:$0xff]
        %v3715 = vld [vmem:[%s380 + $0x58] sm:$0xff]
        %v3716 = vld [vmem:[%s380 + $0x60] sm:$0xff]
        %v3717 = vld [vmem:[%s380 + $0x68] sm:$0xff]
        %v3718 = vld [vmem:[%s380 + $0x70] sm:$0xff]
        %v3719 = vld [vmem:[%s380 + $0x78] sm:$0xff]
        %v3720 = vld [vmem:[%s380 + $0x80] sm:$0xff]
        %v3721 = vld [vmem:[%s380 + $0x88] sm:$0xff]
        %v3722 = vld [vmem:[%s380 + $0x90] sm:$0xff]
        %v3723 = vld [vmem:[%s380 + $0x98] sm:$0xff]
        %v3724 = vld [vmem:[%s380 + $0xa0] sm:$0xff]
        %v3725 = vld [vmem:[%s380 + $0xa8] sm:$0xff]
        %v3726 = vld [vmem:[%s380 + $0xb0] sm:$0xff]
        %v3727 = vld [vmem:[%s380 + $0xb8] sm:$0xff]
        %v3728 = vld [vmem:[%s380 + $0xc0] sm:$0xff]
        %v3729 = vld [vmem:[%s380 + $0xc8] sm:$0xff]
        %v3730 = vld [vmem:[%s380 + $0xd0] sm:$0xff]
        %v3731 = vld [vmem:[%s380 + $0xd8] sm:$0xff]
        %v3732 = vld [vmem:[%s380 + $0xe0] sm:$0xff]
        %v3733 = vld [vmem:[%s380 + $0xe8] sm:$0xff]
        %v3734 = vld [vmem:[%s380 + $0xf0] sm:$0xff]
        %v3735 = vld [vmem:[%s380 + $0xf8] sm:$0xff]
        %v3736 = vld [vmem:[%s380 + $0x100] sm:$0xff]
        %v3737 = vld [vmem:[%s380 + $0x108] sm:$0xff]
        %v3738 = vld [vmem:[%s380 + $0x110] sm:$0xff]
        %v3739 = vld [vmem:[%s380 + $0x118] sm:$0xff]
        %v3740 = vld [vmem:[%s380 + $0x120] sm:$0xff]
        %v3741 = vld [vmem:[%s380 + $0x128] sm:$0xff]
        %v3742 = vld [vmem:[%s380 + $0x130] sm:$0xff]
        %v3743 = vld [vmem:[%s380 + $0x138] sm:$0xff]
        %v3744 = vld [vmem:[%s380 + $0x140] sm:$0xff]
        %v3745 = vld [vmem:[%s380 + $0x148] sm:$0xff]
        %v3746 = vld [vmem:[%s380 + $0x150] sm:$0xff]
        %v3747 = vld [vmem:[%s380 + $0x158] sm:$0xff]
        %v3748 = vld [vmem:[%s380 + $0x160] sm:$0xff]
        %v3749 = vld [vmem:[%s380 + $0x168] sm:$0xff]
        %v3750 = vld [vmem:[%s380 + $0x170] sm:$0xff]
        %v3751 = vld [vmem:[%s380 + $0x178] sm:$0xff]
        %v3752 = vld [vmem:[%s380 + $0x180] sm:$0xff]
        %v3753 = vld [vmem:[%s380 + $0x188] sm:$0xff]
        %v3754 = vld [vmem:[%s380 + $0x190] sm:$0xff]
        %v3755 = vld [vmem:[%s380 + $0x198] sm:$0xff]
        %v3756 = vld [vmem:[%s380 + $0x1a0] sm:$0xff]
        %v3757 = vld [vmem:[%s380 + $0x1a8] sm:$0xff]
        %v3758 = vld [vmem:[%s380 + $0x1b0] sm:$0xff]
        %v3759 = vld [vmem:[%s380 + $0x1b8] sm:$0xff]
        %v3760 = vld [vmem:[%s380 + $0x1c0] sm:$0xff]
        %v3761 = vld [vmem:[%s380 + $0x1c8] sm:$0xff]
        %v3762 = vld [vmem:[%s380 + $0x1d0] sm:$0xff]
        %v3763 = vld [vmem:[%s380 + $0x1d8] sm:$0xff]
        %v3764 = vld [vmem:[%s380 + $0x1e0] sm:$0xff]
        %v3765 = vld [vmem:[%s380 + $0x1e8] sm:$0xff]
        %v3766 = vld [vmem:[%s380 + $0x1f0] sm:$0xff]
        %v3767 = vld [vmem:[%s380 + $0x1f8] sm:$0xff]
        %3769 = vset.pattern.permute.xlu0 0
        %3770 = vperm.xlu0 %3769, %v3704
        %v3771 = vpop.permute.xlu0 %3770
        %3774 = vset.pattern.permute.xlu0 0
        %3775 = vperm.xlu0 %3774, %v3705
        %v3776 = vpop.permute.xlu0 %3775
        %3779 = vset.pattern.permute.xlu0 0
        %3780 = vperm.xlu0 %3779, %v3706
        %v3781 = vpop.permute.xlu0 %3780
        %3784 = vset.pattern.permute.xlu0 0
        %3785 = vperm.xlu0 %3784, %v3707
        %v3786 = vpop.permute.xlu0 %3785
        %3789 = vset.pattern.permute.xlu0 0
        %3790 = vperm.xlu0 %3789, %v3708
        %v3791 = vpop.permute.xlu0 %3790
        %3794 = vset.pattern.permute.xlu0 0
        %3795 = vperm.xlu0 %3794, %v3709
        %v3796 = vpop.permute.xlu0 %3795
        %3799 = vset.pattern.permute.xlu0 0
        %3800 = vperm.xlu0 %3799, %v3710
        %v3801 = vpop.permute.xlu0 %3800
        %3804 = vset.pattern.permute.xlu0 0
        %3805 = vperm.xlu0 %3804, %v3711
        %v3806 = vpop.permute.xlu0 %3805
        %3809 = vset.pattern.permute.xlu0 0
        %3810 = vperm.xlu0 %3809, %v3712
        %v3811 = vpop.permute.xlu0 %3810
        %3814 = vset.pattern.permute.xlu0 0
        %3815 = vperm.xlu0 %3814, %v3713
        %v3816 = vpop.permute.xlu0 %3815
        %3819 = vset.pattern.permute.xlu0 0
        %3820 = vperm.xlu0 %3819, %v3714
        %v3821 = vpop.permute.xlu0 %3820
        %3824 = vset.pattern.permute.xlu0 0
        %3825 = vperm.xlu0 %3824, %v3715
        %v3826 = vpop.permute.xlu0 %3825
        %3829 = vset.pattern.permute.xlu0 0
        %3830 = vperm.xlu0 %3829, %v3716
        %v3831 = vpop.permute.xlu0 %3830
        %3834 = vset.pattern.permute.xlu0 0
        %3835 = vperm.xlu0 %3834, %v3717
        %v3836 = vpop.permute.xlu0 %3835
        %3839 = vset.pattern.permute.xlu0 0
        %3840 = vperm.xlu0 %3839, %v3718
        %v3841 = vpop.permute.xlu0 %3840
        %3844 = vset.pattern.permute.xlu0 0
        %3845 = vperm.xlu0 %3844, %v3719
        %v3846 = vpop.permute.xlu0 %3845
        %3849 = vset.pattern.permute.xlu0 0
        %3850 = vperm.xlu0 %3849, %v3720
        %v3851 = vpop.permute.xlu0 %3850
        %3854 = vset.pattern.permute.xlu0 0
        %3855 = vperm.xlu0 %3854, %v3721
        %v3856 = vpop.permute.xlu0 %3855
        %3859 = vset.pattern.permute.xlu0 0
        %3860 = vperm.xlu0 %3859, %v3722
        %v3861 = vpop.permute.xlu0 %3860
        %3864 = vset.pattern.permute.xlu0 0
        %3865 = vperm.xlu0 %3864, %v3723
        %v3866 = vpop.permute.xlu0 %3865
        %3869 = vset.pattern.permute.xlu0 0
        %3870 = vperm.xlu0 %3869, %v3724
        %v3871 = vpop.permute.xlu0 %3870
        %3874 = vset.pattern.permute.xlu0 0
        %3875 = vperm.xlu0 %3874, %v3725
        %v3876 = vpop.permute.xlu0 %3875
        %3879 = vset.pattern.permute.xlu0 0
        %3880 = vperm.xlu0 %3879, %v3726
        %v3881 = vpop.permute.xlu0 %3880
        %3884 = vset.pattern.permute.xlu0 0
        %3885 = vperm.xlu0 %3884, %v3727
        %v3886 = vpop.permute.xlu0 %3885
        %3889 = vset.pattern.permute.xlu0 0
        %3890 = vperm.xlu0 %3889, %v3728
        %v3891 = vpop.permute.xlu0 %3890
        %3894 = vset.pattern.permute.xlu0 0
        %3895 = vperm.xlu0 %3894, %v3729
        %v3896 = vpop.permute.xlu0 %3895
        %3899 = vset.pattern.permute.xlu0 0
        %3900 = vperm.xlu0 %3899, %v3730
        %v3901 = vpop.permute.xlu0 %3900
        %3904 = vset.pattern.permute.xlu0 0
        %3905 = vperm.xlu0 %3904, %v3731
        %v3906 = vpop.permute.xlu0 %3905
        %3909 = vset.pattern.permute.xlu0 0
        %3910 = vperm.xlu0 %3909, %v3732
        %v3911 = vpop.permute.xlu0 %3910
        %3914 = vset.pattern.permute.xlu0 0
        %3915 = vperm.xlu0 %3914, %v3733
        %v3916 = vpop.permute.xlu0 %3915
        %3919 = vset.pattern.permute.xlu0 0
        %3920 = vperm.xlu0 %3919, %v3734
        %v3921 = vpop.permute.xlu0 %3920
        %3924 = vset.pattern.permute.xlu0 0
        %3925 = vperm.xlu0 %3924, %v3735
        %v3926 = vpop.permute.xlu0 %3925
        %3929 = vset.pattern.permute.xlu0 0
        %3930 = vperm.xlu0 %3929, %v3736
        %v3931 = vpop.permute.xlu0 %3930
        %3934 = vset.pattern.permute.xlu0 0
        %3935 = vperm.xlu0 %3934, %v3737
        %v3936 = vpop.permute.xlu0 %3935
        %3939 = vset.pattern.permute.xlu0 0
        %3940 = vperm.xlu0 %3939, %v3738
        %v3941 = vpop.permute.xlu0 %3940
        %3944 = vset.pattern.permute.xlu0 0
        %3945 = vperm.xlu0 %3944, %v3739
        %v3946 = vpop.permute.xlu0 %3945
        %3949 = vset.pattern.permute.xlu0 0
        %3950 = vperm.xlu0 %3949, %v3740
        %v3951 = vpop.permute.xlu0 %3950
        %3954 = vset.pattern.permute.xlu0 0
        %3955 = vperm.xlu0 %3954, %v3741
        %v3956 = vpop.permute.xlu0 %3955
        %3959 = vset.pattern.permute.xlu0 0
        %3960 = vperm.xlu0 %3959, %v3742
        %v3961 = vpop.permute.xlu0 %3960
        %3964 = vset.pattern.permute.xlu0 0
        %3965 = vperm.xlu0 %3964, %v3743
        %v3966 = vpop.permute.xlu0 %3965
        %3969 = vset.pattern.permute.xlu0 0
        %3970 = vperm.xlu0 %3969, %v3744
        %v3971 = vpop.permute.xlu0 %3970
        %3974 = vset.pattern.permute.xlu0 0
        %3975 = vperm.xlu0 %3974, %v3745
        %v3976 = vpop.permute.xlu0 %3975
        %3979 = vset.pattern.permute.xlu0 0
        %3980 = vperm.xlu0 %3979, %v3746
        %v3981 = vpop.permute.xlu0 %3980
        %3984 = vset.pattern.permute.xlu0 0
        %3985 = vperm.xlu0 %3984, %v3747
        %v3986 = vpop.permute.xlu0 %3985
        %3989 = vset.pattern.permute.xlu0 0
        %3990 = vperm.xlu0 %3989, %v3748
        %v3991 = vpop.permute.xlu0 %3990
        %3994 = vset.pattern.permute.xlu0 0
        %3995 = vperm.xlu0 %3994, %v3749
        %v3996 = vpop.permute.xlu0 %3995
        %3999 = vset.pattern.permute.xlu0 0
        %4000 = vperm.xlu0 %3999, %v3750
        %v4001 = vpop.permute.xlu0 %4000
        %4004 = vset.pattern.permute.xlu0 0
        %4005 = vperm.xlu0 %4004, %v3751
        %v4006 = vpop.permute.xlu0 %4005
        %4009 = vset.pattern.permute.xlu0 0
        %4010 = vperm.xlu0 %4009, %v3752
        %v4011 = vpop.permute.xlu0 %4010
        %4014 = vset.pattern.permute.xlu0 0
        %4015 = vperm.xlu0 %4014, %v3753
        %v4016 = vpop.permute.xlu0 %4015
        %4019 = vset.pattern.permute.xlu0 0
        %4020 = vperm.xlu0 %4019, %v3754
        %v4021 = vpop.permute.xlu0 %4020
        %4024 = vset.pattern.permute.xlu0 0
        %4025 = vperm.xlu0 %4024, %v3755
        %v4026 = vpop.permute.xlu0 %4025
        %4029 = vset.pattern.permute.xlu0 0
        %4030 = vperm.xlu0 %4029, %v3756
        %v4031 = vpop.permute.xlu0 %4030
        %4034 = vset.pattern.permute.xlu0 0
        %4035 = vperm.xlu0 %4034, %v3757
        %v4036 = vpop.permute.xlu0 %4035
        %4039 = vset.pattern.permute.xlu0 0
        %4040 = vperm.xlu0 %4039, %v3758
        %v4041 = vpop.permute.xlu0 %4040
        %4044 = vset.pattern.permute.xlu0 0
        %4045 = vperm.xlu0 %4044, %v3759
        %v4046 = vpop.permute.xlu0 %4045
        %4049 = vset.pattern.permute.xlu0 0
        %4050 = vperm.xlu0 %4049, %v3760
        %v4051 = vpop.permute.xlu0 %4050
        %4054 = vset.pattern.permute.xlu0 0
        %4055 = vperm.xlu0 %4054, %v3761
        %v4056 = vpop.permute.xlu0 %4055
        %4059 = vset.pattern.permute.xlu0 0
        %4060 = vperm.xlu0 %4059, %v3762
        %v4061 = vpop.permute.xlu0 %4060
        %4064 = vset.pattern.permute.xlu0 0
        %4065 = vperm.xlu0 %4064, %v3763
        %v4066 = vpop.permute.xlu0 %4065
        %4069 = vset.pattern.permute.xlu0 0
        %4070 = vperm.xlu0 %4069, %v3764
        %v4071 = vpop.permute.xlu0 %4070
        %4074 = vset.pattern.permute.xlu0 0
        %4075 = vperm.xlu0 %4074, %v3765
        %v4076 = vpop.permute.xlu0 %4075
        %4079 = vset.pattern.permute.xlu0 0
        %4080 = vperm.xlu0 %4079, %v3766
        %v4081 = vpop.permute.xlu0 %4080
        %4084 = vset.pattern.permute.xlu0 0
        %4085 = vperm.xlu0 %4084, %v3767
        %v4086 = vpop.permute.xlu0 %4085
        %v4088 = vmul.f32 %v3771, %v3450
        %v4089 = vmul.f32 %v3776, %v3453
        %v4090 = vmul.f32 %v3781, %v3458
        %v4091 = vmul.f32 %v3786, %v3461
        %v4092 = vmul.f32 %v3791, %v3466
        %v4093 = vmul.f32 %v3796, %v3469
        %v4094 = vmul.f32 %v3801, %v3474
        %v4095 = vmul.f32 %v3806, %v3477
        %v4096 = vmul.f32 %v3811, %v3482
        %v4097 = vmul.f32 %v3816, %v3485
        %v4098 = vmul.f32 %v3821, %v3490
        %v4099 = vmul.f32 %v3826, %v3493
        %v4100 = vmul.f32 %v3831, %v3498
        %v4101 = vmul.f32 %v3836, %v3501
        %v4102 = vmul.f32 %v3841, %v3506
        %v4103 = vmul.f32 %v3846, %v3509
        %v4104 = vmul.f32 %v3851, %v3514
        %v4105 = vmul.f32 %v3856, %v3517
        %v4106 = vmul.f32 %v3861, %v3522
        %v4107 = vmul.f32 %v3866, %v3525
        %v4108 = vmul.f32 %v3871, %v3530
        %v4109 = vmul.f32 %v3876, %v3533
        %v4110 = vmul.f32 %v3881, %v3538
        %v4111 = vmul.f32 %v3886, %v3541
        %v4112 = vmul.f32 %v3891, %v3546
        %v4113 = vmul.f32 %v3896, %v3549
        %v4114 = vmul.f32 %v3901, %v3554
        %v4115 = vmul.f32 %v3906, %v3557
        %v4116 = vmul.f32 %v3911, %v3562
        %v4117 = vmul.f32 %v3916, %v3565
        %v4118 = vmul.f32 %v3921, %v3570
        %v4119 = vmul.f32 %v3926, %v3573
        %v4120 = vmul.f32 %v3931, %v3578
        %v4121 = vmul.f32 %v3936, %v3581
        %v4122 = vmul.f32 %v3941, %v3586
        %v4123 = vmul.f32 %v3946, %v3589
        %v4124 = vmul.f32 %v3951, %v3594
        %v4125 = vmul.f32 %v3956, %v3597
        %v4126 = vmul.f32 %v3961, %v3602
        %v4127 = vmul.f32 %v3966, %v3605
        %v4128 = vmul.f32 %v3971, %v3610
        %v4129 = vmul.f32 %v3976, %v3613
        %v4130 = vmul.f32 %v3981, %v3618
        %v4131 = vmul.f32 %v3986, %v3621
        %v4132 = vmul.f32 %v3991, %v3626
        %v4133 = vmul.f32 %v3996, %v3629
        %v4134 = vmul.f32 %v4001, %v3634
        %v4135 = vmul.f32 %v4006, %v3637
        %v4136 = vmul.f32 %v4011, %v3642
        %v4137 = vmul.f32 %v4016, %v3645
        %v4138 = vmul.f32 %v4021, %v3650
        %v4139 = vmul.f32 %v4026, %v3653
        %v4140 = vmul.f32 %v4031, %v3658
        %v4141 = vmul.f32 %v4036, %v3661
        %v4142 = vmul.f32 %v4041, %v3666
        %v4143 = vmul.f32 %v4046, %v3669
        %v4144 = vmul.f32 %v4051, %v3674
        %v4145 = vmul.f32 %v4056, %v3677
        %v4146 = vmul.f32 %v4061, %v3682
        %v4147 = vmul.f32 %v4066, %v3685
        %v4148 = vmul.f32 %v4071, %v3690
        %v4149 = vmul.f32 %v4076, %v3693
        %v4150 = vmul.f32 %v4081, %v3698
        %v4151 = vmul.f32 %v4086, %v3701
        %4152 = vst [vmem:[%s369] sm:$0xff] %v4088
        %4153 = vst [vmem:[%s369 + $0x8] sm:$0xff] %v4089
        %4154 = vst [vmem:[%s369 + $0x10] sm:$0xff] %v4090
        %4155 = vst [vmem:[%s369 + $0x18] sm:$0xff] %v4091
        %4156 = vst [vmem:[%s369 + $0x20] sm:$0xff] %v4092
        %4157 = vst [vmem:[%s369 + $0x28] sm:$0xff] %v4093
        %4158 = vst [vmem:[%s369 + $0x30] sm:$0xff] %v4094
        %4159 = vst [vmem:[%s369 + $0x38] sm:$0xff] %v4095
        %4160 = vst [vmem:[%s369 + $0x40] sm:$0xff] %v4096
        %4161 = vst [vmem:[%s369 + $0x48] sm:$0xff] %v4097
        %4162 = vst [vmem:[%s369 + $0x50] sm:$0xff] %v4098
        %4163 = vst [vmem:[%s369 + $0x58] sm:$0xff] %v4099
        %4164 = vst [vmem:[%s369 + $0x60] sm:$0xff] %v4100
        %4165 = vst [vmem:[%s369 + $0x68] sm:$0xff] %v4101
        %4166 = vst [vmem:[%s369 + $0x70] sm:$0xff] %v4102
        %4167 = vst [vmem:[%s369 + $0x78] sm:$0xff] %v4103
        %4168 = vst [vmem:[%s369 + $0x80] sm:$0xff] %v4104
        %4169 = vst [vmem:[%s369 + $0x88] sm:$0xff] %v4105
        %4170 = vst [vmem:[%s369 + $0x90] sm:$0xff] %v4106
        %4171 = vst [vmem:[%s369 + $0x98] sm:$0xff] %v4107
        %4172 = vst [vmem:[%s369 + $0xa0] sm:$0xff] %v4108
        %4173 = vst [vmem:[%s369 + $0xa8] sm:$0xff] %v4109
        %4174 = vst [vmem:[%s369 + $0xb0] sm:$0xff] %v4110
        %4175 = vst [vmem:[%s369 + $0xb8] sm:$0xff] %v4111
        %4176 = vst [vmem:[%s369 + $0xc0] sm:$0xff] %v4112
        %4177 = vst [vmem:[%s369 + $0xc8] sm:$0xff] %v4113
        %4178 = vst [vmem:[%s369 + $0xd0] sm:$0xff] %v4114
        %4179 = vst [vmem:[%s369 + $0xd8] sm:$0xff] %v4115
        %4180 = vst [vmem:[%s369 + $0xe0] sm:$0xff] %v4116
        %4181 = vst [vmem:[%s369 + $0xe8] sm:$0xff] %v4117
        %4182 = vst [vmem:[%s369 + $0xf0] sm:$0xff] %v4118
        %4183 = vst [vmem:[%s369 + $0xf8] sm:$0xff] %v4119
        %4184 = vst [vmem:[%s369 + $0x100] sm:$0xff] %v4120
        %4185 = vst [vmem:[%s369 + $0x108] sm:$0xff] %v4121
        %4186 = vst [vmem:[%s369 + $0x110] sm:$0xff] %v4122
        %4187 = vst [vmem:[%s369 + $0x118] sm:$0xff] %v4123
        %4188 = vst [vmem:[%s369 + $0x120] sm:$0xff] %v4124
        %4189 = vst [vmem:[%s369 + $0x128] sm:$0xff] %v4125
        %4190 = vst [vmem:[%s369 + $0x130] sm:$0xff] %v4126
        %4191 = vst [vmem:[%s369 + $0x138] sm:$0xff] %v4127
        %4192 = vst [vmem:[%s369 + $0x140] sm:$0xff] %v4128
        %4193 = vst [vmem:[%s369 + $0x148] sm:$0xff] %v4129
        %4194 = vst [vmem:[%s369 + $0x150] sm:$0xff] %v4130
        %4195 = vst [vmem:[%s369 + $0x158] sm:$0xff] %v4131
        %4196 = vst [vmem:[%s369 + $0x160] sm:$0xff] %v4132
        %4197 = vst [vmem:[%s369 + $0x168] sm:$0xff] %v4133
        %4198 = vst [vmem:[%s369 + $0x170] sm:$0xff] %v4134
        %4199 = vst [vmem:[%s369 + $0x178] sm:$0xff] %v4135
        %4200 = vst [vmem:[%s369 + $0x180] sm:$0xff] %v4136
        %4201 = vst [vmem:[%s369 + $0x188] sm:$0xff] %v4137
        %4202 = vst [vmem:[%s369 + $0x190] sm:$0xff] %v4138
        %4203 = vst [vmem:[%s369 + $0x198] sm:$0xff] %v4139
        %4204 = vst [vmem:[%s369 + $0x1a0] sm:$0xff] %v4140
        %4205 = vst [vmem:[%s369 + $0x1a8] sm:$0xff] %v4141
        %4206 = vst [vmem:[%s369 + $0x1b0] sm:$0xff] %v4142
        %4207 = vst [vmem:[%s369 + $0x1b8] sm:$0xff] %v4143
        %4208 = vst [vmem:[%s369 + $0x1c0] sm:$0xff] %v4144
        %4209 = vst [vmem:[%s369 + $0x1c8] sm:$0xff] %v4145
        %4210 = vst [vmem:[%s369 + $0x1d0] sm:$0xff] %v4146
        %4211 = vst [vmem:[%s369 + $0x1d8] sm:$0xff] %v4147
        %4212 = vst [vmem:[%s369 + $0x1e0] sm:$0xff] %v4148
        %4213 = vst [vmem:[%s369 + $0x1e8] sm:$0xff] %v4149
        %4214 = vst [vmem:[%s369 + $0x1f0] sm:$0xff] %v4150
        %4215 = vst [vmem:[%s369 + $0x1f8] sm:$0xff] %v4151
        %s4216 = sand.u32 %s252, 1
        %s4217 = scalar_lea.sflag [#allocation3], %s4216
        %s4218 = sand.u32 %s252, 1
        %s4219 = smul.addr %s4218, 512
        %s4220 = scalar_lea.vmem [#allocation2], %s4219
        // Predicated region
        $region61: #{tpu_custom_call.1} parent=59 // pred_check
          %p4221 = pneg %p262
        $region62: #{tpu_custom_call.1} parent=59 // pred_check_branch
          %4223 = sbr.rel (%p4221) target = $region64
        $region63: #{tpu_custom_call.1} parent=59 // pred_region
          %s4224 = smul.u32 64, %s24
          %s4226 = ssub.s32 8192, 8192
          %4227 = vsyncadd %s4217, %s4226
          %s4228 = smul.addr %s4224, 128
          %s4229 = scalar_lea.hbm %s10, %s4228
          %s4230 = sshll.u32 %s4220, 4
          %s4231 = int_to_ptr.vmem [resolvable:$true] %s4230
          %4236 = dma.vmem_to_hbm [thread:$0]  %s4231, 8192, %s4229, %s4217, 128, 128, 8
        $region64: #{tpu_custom_call.1} parent=59 // pred_fallthru
          _
      $region60: #{tpu_custom_call.1} parent=5 // pred_fallthru
        _
      %p4237 = scmp.le.s32.totalorder 2, %s19
      // Predicated region
      $region65: #{tpu_custom_call.1} parent=5 // pred_check
        %p4238 = pneg %p4237
      $region66: #{tpu_custom_call.1} parent=5 // pred_check_branch
        %4240 = sbr.rel (%p4238) target = $region68
      $region67: #{tpu_custom_call.1} parent=5 // pred_region
        %s4241 = ssub.s32 %s19, 2
        // Predicated region
        $region69: #{tpu_custom_call.1} parent=67 // pred_check
          %p4242 = pneg %p268
        $region70: #{tpu_custom_call.1} parent=67 // pred_check_branch
          %4244 = sbr.rel (%p4242) target = $region72
        $region71: #{tpu_custom_call.1} parent=67 // pred_region
          %s4245 = sand.u32 %s253, 1
          %s4246 = scalar_lea.sflag [#allocation3], %s4245
          %s4247 = sand.u32 %s253, 1
          %s4248 = smul.addr %s4247, 512
          %s4249 = scalar_lea.vmem [#allocation2], %s4248
          %4250 = dma.done %s4246, 8192
        $region72: #{tpu_custom_call.1} parent=67 // pred_fallthru
          _
      $region68: #{tpu_custom_call.1} parent=5 // pred_fallthru
        _
    $region6: #{tpu_custom_call.1} parent=1 // loop_footer
      %s23 = sadd.s32 1, %s19
    $region7: #{tpu_custom_call.1} parent=1 // loop_footer_branch
      %18 = sbr.rel target = $region3
    $region8: #{tpu_custom_call.1} parent=1 // loop_exit
      _
    %4251 = vsyncpa [#allocation3], 1
    %s4252 = scalar_lea.sflag [#allocation3], 1
    %4253 = vsyncpa %s4252, 1

</llo_original>
